<compile_context>
chip_gen: v7x
topology: tpu7x:2x2x1
jax: 0.10.0
libtpu: 0.0.40
codegen_flags: <defaults>
</compile_context>

<pallas_src>
import functools

import jax
import jax.numpy as jnp
from jax import lax
from jax.experimental import pallas as pl
from jax.experimental.pallas import tpu as pltpu


# ----------------------------------------------------------------------------
# shared math helpers (used identically in the kernel and the pure-JAX ref)
# ----------------------------------------------------------------------------
def _layernorm(x, gamma, beta, eps=1e-5):
    mu = jnp.mean(x, axis=-1, keepdims=True)
    var = jnp.mean(jnp.square(x - mu), axis=-1, keepdims=True)
    return (x - mu) * lax.rsqrt(var + eps) * gamma + beta


def _gelu(x):
    # TODO(synk): torch nn.GELU() defaults to the exact erf form; the tanh
    # approximation is used here (and in the reference) for a safe Mosaic
    # lowering — max deviation ~1e-3.
    c = 0.7978845608028654  # sqrt(2/pi)
    return 0.5 * x * (1.0 + jnp.tanh(c * (x + 0.044715 * x * x * x)))


# ----------------------------------------------------------------------------
# fully fused ViT kernel — one image per grid step
# ----------------------------------------------------------------------------
def _vit_kernel(p_ref, wpe_ref, add_ref, *rest, num_layers, num_heads):
    # p_ref:   (1, S, C*P*P)   row 0 is zeros (class-token slot)
    # wpe_ref: (C*P*P, D)
    # add_ref: (S, D)          row 0 = cls + pos[0]; rows i>0 = b_pe + pos[i]
    # rest:    12 refs per encoder layer, then 4 head refs, then the output ref
    layer_refs = rest[:12 * num_layers]
    gh_ref, bh_ref, wh_ref, bhh_ref, o_ref = rest[12 * num_layers:]

    # ---- patch embedding (+ folded cls token / positional encoding) ----
    x = jnp.dot(p_ref[0], wpe_ref[...],
                preferred_element_type=jnp.float32) + add_ref[...]      # (S, D)
    S, D = x.shape
    Dh = D // num_heads
    scale = 1.0 / float(Dh) ** 0.5

    # per-head lane masks (built once; avoids sub-128 lane slicing of q/k/v)
    lane = lax.broadcasted_iota(jnp.int32, (1, D), 1)
    head_masks = [
        jnp.logical_and(lane >= h * Dh, lane < (h + 1) * Dh).astype(jnp.float32)
        for h in range(num_heads)
    ]

    for l in range(num_layers):
        (g1, be1, wqkv, bqkv, wo, bo,
         g2, be2, w1, b1, w2, b2) = layer_refs[12 * l:12 * (l + 1)]

        # ---- ResidualAdd(PreNorm(MSA)) ----
        xn = _layernorm(x, g1[...], be1[...])
        qkv = jnp.dot(xn, wqkv[...],
                      preferred_element_type=jnp.float32) + bqkv[...]   # (S, 3D)
        q = qkv[:, 0 * D:1 * D]     # 128-lane aligned slices
        k = qkv[:, 1 * D:2 * D]
        v = qkv[:, 2 * D:3 * D]

        ctx = jnp.zeros((S, D), jnp.float32)
        for h in range(num_heads):                 # static unroll (small H)
            mh = head_masks[h]                     # (1, D) one-hot over head lanes
            # masked q kills cross-head terms in the full-width contraction
            s = lax.dot_general(q * (mh * scale), k,
                                (((1,), (1,)), ((), ())),
                                preferred_element_type=jnp.float32)     # (S, S)
            s = s - jnp.max(s, axis=-1, keepdims=True)
            p = jnp.exp(s)
            p = p / jnp.sum(p, axis=-1, keepdims=True)
            # masked v -> per-head context lands in its own (disjoint) lanes
            ctx = ctx + jnp.dot(p, v * mh, preferred_element_type=jnp.float32)
        x = x + jnp.dot(ctx, wo[...],
                        preferred_element_type=jnp.float32) + bo[...]

        # ---- ResidualAdd(PreNorm(MLP)) ----  (dropout = identity at inference)
        xn2 = _layernorm(x, g2[...], be2[...])
        h1 = _gelu(jnp.dot(xn2, w1[...],
                           preferred_element_type=jnp.float32) + b1[...])
        x = x + jnp.dot(h1, w2[...],
                        preferred_element_type=jnp.float32) + b2[...]

    # ---- classifier head on the class token ----
    cls = x[0:1, :]                                                     # (1, D)
    z = _layernorm(cls, gh_ref[...], bh_ref[...])
    o_ref[0] = jnp.dot(z, wh_ref[...],
                       preferred_element_type=jnp.float32) + bhh_ref[...]


def _resident(arr):
    """BlockSpec for a weight that stays VMEM-resident across the batch grid."""
    nd = arr.ndim
    return pl.BlockSpec(arr.shape, lambda i, _n=nd: (0,) * _n)


def vit_forward(x, params, *, patch_size, num_heads):
    x = x.astype(jnp.float32)
    B, C, H, W = x.shape
    P = patch_size
    Hp, Wp = H // P, W // P
    N = Hp * Wp
    S = N + 1
    CPP = C * P * P
    D = params["w_pe"].shape[1]
    M = params["layers"][0]["w1"].shape[1]
    L = len(params["layers"])
    num_classes = params["w_head"].shape[1]
    nc_pad = ((num_classes + 127) // 128) * 128     # lane-dense head output

    # PatchEmbedding: non-overlapping stride-P conv == per-patch linear (im2col)
    patches = x.reshape(B, C, Hp, P, Wp, P)
    patches = jnp.transpose(patches, (0, 2, 4, 1, 3, 5)).reshape(B, N, CPP)
    patches_ext = jnp.concatenate(
        [jnp.zeros((B, 1, CPP), jnp.float32), patches], axis=1)        # (B, S, CPP)
    # class token + positional encoding folded into one additive table
    add_tbl = jnp.concatenate(
        [params["cls"] + params["pos"][0:1],
         params["pos"][1:] + params["b_pe"][None, :]], axis=0)         # (S, D)

    w_head_p = jnp.zeros((D, nc_pad), jnp.float32).at[:, :num_classes].set(
        params["w_head"])
    bias_head_p = jnp.zeros((1, nc_pad), jnp.float32).at[:, :num_classes].set(
        params["bias_head"][None, :])

    args = [patches_ext, params["w_pe"], add_tbl]
    in_specs = [
        pl.BlockSpec((1, S, CPP), lambda i: (i, 0, 0)),
        _resident(params["w_pe"]),
        _resident(add_tbl),
    ]
    for lp in params["layers"]:
        layer_args = [
            lp["g1"].reshape(1, D), lp["beta1"].reshape(1, D),
            lp["wqkv"], lp["bqkv"].reshape(1, 3 * D),
            lp["wo"], lp["bo"].reshape(1, D),
            lp["g2"].reshape(1, D), lp["beta2"].reshape(1, D),
            lp["w1"], lp["b1"].reshape(1, M),
            lp["w2"], lp["b2"].reshape(1, D),
        ]
        args += layer_args
        in_specs += [_resident(a) for a in layer_args]
    head_args = [params["g_head"].reshape(1, D), params["b_head"].reshape(1, D),
                 w_head_p, bias_head_p]
    args += head_args
    in_specs += [_resident(a) for a in head_args]

    kernel = functools.partial(_vit_kernel, num_layers=L, num_heads=num_heads)
    out = pl.pallas_call(
        kernel,
        out_shape=jax.ShapeDtypeStruct((B, 1, nc_pad), jnp.float32),
        grid_spec=pltpu.PrefetchScalarGridSpec(
            num_scalar_prefetch=0,
            grid=(B,),
            in_specs=in_specs,
            out_specs=pl.BlockSpec((1, 1, nc_pad), lambda i: (i, 0, 0)),
        ),
        compiler_params=pltpu.CompilerParams(
            dimension_semantics=("parallel",)),
    )(*args)
    return out[:, 0, :num_classes]


# ----------------------------------------------------------------------------
# pure-JAX reference for validation
# ----------------------------------------------------------------------------
def reference_forward(x, params, *, patch_size, num_heads):
    prec = lax.Precision.HIGHEST
    x = x.astype(jnp.float32)
    B, C, H, W = x.shape
    P = patch_size
    Hp, Wp = H // P, W // P
    N = Hp * Wp
    D = params["w_pe"].shape[1]
    Dh = D // num_heads

    patches = x.reshape(B, C, Hp, P, Wp, P)
    patches = jnp.transpose(patches, (0, 2, 4, 1, 3, 5)).reshape(B, N, C * P * P)
    tok = jnp.dot(patches, params["w_pe"], precision=prec) + params["b_pe"]
    cls = jnp.broadcast_to(params["cls"][None, :, :], (B, 1, D))
    tok = jnp.concatenate([cls, tok], axis=1) + params["pos"][None]

    def heads(t):
        return t.reshape(B, -1, num_heads, Dh).transpose(0, 2, 1, 3)

    for lp in params["layers"]:
        z = _layernorm(tok, lp["g1"], lp["beta1"])
        qkv = jnp.dot(z, lp["wqkv"], precision=prec) + lp["bqkv"]
        q, k, v = jnp.split(qkv, 3, axis=-1)
        qh, kh, vh = heads(q), heads(k), heads(v)
        s = jnp.einsum("bhqd,bhkd->bhqk", qh, kh,
                       precision=prec) / jnp.sqrt(float(Dh))
        p = jax.nn.softmax(s, axis=-1)
        a = jnp.einsum("bhqk,bhkd->bhqd", p, vh,
                       precision=prec).transpose(0, 2, 1, 3).reshape(B, -1, D)
        tok = tok + (jnp.dot(a, lp["wo"], precision=prec) + lp["bo"])

        z = _layernorm(tok, lp["g2"], lp["beta2"])
        hmid = _gelu(jnp.dot(z, lp["w1"], precision=prec) + lp["b1"])
        tok = tok + (jnp.dot(hmid, lp["w2"], precision=prec) + lp["b2"])

    cls_tok = tok[:, 0, :]
    z = _layernorm(cls_tok, params["g_head"], params["b_head"])
    return jnp.dot(z, params["w_head"], precision=prec) + params["bias_head"]


# ----------------------------------------------------------------------------
# parameter construction (kernel-friendly layouts: weights stored pre-transposed)
# ----------------------------------------------------------------------------
def init_params(key, *, in_channels, image_size, patch_size, embed_dim,
                mlp_size, num_encoders, num_classes):
    P = patch_size
    N = (image_size // P) ** 2
    S = N + 1
    CPP = in_channels * P * P
    keys = iter(jax.random.split(key, 8 + 12 * num_encoders))

    def nrm(shape, scale):
        return jax.random.normal(next(keys), shape, jnp.float32) * scale

    params = {
        "w_pe": nrm((CPP, embed_dim), 0.05),
        "b_pe": nrm((embed_dim,), 0.02),
        "cls": nrm((1, embed_dim), 0.02),
        "pos": nrm((S, embed_dim), 0.02),
        "layers": [],
        "g_head": 1.0 + nrm((embed_dim,), 0.1),
        "b_head": nrm((embed_dim,), 0.05),
        "w_head": nrm((embed_dim, num_classes), 0.05),
        "bias_head": nrm((num_classes,), 0.02),
    }
    for _ in range(num_encoders):
        params["layers"].append({
            "g1": 1.0 + nrm((embed_dim,), 0.1),
            "beta1": nrm((embed_dim,), 0.05),
            "wqkv": nrm((embed_dim, 3 * embed_dim), 0.05),
            "bqkv": nrm((3 * embed_dim,), 0.02),
            "wo": nrm((embed_dim, embed_dim), 0.05),
            "bo": nrm((embed_dim,), 0.02),
            "g2": 1.0 + nrm((embed_dim,), 0.1),
            "beta2": nrm((embed_dim,), 0.05),
            "w1": nrm((embed_dim, mlp_size), 0.05),
            "b1": nrm((mlp_size,), 0.02),
            "w2": nrm((mlp_size, embed_dim), 0.05),
            "b2": nrm((embed_dim,), 0.02),
        })
    return params


if __name__ == "__main__":
    cfg = dict(in_channels=3, image_size=32, patch_size=8, num_encoders=2,
               embed_dim=128, mlp_size=256, num_classes=3)
    num_heads = 4
    B = 2

    kp, kx = jax.random.split(jax.random.PRNGKey(0))
    params = init_params(kp, **cfg)
    x = jax.random.normal(
        kx, (B, cfg["in_channels"], cfg["image_size"], cfg["image_size"]),
        jnp.float32)

    fwd = jax.jit(functools.partial(
        vit_forward, patch_size=cfg["patch_size"], num_heads=num_heads))
    out = jax.block_until_ready(fwd(x, params))
    ref = jax.block_until_ready(
        reference_forward(x, params, patch_size=cfg["patch_size"],
                          num_heads=num_heads))

    assert out.shape == (B, cfg["num_classes"]), out.shape
    err = float(jnp.max(jnp.abs(out - ref)))
    if not jnp.allclose(out, ref, atol=2e-2, rtol=2e-2):
        raise AssertionError(f"mismatch vs reference, max abs err={err}")
    print("KERNEL_OK")
</pallas_src>

<mosaic_0001>
module attributes {stable_mosaic.version = 11 : i64} {
  func.func @_vit_kernel(%arg0: i32, %arg1: memref<1x17x192xf32, #tpu.memory_space<vmem>>, %arg2: memref<192x128xf32, #tpu.memory_space<vmem>>, %arg3: memref<17x128xf32, #tpu.memory_space<vmem>>, %arg4: memref<1x128xf32, #tpu.memory_space<vmem>>, %arg5: memref<1x128xf32, #tpu.memory_space<vmem>>, %arg6: memref<128x384xf32, #tpu.memory_space<vmem>>, %arg7: memref<1x384xf32, #tpu.memory_space<vmem>>, %arg8: memref<128x128xf32, #tpu.memory_space<vmem>>, %arg9: memref<1x128xf32, #tpu.memory_space<vmem>>, %arg10: memref<1x128xf32, #tpu.memory_space<vmem>>, %arg11: memref<1x128xf32, #tpu.memory_space<vmem>>, %arg12: memref<128x256xf32, #tpu.memory_space<vmem>>, %arg13: memref<1x256xf32, #tpu.memory_space<vmem>>, %arg14: memref<256x128xf32, #tpu.memory_space<vmem>>, %arg15: memref<1x128xf32, #tpu.memory_space<vmem>>, %arg16: memref<1x128xf32, #tpu.memory_space<vmem>>, %arg17: memref<1x128xf32, #tpu.memory_space<vmem>>, %arg18: memref<128x384xf32, #tpu.memory_space<vmem>>, %arg19: memref<1x384xf32, #tpu.memory_space<vmem>>, %arg20: memref<128x128xf32, #tpu.memory_space<vmem>>, %arg21: memref<1x128xf32, #tpu.memory_space<vmem>>, %arg22: memref<1x128xf32, #tpu.memory_space<vmem>>, %arg23: memref<1x128xf32, #tpu.memory_space<vmem>>, %arg24: memref<128x256xf32, #tpu.memory_space<vmem>>, %arg25: memref<1x256xf32, #tpu.memory_space<vmem>>, %arg26: memref<256x128xf32, #tpu.memory_space<vmem>>, %arg27: memref<1x128xf32, #tpu.memory_space<vmem>>, %arg28: memref<1x128xf32, #tpu.memory_space<vmem>>, %arg29: memref<1x128xf32, #tpu.memory_space<vmem>>, %arg30: memref<128x128xf32, #tpu.memory_space<vmem>>, %arg31: memref<1x128xf32, #tpu.memory_space<vmem>>, %arg32: memref<1x1x128xf32, #tpu.memory_space<vmem>>) attributes {dimension_semantics = [#tpu.dimension_semantics<parallel>], iteration_bounds = array<i64: 2>, scalar_prefetch = 0 : i64, scratch_operands = 0 : i64, tpu.core_type = #tpu.core_type<tc>, window_params = [{transform_indices = @transform_0, window_bounds = array<i64: 1, 17, 192>}, {pipeline_mode = #tpu.pipeline_mode<synchronous>, transform_indices = @transform_1, window_bounds = array<i64: 192, 128>}, {pipeline_mode = #tpu.pipeline_mode<synchronous>, transform_indices = @transform_2, window_bounds = array<i64: 17, 128>}, {pipeline_mode = #tpu.pipeline_mode<synchronous>, transform_indices = @transform_3, window_bounds = array<i64: 1, 128>}, {pipeline_mode = #tpu.pipeline_mode<synchronous>, transform_indices = @transform_4, window_bounds = array<i64: 1, 128>}, {pipeline_mode = #tpu.pipeline_mode<synchronous>, transform_indices = @transform_5, window_bounds = array<i64: 128, 384>}, {pipeline_mode = #tpu.pipeline_mode<synchronous>, transform_indices = @transform_6, window_bounds = array<i64: 1, 384>}, {pipeline_mode = #tpu.pipeline_mode<synchronous>, transform_indices = @transform_7, window_bounds = array<i64: 128, 128>}, {pipeline_mode = #tpu.pipeline_mode<synchronous>, transform_indices = @transform_8, window_bounds = array<i64: 1, 128>}, {pipeline_mode = #tpu.pipeline_mode<synchronous>, transform_indices = @transform_9, window_bounds = array<i64: 1, 128>}, {pipeline_mode = #tpu.pipeline_mode<synchronous>, transform_indices = @transform_10, window_bounds = array<i64: 1, 128>}, {pipeline_mode = #tpu.pipeline_mode<synchronous>, transform_indices = @transform_11, window_bounds = array<i64: 128, 256>}, {pipeline_mode = #tpu.pipeline_mode<synchronous>, transform_indices = @transform_12, window_bounds = array<i64: 1, 256>}, {pipeline_mode = #tpu.pipeline_mode<synchronous>, transform_indices = @transform_13, window_bounds = array<i64: 256, 128>}, {pipeline_mode = #tpu.pipeline_mode<synchronous>, transform_indices = @transform_14, window_bounds = array<i64: 1, 128>}, {pipeline_mode = #tpu.pipeline_mode<synchronous>, transform_indices = @transform_15, window_bounds = array<i64: 1, 128>}, {pipeline_mode = #tpu.pipeline_mode<synchronous>, transform_indices = @transform_16, window_bounds = array<i64: 1, 128>}, {pipeline_mode = #tpu.pipeline_mode<synchronous>, transform_indices = @transform_17, window_bounds = array<i64: 128, 384>}, {pipeline_mode = #tpu.pipeline_mode<synchronous>, transform_indices = @transform_18, window_bounds = array<i64: 1, 384>}, {pipeline_mode = #tpu.pipeline_mode<synchronous>, transform_indices = @transform_19, window_bounds = array<i64: 128, 128>}, {pipeline_mode = #tpu.pipeline_mode<synchronous>, transform_indices = @transform_20, window_bounds = array<i64: 1, 128>}, {pipeline_mode = #tpu.pipeline_mode<synchronous>, transform_indices = @transform_21, window_bounds = array<i64: 1, 128>}, {pipeline_mode = #tpu.pipeline_mode<synchronous>, transform_indices = @transform_22, window_bounds = array<i64: 1, 128>}, {pipeline_mode = #tpu.pipeline_mode<synchronous>, transform_indices = @transform_23, window_bounds = array<i64: 128, 256>}, {pipeline_mode = #tpu.pipeline_mode<synchronous>, transform_indices = @transform_24, window_bounds = array<i64: 1, 256>}, {pipeline_mode = #tpu.pipeline_mode<synchronous>, transform_indices = @transform_25, window_bounds = array<i64: 256, 128>}, {pipeline_mode = #tpu.pipeline_mode<synchronous>, transform_indices = @transform_26, window_bounds = array<i64: 1, 128>}, {pipeline_mode = #tpu.pipeline_mode<synchronous>, transform_indices = @transform_27, window_bounds = array<i64: 1, 128>}, {pipeline_mode = #tpu.pipeline_mode<synchronous>, transform_indices = @transform_28, window_bounds = array<i64: 1, 128>}, {pipeline_mode = #tpu.pipeline_mode<synchronous>, transform_indices = @transform_29, window_bounds = array<i64: 128, 128>}, {pipeline_mode = #tpu.pipeline_mode<synchronous>, transform_indices = @transform_30, window_bounds = array<i64: 1, 128>}, {transform_indices = @transform_31, window_bounds = array<i64: 1, 1, 128>}]} {
    %c0 = arith.constant 0 : index
    %c0_0 = arith.constant 0 : index
    %c0_1 = arith.constant 0 : index
    %0 = vector.load %arg1[%c0, %c0_0, %c0_1] : memref<1x17x192xf32, #tpu.memory_space<vmem>>, vector<1x17x192xf32>
    %1 = vector.shape_cast %0 : vector<1x17x192xf32> to vector<17x192xf32>
    %c0_2 = arith.constant 0 : index
    %c0_3 = arith.constant 0 : index
    %2 = vector.load %arg2[%c0_2, %c0_3] : memref<192x128xf32, #tpu.memory_space<vmem>>, vector<192x128xf32>
    %cst = arith.constant dense<0.000000e+00> : vector<17x128xf32>
    %3 = tpu.matmul %1, %2, %cst {dimension_numbers = #tpu.dot_dimension_numbers<[1], [0], [0], [1], [0, 0, 1, 1], [], []>} : vector<17x192xf32>, vector<192x128xf32>, vector<17x128xf32> -> vector<17x128xf32>
    %c0_4 = arith.constant 0 : index
    %c0_5 = arith.constant 0 : index
    %4 = vector.load %arg3[%c0_4, %c0_5] : memref<17x128xf32, #tpu.memory_space<vmem>>, vector<17x128xf32>
    %5 = arith.addf %3, %4 : vector<17x128xf32>
    %6 = tpu.iota {dimensions = array<i32: 1>} : vector<1x128xi32>
    %c0_i32 = arith.constant 0 : i32
    %7 = vector.broadcast %c0_i32 : i32 to vector<1x128xi32>
    %8 = arith.cmpi sge, %6, %7 : vector<1x128xi32>
    %c32_i32 = arith.constant 32 : i32
    %9 = vector.broadcast %c32_i32 : i32 to vector<1x128xi32>
    %10 = arith.cmpi slt, %6, %9 : vector<1x128xi32>
    %11 = arith.andi %8, %10 : vector<1x128xi1>
    %12 = arith.extui %11 : vector<1x128xi1> to vector<1x128xi32>
    %13 = arith.sitofp %12 : vector<1x128xi32> to vector<1x128xf32>
    %c32_i32_6 = arith.constant 32 : i32
    %14 = vector.broadcast %c32_i32_6 : i32 to vector<1x128xi32>
    %15 = arith.cmpi sge, %6, %14 : vector<1x128xi32>
    %c64_i32 = arith.constant 64 : i32
    %16 = vector.broadcast %c64_i32 : i32 to vector<1x128xi32>
    %17 = arith.cmpi slt, %6, %16 : vector<1x128xi32>
    %18 = arith.andi %15, %17 : vector<1x128xi1>
    %19 = arith.extui %18 : vector<1x128xi1> to vector<1x128xi32>
    %20 = arith.sitofp %19 : vector<1x128xi32> to vector<1x128xf32>
    %c64_i32_7 = arith.constant 64 : i32
    %21 = vector.broadcast %c64_i32_7 : i32 to vector<1x128xi32>
    %22 = arith.cmpi sge, %6, %21 : vector<1x128xi32>
    %c96_i32 = arith.constant 96 : i32
    %23 = vector.broadcast %c96_i32 : i32 to vector<1x128xi32>
    %24 = arith.cmpi slt, %6, %23 : vector<1x128xi32>
    %25 = arith.andi %22, %24 : vector<1x128xi1>
    %26 = arith.extui %25 : vector<1x128xi1> to vector<1x128xi32>
    %27 = arith.sitofp %26 : vector<1x128xi32> to vector<1x128xf32>
    %c96_i32_8 = arith.constant 96 : i32
    %28 = vector.broadcast %c96_i32_8 : i32 to vector<1x128xi32>
    %29 = arith.cmpi sge, %6, %28 : vector<1x128xi32>
    %c128_i32 = arith.constant 128 : i32
    %30 = vector.broadcast %c128_i32 : i32 to vector<1x128xi32>
    %31 = arith.cmpi slt, %6, %30 : vector<1x128xi32>
    %32 = arith.andi %29, %31 : vector<1x128xi1>
    %33 = arith.extui %32 : vector<1x128xi1> to vector<1x128xi32>
    %34 = arith.sitofp %33 : vector<1x128xi32> to vector<1x128xf32>
    %c0_9 = arith.constant 0 : index
    %c0_10 = arith.constant 0 : index
    %35 = vector.load %arg4[%c0_9, %c0_10] : memref<1x128xf32, #tpu.memory_space<vmem>>, vector<1x128xf32>
    %c0_11 = arith.constant 0 : index
    %c0_12 = arith.constant 0 : index
    %36 = vector.load %arg5[%c0_11, %c0_12] : memref<1x128xf32, #tpu.memory_space<vmem>>, vector<1x128xf32>
    %cst_13 = arith.constant dense<0.000000e+00> : vector<17xf32>
    %37 = vector.multi_reduction <add>, %5, %cst_13 [1] : vector<17x128xf32> to vector<17xf32>
    %38 = vector.shape_cast %37 : vector<17xf32> to vector<17x1xf32>
    %cst_14 = arith.constant 1.280000e+02 : f32
    %39 = vector.broadcast %cst_14 : f32 to vector<17x1xf32>
    %40 = arith.divf %38, %39 : vector<17x1xf32>
    %41 = vector.broadcast %40 : vector<17x1xf32> to vector<17x128xf32>
    %42 = arith.subf %5, %41 : vector<17x128xf32>
    %43 = arith.mulf %42, %42 : vector<17x128xf32>
    %cst_15 = arith.constant dense<0.000000e+00> : vector<17xf32>
    %44 = vector.multi_reduction <add>, %43, %cst_15 [1] : vector<17x128xf32> to vector<17xf32>
    %45 = vector.shape_cast %44 : vector<17xf32> to vector<17x1xf32>
    %cst_16 = arith.constant 1.280000e+02 : f32
    %46 = vector.broadcast %cst_16 : f32 to vector<17x1xf32>
    %47 = arith.divf %45, %46 : vector<17x1xf32>
    %48 = vector.broadcast %40 : vector<17x1xf32> to vector<17x128xf32>
    %49 = arith.subf %5, %48 : vector<17x128xf32>
    %cst_17 = arith.constant 9.99999974E-6 : f32
    %50 = vector.broadcast %cst_17 : f32 to vector<17x1xf32>
    %51 = arith.addf %47, %50 : vector<17x1xf32>
    %52 = math.rsqrt %51 : vector<17x1xf32>
    %53 = vector.broadcast %52 : vector<17x1xf32> to vector<17x128xf32>
    %54 = arith.mulf %49, %53 : vector<17x128xf32>
    %55 = vector.broadcast %35 : vector<1x128xf32> to vector<17x128xf32>
    %56 = arith.mulf %54, %55 : vector<17x128xf32>
    %57 = vector.broadcast %36 : vector<1x128xf32> to vector<17x128xf32>
    %58 = arith.addf %56, %57 : vector<17x128xf32>
    %c0_18 = arith.constant 0 : index
    %c0_19 = arith.constant 0 : index
    %59 = vector.load %arg6[%c0_18, %c0_19] : memref<128x384xf32, #tpu.memory_space<vmem>>, vector<128x384xf32>
    %cst_20 = arith.constant dense<0.000000e+00> : vector<17x384xf32>
    %60 = tpu.matmul %58, %59, %cst_20 {dimension_numbers = #tpu.dot_dimension_numbers<[1], [0], [0], [1], [0, 0, 1, 1], [], []>} : vector<17x128xf32>, vector<128x384xf32>, vector<17x384xf32> -> vector<17x384xf32>
    %c0_21 = arith.constant 0 : index
    %c0_22 = arith.constant 0 : index
    %61 = vector.load %arg7[%c0_21, %c0_22] : memref<1x384xf32, #tpu.memory_space<vmem>>, vector<1x384xf32>
    %62 = vector.broadcast %61 : vector<1x384xf32> to vector<17x384xf32>
    %63 = arith.addf %60, %62 : vector<17x384xf32>
    %64 = vector.extract_strided_slice %63 {offsets = [0, 0], sizes = [17, 128], strides = [1, 1]} : vector<17x384xf32> to vector<17x128xf32>
    %65 = vector.extract_strided_slice %63 {offsets = [0, 128], sizes = [17, 128], strides = [1, 1]} : vector<17x384xf32> to vector<17x128xf32>
    %66 = vector.extract_strided_slice %63 {offsets = [0, 256], sizes = [17, 128], strides = [1, 1]} : vector<17x384xf32> to vector<17x128xf32>
    %cst_23 = arith.constant 0.000000e+00 : f32
    %67 = vector.broadcast %cst_23 : f32 to vector<17x128xf32>
    %cst_24 = arith.constant 0.176776692 : f32
    %68 = vector.broadcast %cst_24 : f32 to vector<1x128xf32>
    %69 = arith.mulf %13, %68 : vector<1x128xf32>
    %70 = vector.broadcast %69 : vector<1x128xf32> to vector<17x128xf32>
    %71 = arith.mulf %64, %70 : vector<17x128xf32>
    %cst_25 = arith.constant dense<0.000000e+00> : vector<17x17xf32>
    %72 = tpu.matmul %71, %65, %cst_25 {dimension_numbers = #tpu.dot_dimension_numbers<[1], [1], [0], [0], [0, 0, 1, 0], [], []>} : vector<17x128xf32>, vector<17x128xf32>, vector<17x17xf32> -> vector<17x17xf32>
    %cst_26 = arith.constant dense<0xFF800000> : vector<17xf32>
    %73 = vector.multi_reduction <maximumf>, %72, %cst_26 [1] : vector<17x17xf32> to vector<17xf32>
    %74 = vector.shape_cast %73 : vector<17xf32> to vector<17x1xf32>
    %75 = vector.broadcast %74 : vector<17x1xf32> to vector<17x17xf32>
    %76 = arith.subf %72, %75 : vector<17x17xf32>
    %77 = math.exp %76 : vector<17x17xf32>
    %cst_27 = arith.constant dense<0.000000e+00> : vector<17xf32>
    %78 = vector.multi_reduction <add>, %77, %cst_27 [1] : vector<17x17xf32> to vector<17xf32>
    %79 = vector.shape_cast %78 : vector<17xf32> to vector<17x1xf32>
    %80 = vector.broadcast %79 : vector<17x1xf32> to vector<17x17xf32>
    %81 = arith.divf %77, %80 : vector<17x17xf32>
    %82 = vector.broadcast %13 : vector<1x128xf32> to vector<17x128xf32>
    %83 = arith.mulf %66, %82 : vector<17x128xf32>
    %cst_28 = arith.constant dense<0.000000e+00> : vector<17x128xf32>
    %84 = tpu.matmul %81, %83, %cst_28 {dimension_numbers = #tpu.dot_dimension_numbers<[1], [0], [0], [1], [0, 0, 1, 1], [], []>} : vector<17x17xf32>, vector<17x128xf32>, vector<17x128xf32> -> vector<17x128xf32>
    %85 = arith.addf %67, %84 : vector<17x128xf32>
    %cst_29 = arith.constant 0.176776692 : f32
    %86 = vector.broadcast %cst_29 : f32 to vector<1x128xf32>
    %87 = arith.mulf %20, %86 : vector<1x128xf32>
    %88 = vector.broadcast %87 : vector<1x128xf32> to vector<17x128xf32>
    %89 = arith.mulf %64, %88 : vector<17x128xf32>
    %cst_30 = arith.constant dense<0.000000e+00> : vector<17x17xf32>
    %90 = tpu.matmul %89, %65, %cst_30 {dimension_numbers = #tpu.dot_dimension_numbers<[1], [1], [0], [0], [0, 0, 1, 0], [], []>} : vector<17x128xf32>, vector<17x128xf32>, vector<17x17xf32> -> vector<17x17xf32>
    %cst_31 = arith.constant dense<0xFF800000> : vector<17xf32>
    %91 = vector.multi_reduction <maximumf>, %90, %cst_31 [1] : vector<17x17xf32> to vector<17xf32>
    %92 = vector.shape_cast %91 : vector<17xf32> to vector<17x1xf32>
    %93 = vector.broadcast %92 : vector<17x1xf32> to vector<17x17xf32>
    %94 = arith.subf %90, %93 : vector<17x17xf32>
    %95 = math.exp %94 : vector<17x17xf32>
    %cst_32 = arith.constant dense<0.000000e+00> : vector<17xf32>
    %96 = vector.multi_reduction <add>, %95, %cst_32 [1] : vector<17x17xf32> to vector<17xf32>
    %97 = vector.shape_cast %96 : vector<17xf32> to vector<17x1xf32>
    %98 = vector.broadcast %97 : vector<17x1xf32> to vector<17x17xf32>
    %99 = arith.divf %95, %98 : vector<17x17xf32>
    %100 = vector.broadcast %20 : vector<1x128xf32> to vector<17x128xf32>
    %101 = arith.mulf %66, %100 : vector<17x128xf32>
    %cst_33 = arith.constant dense<0.000000e+00> : vector<17x128xf32>
    %102 = tpu.matmul %99, %101, %cst_33 {dimension_numbers = #tpu.dot_dimension_numbers<[1], [0], [0], [1], [0, 0, 1, 1], [], []>} : vector<17x17xf32>, vector<17x128xf32>, vector<17x128xf32> -> vector<17x128xf32>
    %103 = arith.addf %85, %102 : vector<17x128xf32>
    %cst_34 = arith.constant 0.176776692 : f32
    %104 = vector.broadcast %cst_34 : f32 to vector<1x128xf32>
    %105 = arith.mulf %27, %104 : vector<1x128xf32>
    %106 = vector.broadcast %105 : vector<1x128xf32> to vector<17x128xf32>
    %107 = arith.mulf %64, %106 : vector<17x128xf32>
    %cst_35 = arith.constant dense<0.000000e+00> : vector<17x17xf32>
    %108 = tpu.matmul %107, %65, %cst_35 {dimension_numbers = #tpu.dot_dimension_numbers<[1], [1], [0], [0], [0, 0, 1, 0], [], []>} : vector<17x128xf32>, vector<17x128xf32>, vector<17x17xf32> -> vector<17x17xf32>
    %cst_36 = arith.constant dense<0xFF800000> : vector<17xf32>
    %109 = vector.multi_reduction <maximumf>, %108, %cst_36 [1] : vector<17x17xf32> to vector<17xf32>
    %110 = vector.shape_cast %109 : vector<17xf32> to vector<17x1xf32>
    %111 = vector.broadcast %110 : vector<17x1xf32> to vector<17x17xf32>
    %112 = arith.subf %108, %111 : vector<17x17xf32>
    %113 = math.exp %112 : vector<17x17xf32>
    %cst_37 = arith.constant dense<0.000000e+00> : vector<17xf32>
    %114 = vector.multi_reduction <add>, %113, %cst_37 [1] : vector<17x17xf32> to vector<17xf32>
    %115 = vector.shape_cast %114 : vector<17xf32> to vector<17x1xf32>
    %116 = vector.broadcast %115 : vector<17x1xf32> to vector<17x17xf32>
    %117 = arith.divf %113, %116 : vector<17x17xf32>
    %118 = vector.broadcast %27 : vector<1x128xf32> to vector<17x128xf32>
    %119 = arith.mulf %66, %118 : vector<17x128xf32>
    %cst_38 = arith.constant dense<0.000000e+00> : vector<17x128xf32>
    %120 = tpu.matmul %117, %119, %cst_38 {dimension_numbers = #tpu.dot_dimension_numbers<[1], [0], [0], [1], [0, 0, 1, 1], [], []>} : vector<17x17xf32>, vector<17x128xf32>, vector<17x128xf32> -> vector<17x128xf32>
    %121 = arith.addf %103, %120 : vector<17x128xf32>
    %cst_39 = arith.constant 0.176776692 : f32
    %122 = vector.broadcast %cst_39 : f32 to vector<1x128xf32>
    %123 = arith.mulf %34, %122 : vector<1x128xf32>
    %124 = vector.broadcast %123 : vector<1x128xf32> to vector<17x128xf32>
    %125 = arith.mulf %64, %124 : vector<17x128xf32>
    %cst_40 = arith.constant dense<0.000000e+00> : vector<17x17xf32>
    %126 = tpu.matmul %125, %65, %cst_40 {dimension_numbers = #tpu.dot_dimension_numbers<[1], [1], [0], [0], [0, 0, 1, 0], [], []>} : vector<17x128xf32>, vector<17x128xf32>, vector<17x17xf32> -> vector<17x17xf32>
    %cst_41 = arith.constant dense<0xFF800000> : vector<17xf32>
    %127 = vector.multi_reduction <maximumf>, %126, %cst_41 [1] : vector<17x17xf32> to vector<17xf32>
    %128 = vector.shape_cast %127 : vector<17xf32> to vector<17x1xf32>
    %129 = vector.broadcast %128 : vector<17x1xf32> to vector<17x17xf32>
    %130 = arith.subf %126, %129 : vector<17x17xf32>
    %131 = math.exp %130 : vector<17x17xf32>
    %cst_42 = arith.constant dense<0.000000e+00> : vector<17xf32>
    %132 = vector.multi_reduction <add>, %131, %cst_42 [1] : vector<17x17xf32> to vector<17xf32>
    %133 = vector.shape_cast %132 : vector<17xf32> to vector<17x1xf32>
    %134 = vector.broadcast %133 : vector<17x1xf32> to vector<17x17xf32>
    %135 = arith.divf %131, %134 : vector<17x17xf32>
    %136 = vector.broadcast %34 : vector<1x128xf32> to vector<17x128xf32>
    %137 = arith.mulf %66, %136 : vector<17x128xf32>
    %cst_43 = arith.constant dense<0.000000e+00> : vector<17x128xf32>
    %138 = tpu.matmul %135, %137, %cst_43 {dimension_numbers = #tpu.dot_dimension_numbers<[1], [0], [0], [1], [0, 0, 1, 1], [], []>} : vector<17x17xf32>, vector<17x128xf32>, vector<17x128xf32> -> vector<17x128xf32>
    %139 = arith.addf %121, %138 : vector<17x128xf32>
    %c0_44 = arith.constant 0 : index
    %c0_45 = arith.constant 0 : index
    %140 = vector.load %arg8[%c0_44, %c0_45] : memref<128x128xf32, #tpu.memory_space<vmem>>, vector<128x128xf32>
    %cst_46 = arith.constant dense<0.000000e+00> : vector<17x128xf32>
    %141 = tpu.matmul %139, %140, %cst_46 {dimension_numbers = #tpu.dot_dimension_numbers<[1], [0], [0], [1], [0, 0, 1, 1], [], []>} : vector<17x128xf32>, vector<128x128xf32>, vector<17x128xf32> -> vector<17x128xf32>
    %142 = arith.addf %5, %141 : vector<17x128xf32>
    %c0_47 = arith.constant 0 : index
    %c0_48 = arith.constant 0 : index
    %143 = vector.load %arg9[%c0_47, %c0_48] : memref<1x128xf32, #tpu.memory_space<vmem>>, vector<1x128xf32>
    %144 = vector.broadcast %143 : vector<1x128xf32> to vector<17x128xf32>
    %145 = arith.addf %142, %144 : vector<17x128xf32>
    %c0_49 = arith.constant 0 : index
    %c0_50 = arith.constant 0 : index
    %146 = vector.load %arg10[%c0_49, %c0_50] : memref<1x128xf32, #tpu.memory_space<vmem>>, vector<1x128xf32>
    %c0_51 = arith.constant 0 : index
    %c0_52 = arith.constant 0 : index
    %147 = vector.load %arg11[%c0_51, %c0_52] : memref<1x128xf32, #tpu.memory_space<vmem>>, vector<1x128xf32>
    %cst_53 = arith.constant dense<0.000000e+00> : vector<17xf32>
    %148 = vector.multi_reduction <add>, %145, %cst_53 [1] : vector<17x128xf32> to vector<17xf32>
    %149 = vector.shape_cast %148 : vector<17xf32> to vector<17x1xf32>
    %cst_54 = arith.constant 1.280000e+02 : f32
    %150 = vector.broadcast %cst_54 : f32 to vector<17x1xf32>
    %151 = arith.divf %149, %150 : vector<17x1xf32>
    %152 = vector.broadcast %151 : vector<17x1xf32> to vector<17x128xf32>
    %153 = arith.subf %145, %152 : vector<17x128xf32>
    %154 = arith.mulf %153, %153 : vector<17x128xf32>
    %cst_55 = arith.constant dense<0.000000e+00> : vector<17xf32>
    %155 = vector.multi_reduction <add>, %154, %cst_55 [1] : vector<17x128xf32> to vector<17xf32>
    %156 = vector.shape_cast %155 : vector<17xf32> to vector<17x1xf32>
    %cst_56 = arith.constant 1.280000e+02 : f32
    %157 = vector.broadcast %cst_56 : f32 to vector<17x1xf32>
    %158 = arith.divf %156, %157 : vector<17x1xf32>
    %159 = vector.broadcast %151 : vector<17x1xf32> to vector<17x128xf32>
    %160 = arith.subf %145, %159 : vector<17x128xf32>
    %cst_57 = arith.constant 9.99999974E-6 : f32
    %161 = vector.broadcast %cst_57 : f32 to vector<17x1xf32>
    %162 = arith.addf %158, %161 : vector<17x1xf32>
    %163 = math.rsqrt %162 : vector<17x1xf32>
    %164 = vector.broadcast %163 : vector<17x1xf32> to vector<17x128xf32>
    %165 = arith.mulf %160, %164 : vector<17x128xf32>
    %166 = vector.broadcast %146 : vector<1x128xf32> to vector<17x128xf32>
    %167 = arith.mulf %165, %166 : vector<17x128xf32>
    %168 = vector.broadcast %147 : vector<1x128xf32> to vector<17x128xf32>
    %169 = arith.addf %167, %168 : vector<17x128xf32>
    %c0_58 = arith.constant 0 : index
    %c0_59 = arith.constant 0 : index
    %170 = vector.load %arg12[%c0_58, %c0_59] : memref<128x256xf32, #tpu.memory_space<vmem>>, vector<128x256xf32>
    %cst_60 = arith.constant dense<0.000000e+00> : vector<17x256xf32>
    %171 = tpu.matmul %169, %170, %cst_60 {dimension_numbers = #tpu.dot_dimension_numbers<[1], [0], [0], [1], [0, 0, 1, 1], [], []>} : vector<17x128xf32>, vector<128x256xf32>, vector<17x256xf32> -> vector<17x256xf32>
    %c0_61 = arith.constant 0 : index
    %c0_62 = arith.constant 0 : index
    %172 = vector.load %arg13[%c0_61, %c0_62] : memref<1x256xf32, #tpu.memory_space<vmem>>, vector<1x256xf32>
    %173 = vector.broadcast %172 : vector<1x256xf32> to vector<17x256xf32>
    %174 = arith.addf %171, %173 : vector<17x256xf32>
    %cst_63 = arith.constant 5.000000e-01 : f32
    %175 = vector.broadcast %cst_63 : f32 to vector<17x256xf32>
    %176 = arith.mulf %175, %174 : vector<17x256xf32>
    %cst_64 = arith.constant 4.471500e-02 : f32
    %177 = vector.broadcast %cst_64 : f32 to vector<17x256xf32>
    %178 = arith.mulf %177, %174 : vector<17x256xf32>
    %179 = arith.mulf %178, %174 : vector<17x256xf32>
    %180 = arith.mulf %179, %174 : vector<17x256xf32>
    %181 = arith.addf %174, %180 : vector<17x256xf32>
    %cst_65 = arith.constant 0.797884583 : f32
    %182 = vector.broadcast %cst_65 : f32 to vector<17x256xf32>
    %183 = arith.mulf %182, %181 : vector<17x256xf32>
    %184 = math.tanh %183 : vector<17x256xf32>
    %cst_66 = arith.constant 1.000000e+00 : f32
    %185 = vector.broadcast %cst_66 : f32 to vector<17x256xf32>
    %186 = arith.addf %185, %184 : vector<17x256xf32>
    %187 = arith.mulf %176, %186 : vector<17x256xf32>
    %c0_67 = arith.constant 0 : index
    %c0_68 = arith.constant 0 : index
    %188 = vector.load %arg14[%c0_67, %c0_68] : memref<256x128xf32, #tpu.memory_space<vmem>>, vector<256x128xf32>
    %cst_69 = arith.constant dense<0.000000e+00> : vector<17x128xf32>
    %189 = tpu.matmul %187, %188, %cst_69 {dimension_numbers = #tpu.dot_dimension_numbers<[1], [0], [0], [1], [0, 0, 1, 1], [], []>} : vector<17x256xf32>, vector<256x128xf32>, vector<17x128xf32> -> vector<17x128xf32>
    %190 = arith.addf %145, %189 : vector<17x128xf32>
    %c0_70 = arith.constant 0 : index
    %c0_71 = arith.constant 0 : index
    %191 = vector.load %arg15[%c0_70, %c0_71] : memref<1x128xf32, #tpu.memory_space<vmem>>, vector<1x128xf32>
    %192 = vector.broadcast %191 : vector<1x128xf32> to vector<17x128xf32>
    %193 = arith.addf %190, %192 : vector<17x128xf32>
    %c0_72 = arith.constant 0 : index
    %c0_73 = arith.constant 0 : index
    %194 = vector.load %arg16[%c0_72, %c0_73] : memref<1x128xf32, #tpu.memory_space<vmem>>, vector<1x128xf32>
    %c0_74 = arith.constant 0 : index
    %c0_75 = arith.constant 0 : index
    %195 = vector.load %arg17[%c0_74, %c0_75] : memref<1x128xf32, #tpu.memory_space<vmem>>, vector<1x128xf32>
    %cst_76 = arith.constant dense<0.000000e+00> : vector<17xf32>
    %196 = vector.multi_reduction <add>, %193, %cst_76 [1] : vector<17x128xf32> to vector<17xf32>
    %197 = vector.shape_cast %196 : vector<17xf32> to vector<17x1xf32>
    %cst_77 = arith.constant 1.280000e+02 : f32
    %198 = vector.broadcast %cst_77 : f32 to vector<17x1xf32>
    %199 = arith.divf %197, %198 : vector<17x1xf32>
    %200 = vector.broadcast %199 : vector<17x1xf32> to vector<17x128xf32>
    %201 = arith.subf %193, %200 : vector<17x128xf32>
    %202 = arith.mulf %201, %201 : vector<17x128xf32>
    %cst_78 = arith.constant dense<0.000000e+00> : vector<17xf32>
    %203 = vector.multi_reduction <add>, %202, %cst_78 [1] : vector<17x128xf32> to vector<17xf32>
    %204 = vector.shape_cast %203 : vector<17xf32> to vector<17x1xf32>
    %cst_79 = arith.constant 1.280000e+02 : f32
    %205 = vector.broadcast %cst_79 : f32 to vector<17x1xf32>
    %206 = arith.divf %204, %205 : vector<17x1xf32>
    %207 = vector.broadcast %199 : vector<17x1xf32> to vector<17x128xf32>
    %208 = arith.subf %193, %207 : vector<17x128xf32>
    %cst_80 = arith.constant 9.99999974E-6 : f32
    %209 = vector.broadcast %cst_80 : f32 to vector<17x1xf32>
    %210 = arith.addf %206, %209 : vector<17x1xf32>
    %211 = math.rsqrt %210 : vector<17x1xf32>
    %212 = vector.broadcast %211 : vector<17x1xf32> to vector<17x128xf32>
    %213 = arith.mulf %208, %212 : vector<17x128xf32>
    %214 = vector.broadcast %194 : vector<1x128xf32> to vector<17x128xf32>
    %215 = arith.mulf %213, %214 : vector<17x128xf32>
    %216 = vector.broadcast %195 : vector<1x128xf32> to vector<17x128xf32>
    %217 = arith.addf %215, %216 : vector<17x128xf32>
    %c0_81 = arith.constant 0 : index
    %c0_82 = arith.constant 0 : index
    %218 = vector.load %arg18[%c0_81, %c0_82] : memref<128x384xf32, #tpu.memory_space<vmem>>, vector<128x384xf32>
    %cst_83 = arith.constant dense<0.000000e+00> : vector<17x384xf32>
    %219 = tpu.matmul %217, %218, %cst_83 {dimension_numbers = #tpu.dot_dimension_numbers<[1], [0], [0], [1], [0, 0, 1, 1], [], []>} : vector<17x128xf32>, vector<128x384xf32>, vector<17x384xf32> -> vector<17x384xf32>
    %c0_84 = arith.constant 0 : index
    %c0_85 = arith.constant 0 : index
    %220 = vector.load %arg19[%c0_84, %c0_85] : memref<1x384xf32, #tpu.memory_space<vmem>>, vector<1x384xf32>
    %221 = vector.broadcast %220 : vector<1x384xf32> to vector<17x384xf32>
    %222 = arith.addf %219, %221 : vector<17x384xf32>
    %223 = vector.extract_strided_slice %222 {offsets = [0, 0], sizes = [17, 128], strides = [1, 1]} : vector<17x384xf32> to vector<17x128xf32>
    %224 = vector.extract_strided_slice %222 {offsets = [0, 128], sizes = [17, 128], strides = [1, 1]} : vector<17x384xf32> to vector<17x128xf32>
    %225 = vector.extract_strided_slice %222 {offsets = [0, 256], sizes = [17, 128], strides = [1, 1]} : vector<17x384xf32> to vector<17x128xf32>
    %cst_86 = arith.constant 0.000000e+00 : f32
    %226 = vector.broadcast %cst_86 : f32 to vector<17x128xf32>
    %cst_87 = arith.constant 0.176776692 : f32
    %227 = vector.broadcast %cst_87 : f32 to vector<1x128xf32>
    %228 = arith.mulf %13, %227 : vector<1x128xf32>
    %229 = vector.broadcast %228 : vector<1x128xf32> to vector<17x128xf32>
    %230 = arith.mulf %223, %229 : vector<17x128xf32>
    %cst_88 = arith.constant dense<0.000000e+00> : vector<17x17xf32>
    %231 = tpu.matmul %230, %224, %cst_88 {dimension_numbers = #tpu.dot_dimension_numbers<[1], [1], [0], [0], [0, 0, 1, 0], [], []>} : vector<17x128xf32>, vector<17x128xf32>, vector<17x17xf32> -> vector<17x17xf32>
    %cst_89 = arith.constant dense<0xFF800000> : vector<17xf32>
    %232 = vector.multi_reduction <maximumf>, %231, %cst_89 [1] : vector<17x17xf32> to vector<17xf32>
    %233 = vector.shape_cast %232 : vector<17xf32> to vector<17x1xf32>
    %234 = vector.broadcast %233 : vector<17x1xf32> to vector<17x17xf32>
    %235 = arith.subf %231, %234 : vector<17x17xf32>
    %236 = math.exp %235 : vector<17x17xf32>
    %cst_90 = arith.constant dense<0.000000e+00> : vector<17xf32>
    %237 = vector.multi_reduction <add>, %236, %cst_90 [1] : vector<17x17xf32> to vector<17xf32>
    %238 = vector.shape_cast %237 : vector<17xf32> to vector<17x1xf32>
    %239 = vector.broadcast %238 : vector<17x1xf32> to vector<17x17xf32>
    %240 = arith.divf %236, %239 : vector<17x17xf32>
    %241 = vector.broadcast %13 : vector<1x128xf32> to vector<17x128xf32>
    %242 = arith.mulf %225, %241 : vector<17x128xf32>
    %cst_91 = arith.constant dense<0.000000e+00> : vector<17x128xf32>
    %243 = tpu.matmul %240, %242, %cst_91 {dimension_numbers = #tpu.dot_dimension_numbers<[1], [0], [0], [1], [0, 0, 1, 1], [], []>} : vector<17x17xf32>, vector<17x128xf32>, vector<17x128xf32> -> vector<17x128xf32>
    %244 = arith.addf %226, %243 : vector<17x128xf32>
    %cst_92 = arith.constant 0.176776692 : f32
    %245 = vector.broadcast %cst_92 : f32 to vector<1x128xf32>
    %246 = arith.mulf %20, %245 : vector<1x128xf32>
    %247 = vector.broadcast %246 : vector<1x128xf32> to vector<17x128xf32>
    %248 = arith.mulf %223, %247 : vector<17x128xf32>
    %cst_93 = arith.constant dense<0.000000e+00> : vector<17x17xf32>
    %249 = tpu.matmul %248, %224, %cst_93 {dimension_numbers = #tpu.dot_dimension_numbers<[1], [1], [0], [0], [0, 0, 1, 0], [], []>} : vector<17x128xf32>, vector<17x128xf32>, vector<17x17xf32> -> vector<17x17xf32>
    %cst_94 = arith.constant dense<0xFF800000> : vector<17xf32>
    %250 = vector.multi_reduction <maximumf>, %249, %cst_94 [1] : vector<17x17xf32> to vector<17xf32>
    %251 = vector.shape_cast %250 : vector<17xf32> to vector<17x1xf32>
    %252 = vector.broadcast %251 : vector<17x1xf32> to vector<17x17xf32>
    %253 = arith.subf %249, %252 : vector<17x17xf32>
    %254 = math.exp %253 : vector<17x17xf32>
    %cst_95 = arith.constant dense<0.000000e+00> : vector<17xf32>
    %255 = vector.multi_reduction <add>, %254, %cst_95 [1] : vector<17x17xf32> to vector<17xf32>
    %256 = vector.shape_cast %255 : vector<17xf32> to vector<17x1xf32>
    %257 = vector.broadcast %256 : vector<17x1xf32> to vector<17x17xf32>
    %258 = arith.divf %254, %257 : vector<17x17xf32>
    %259 = vector.broadcast %20 : vector<1x128xf32> to vector<17x128xf32>
    %260 = arith.mulf %225, %259 : vector<17x128xf32>
    %cst_96 = arith.constant dense<0.000000e+00> : vector<17x128xf32>
    %261 = tpu.matmul %258, %260, %cst_96 {dimension_numbers = #tpu.dot_dimension_numbers<[1], [0], [0], [1], [0, 0, 1, 1], [], []>} : vector<17x17xf32>, vector<17x128xf32>, vector<17x128xf32> -> vector<17x128xf32>
    %262 = arith.addf %244, %261 : vector<17x128xf32>
    %cst_97 = arith.constant 0.176776692 : f32
    %263 = vector.broadcast %cst_97 : f32 to vector<1x128xf32>
    %264 = arith.mulf %27, %263 : vector<1x128xf32>
    %265 = vector.broadcast %264 : vector<1x128xf32> to vector<17x128xf32>
    %266 = arith.mulf %223, %265 : vector<17x128xf32>
    %cst_98 = arith.constant dense<0.000000e+00> : vector<17x17xf32>
    %267 = tpu.matmul %266, %224, %cst_98 {dimension_numbers = #tpu.dot_dimension_numbers<[1], [1], [0], [0], [0, 0, 1, 0], [], []>} : vector<17x128xf32>, vector<17x128xf32>, vector<17x17xf32> -> vector<17x17xf32>
    %cst_99 = arith.constant dense<0xFF800000> : vector<17xf32>
    %268 = vector.multi_reduction <maximumf>, %267, %cst_99 [1] : vector<17x17xf32> to vector<17xf32>
    %269 = vector.shape_cast %268 : vector<17xf32> to vector<17x1xf32>
    %270 = vector.broadcast %269 : vector<17x1xf32> to vector<17x17xf32>
    %271 = arith.subf %267, %270 : vector<17x17xf32>
    %272 = math.exp %271 : vector<17x17xf32>
    %cst_100 = arith.constant dense<0.000000e+00> : vector<17xf32>
    %273 = vector.multi_reduction <add>, %272, %cst_100 [1] : vector<17x17xf32> to vector<17xf32>
    %274 = vector.shape_cast %273 : vector<17xf32> to vector<17x1xf32>
    %275 = vector.broadcast %274 : vector<17x1xf32> to vector<17x17xf32>
    %276 = arith.divf %272, %275 : vector<17x17xf32>
    %277 = vector.broadcast %27 : vector<1x128xf32> to vector<17x128xf32>
    %278 = arith.mulf %225, %277 : vector<17x128xf32>
    %cst_101 = arith.constant dense<0.000000e+00> : vector<17x128xf32>
    %279 = tpu.matmul %276, %278, %cst_101 {dimension_numbers = #tpu.dot_dimension_numbers<[1], [0], [0], [1], [0, 0, 1, 1], [], []>} : vector<17x17xf32>, vector<17x128xf32>, vector<17x128xf32> -> vector<17x128xf32>
    %280 = arith.addf %262, %279 : vector<17x128xf32>
    %cst_102 = arith.constant 0.176776692 : f32
    %281 = vector.broadcast %cst_102 : f32 to vector<1x128xf32>
    %282 = arith.mulf %34, %281 : vector<1x128xf32>
    %283 = vector.broadcast %282 : vector<1x128xf32> to vector<17x128xf32>
    %284 = arith.mulf %223, %283 : vector<17x128xf32>
    %cst_103 = arith.constant dense<0.000000e+00> : vector<17x17xf32>
    %285 = tpu.matmul %284, %224, %cst_103 {dimension_numbers = #tpu.dot_dimension_numbers<[1], [1], [0], [0], [0, 0, 1, 0], [], []>} : vector<17x128xf32>, vector<17x128xf32>, vector<17x17xf32> -> vector<17x17xf32>
    %cst_104 = arith.constant dense<0xFF800000> : vector<17xf32>
    %286 = vector.multi_reduction <maximumf>, %285, %cst_104 [1] : vector<17x17xf32> to vector<17xf32>
    %287 = vector.shape_cast %286 : vector<17xf32> to vector<17x1xf32>
    %288 = vector.broadcast %287 : vector<17x1xf32> to vector<17x17xf32>
    %289 = arith.subf %285, %288 : vector<17x17xf32>
    %290 = math.exp %289 : vector<17x17xf32>
    %cst_105 = arith.constant dense<0.000000e+00> : vector<17xf32>
    %291 = vector.multi_reduction <add>, %290, %cst_105 [1] : vector<17x17xf32> to vector<17xf32>
    %292 = vector.shape_cast %291 : vector<17xf32> to vector<17x1xf32>
    %293 = vector.broadcast %292 : vector<17x1xf32> to vector<17x17xf32>
    %294 = arith.divf %290, %293 : vector<17x17xf32>
    %295 = vector.broadcast %34 : vector<1x128xf32> to vector<17x128xf32>
    %296 = arith.mulf %225, %295 : vector<17x128xf32>
    %cst_106 = arith.constant dense<0.000000e+00> : vector<17x128xf32>
    %297 = tpu.matmul %294, %296, %cst_106 {dimension_numbers = #tpu.dot_dimension_numbers<[1], [0], [0], [1], [0, 0, 1, 1], [], []>} : vector<17x17xf32>, vector<17x128xf32>, vector<17x128xf32> -> vector<17x128xf32>
    %298 = arith.addf %280, %297 : vector<17x128xf32>
    %c0_107 = arith.constant 0 : index
    %c0_108 = arith.constant 0 : index
    %299 = vector.load %arg20[%c0_107, %c0_108] : memref<128x128xf32, #tpu.memory_space<vmem>>, vector<128x128xf32>
    %cst_109 = arith.constant dense<0.000000e+00> : vector<17x128xf32>
    %300 = tpu.matmul %298, %299, %cst_109 {dimension_numbers = #tpu.dot_dimension_numbers<[1], [0], [0], [1], [0, 0, 1, 1], [], []>} : vector<17x128xf32>, vector<128x128xf32>, vector<17x128xf32> -> vector<17x128xf32>
    %301 = arith.addf %193, %300 : vector<17x128xf32>
    %c0_110 = arith.constant 0 : index
    %c0_111 = arith.constant 0 : index
    %302 = vector.load %arg21[%c0_110, %c0_111] : memref<1x128xf32, #tpu.memory_space<vmem>>, vector<1x128xf32>
    %303 = vector.broadcast %302 : vector<1x128xf32> to vector<17x128xf32>
    %304 = arith.addf %301, %303 : vector<17x128xf32>
    %c0_112 = arith.constant 0 : index
    %c0_113 = arith.constant 0 : index
    %305 = vector.load %arg22[%c0_112, %c0_113] : memref<1x128xf32, #tpu.memory_space<vmem>>, vector<1x128xf32>
    %c0_114 = arith.constant 0 : index
    %c0_115 = arith.constant 0 : index
    %306 = vector.load %arg23[%c0_114, %c0_115] : memref<1x128xf32, #tpu.memory_space<vmem>>, vector<1x128xf32>
    %cst_116 = arith.constant dense<0.000000e+00> : vector<17xf32>
    %307 = vector.multi_reduction <add>, %304, %cst_116 [1] : vector<17x128xf32> to vector<17xf32>
    %308 = vector.shape_cast %307 : vector<17xf32> to vector<17x1xf32>
    %cst_117 = arith.constant 1.280000e+02 : f32
    %309 = vector.broadcast %cst_117 : f32 to vector<17x1xf32>
    %310 = arith.divf %308, %309 : vector<17x1xf32>
    %311 = vector.broadcast %310 : vector<17x1xf32> to vector<17x128xf32>
    %312 = arith.subf %304, %311 : vector<17x128xf32>
    %313 = arith.mulf %312, %312 : vector<17x128xf32>
    %cst_118 = arith.constant dense<0.000000e+00> : vector<17xf32>
    %314 = vector.multi_reduction <add>, %313, %cst_118 [1] : vector<17x128xf32> to vector<17xf32>
    %315 = vector.shape_cast %314 : vector<17xf32> to vector<17x1xf32>
    %cst_119 = arith.constant 1.280000e+02 : f32
    %316 = vector.broadcast %cst_119 : f32 to vector<17x1xf32>
    %317 = arith.divf %315, %316 : vector<17x1xf32>
    %318 = vector.broadcast %310 : vector<17x1xf32> to vector<17x128xf32>
    %319 = arith.subf %304, %318 : vector<17x128xf32>
    %cst_120 = arith.constant 9.99999974E-6 : f32
    %320 = vector.broadcast %cst_120 : f32 to vector<17x1xf32>
    %321 = arith.addf %317, %320 : vector<17x1xf32>
    %322 = math.rsqrt %321 : vector<17x1xf32>
    %323 = vector.broadcast %322 : vector<17x1xf32> to vector<17x128xf32>
    %324 = arith.mulf %319, %323 : vector<17x128xf32>
    %325 = vector.broadcast %305 : vector<1x128xf32> to vector<17x128xf32>
    %326 = arith.mulf %324, %325 : vector<17x128xf32>
    %327 = vector.broadcast %306 : vector<1x128xf32> to vector<17x128xf32>
    %328 = arith.addf %326, %327 : vector<17x128xf32>
    %c0_121 = arith.constant 0 : index
    %c0_122 = arith.constant 0 : index
    %329 = vector.load %arg24[%c0_121, %c0_122] : memref<128x256xf32, #tpu.memory_space<vmem>>, vector<128x256xf32>
    %cst_123 = arith.constant dense<0.000000e+00> : vector<17x256xf32>
    %330 = tpu.matmul %328, %329, %cst_123 {dimension_numbers = #tpu.dot_dimension_numbers<[1], [0], [0], [1], [0, 0, 1, 1], [], []>} : vector<17x128xf32>, vector<128x256xf32>, vector<17x256xf32> -> vector<17x256xf32>
    %c0_124 = arith.constant 0 : index
    %c0_125 = arith.constant 0 : index
    %331 = vector.load %arg25[%c0_124, %c0_125] : memref<1x256xf32, #tpu.memory_space<vmem>>, vector<1x256xf32>
    %332 = vector.broadcast %331 : vector<1x256xf32> to vector<17x256xf32>
    %333 = arith.addf %330, %332 : vector<17x256xf32>
    %cst_126 = arith.constant 5.000000e-01 : f32
    %334 = vector.broadcast %cst_126 : f32 to vector<17x256xf32>
    %335 = arith.mulf %334, %333 : vector<17x256xf32>
    %cst_127 = arith.constant 4.471500e-02 : f32
    %336 = vector.broadcast %cst_127 : f32 to vector<17x256xf32>
    %337 = arith.mulf %336, %333 : vector<17x256xf32>
    %338 = arith.mulf %337, %333 : vector<17x256xf32>
    %339 = arith.mulf %338, %333 : vector<17x256xf32>
    %340 = arith.addf %333, %339 : vector<17x256xf32>
    %cst_128 = arith.constant 0.797884583 : f32
    %341 = vector.broadcast %cst_128 : f32 to vector<17x256xf32>
    %342 = arith.mulf %341, %340 : vector<17x256xf32>
    %343 = math.tanh %342 : vector<17x256xf32>
    %cst_129 = arith.constant 1.000000e+00 : f32
    %344 = vector.broadcast %cst_129 : f32 to vector<17x256xf32>
    %345 = arith.addf %344, %343 : vector<17x256xf32>
    %346 = arith.mulf %335, %345 : vector<17x256xf32>
    %c0_130 = arith.constant 0 : index
    %c0_131 = arith.constant 0 : index
    %347 = vector.load %arg26[%c0_130, %c0_131] : memref<256x128xf32, #tpu.memory_space<vmem>>, vector<256x128xf32>
    %cst_132 = arith.constant dense<0.000000e+00> : vector<17x128xf32>
    %348 = tpu.matmul %346, %347, %cst_132 {dimension_numbers = #tpu.dot_dimension_numbers<[1], [0], [0], [1], [0, 0, 1, 1], [], []>} : vector<17x256xf32>, vector<256x128xf32>, vector<17x128xf32> -> vector<17x128xf32>
    %349 = arith.addf %304, %348 : vector<17x128xf32>
    %c0_133 = arith.constant 0 : index
    %c0_134 = arith.constant 0 : index
    %350 = vector.load %arg27[%c0_133, %c0_134] : memref<1x128xf32, #tpu.memory_space<vmem>>, vector<1x128xf32>
    %351 = vector.broadcast %350 : vector<1x128xf32> to vector<17x128xf32>
    %352 = arith.addf %349, %351 : vector<17x128xf32>
    %353 = vector.extract_strided_slice %352 {offsets = [0, 0], sizes = [1, 128], strides = [1, 1]} : vector<17x128xf32> to vector<1x128xf32>
    %c0_135 = arith.constant 0 : index
    %c0_136 = arith.constant 0 : index
    %354 = vector.load %arg28[%c0_135, %c0_136] : memref<1x128xf32, #tpu.memory_space<vmem>>, vector<1x128xf32>
    %c0_137 = arith.constant 0 : index
    %c0_138 = arith.constant 0 : index
    %355 = vector.load %arg29[%c0_137, %c0_138] : memref<1x128xf32, #tpu.memory_space<vmem>>, vector<1x128xf32>
    %cst_139 = arith.constant dense<0.000000e+00> : vector<1xf32>
    %356 = vector.multi_reduction <add>, %353, %cst_139 [1] : vector<1x128xf32> to vector<1xf32>
    %357 = vector.shape_cast %356 : vector<1xf32> to vector<1x1xf32>
    %cst_140 = arith.constant 1.280000e+02 : f32
    %358 = vector.broadcast %cst_140 : f32 to vector<1x1xf32>
    %359 = arith.divf %357, %358 : vector<1x1xf32>
    %360 = vector.broadcast %359 : vector<1x1xf32> to vector<1x128xf32>
    %361 = arith.subf %353, %360 : vector<1x128xf32>
    %362 = arith.mulf %361, %361 : vector<1x128xf32>
    %cst_141 = arith.constant dense<0.000000e+00> : vector<1xf32>
    %363 = vector.multi_reduction <add>, %362, %cst_141 [1] : vector<1x128xf32> to vector<1xf32>
    %364 = vector.shape_cast %363 : vector<1xf32> to vector<1x1xf32>
    %cst_142 = arith.constant 1.280000e+02 : f32
    %365 = vector.broadcast %cst_142 : f32 to vector<1x1xf32>
    %366 = arith.divf %364, %365 : vector<1x1xf32>
    %367 = vector.broadcast %359 : vector<1x1xf32> to vector<1x128xf32>
    %368 = arith.subf %353, %367 : vector<1x128xf32>
    %cst_143 = arith.constant 9.99999974E-6 : f32
    %369 = vector.broadcast %cst_143 : f32 to vector<1x1xf32>
    %370 = arith.addf %366, %369 : vector<1x1xf32>
    %371 = math.rsqrt %370 : vector<1x1xf32>
    %372 = vector.broadcast %371 : vector<1x1xf32> to vector<1x128xf32>
    %373 = arith.mulf %368, %372 : vector<1x128xf32>
    %374 = arith.mulf %373, %354 : vector<1x128xf32>
    %375 = arith.addf %374, %355 : vector<1x128xf32>
    %c0_144 = arith.constant 0 : index
    %c0_145 = arith.constant 0 : index
    %376 = vector.load %arg30[%c0_144, %c0_145] : memref<128x128xf32, #tpu.memory_space<vmem>>, vector<128x128xf32>
    %cst_146 = arith.constant dense<0.000000e+00> : vector<1x128xf32>
    %377 = tpu.matmul %375, %376, %cst_146 {dimension_numbers = #tpu.dot_dimension_numbers<[1], [0], [0], [1], [0, 0, 1, 1], [], []>} : vector<1x128xf32>, vector<128x128xf32>, vector<1x128xf32> -> vector<1x128xf32>
    %c0_147 = arith.constant 0 : index
    %c0_148 = arith.constant 0 : index
    %378 = vector.load %arg31[%c0_147, %c0_148] : memref<1x128xf32, #tpu.memory_space<vmem>>, vector<1x128xf32>
    %379 = arith.addf %377, %378 : vector<1x128xf32>
    %c0_149 = arith.constant 0 : index
    %c0_150 = arith.constant 0 : index
    %c0_151 = arith.constant 0 : index
    %380 = vector.load %arg32[%c0_149, %c0_150, %c0_151] : memref<1x1x128xf32, #tpu.memory_space<vmem>>, vector<1x1x128xf32>
    %381 = vector.shape_cast %380 : vector<1x1x128xf32> to vector<1x128xf32>
    %382 = vector.shape_cast %379 : vector<1x128xf32> to vector<1x1x128xf32>
    tpu.vector_store %arg32[%c0_149, %c0_150, %c0_151], %382 {strides = array<i32>} : memref<1x1x128xf32, #tpu.memory_space<vmem>>, vector<1x1x128xf32>,
    return
  }
  func.func @transform_0(%arg0: i32) -> (i32, i32, i32) {
    %c0_i32 = arith.constant 0 : i32
    %c0_i32_0 = arith.constant 0 : i32
    %c0_i32_1 = arith.constant 0 : i32
    return %arg0, %c0_i32, %c0_i32_0 : i32, i32, i32
  }
  func.func @transform_1(%arg0: i32) -> (i32, i32) {
    %c0_i32 = arith.constant 0 : i32
    %c0_i32_0 = arith.constant 0 : i32
    %c0_i32_1 = arith.constant 0 : i32
    return %c0_i32, %c0_i32_0 : i32, i32
  }
  func.func @transform_2(%arg0: i32) -> (i32, i32) {
    %c0_i32 = arith.constant 0 : i32
    %c0_i32_0 = arith.constant 0 : i32
    %c0_i32_1 = arith.constant 0 : i32
    return %c0_i32, %c0_i32_0 : i32, i32
  }
  func.func @transform_3(%arg0: i32) -> (i32, i32) {
    %c0_i32 = arith.constant 0 : i32
    %c0_i32_0 = arith.constant 0 : i32
    %c0_i32_1 = arith.constant 0 : i32
    return %c0_i32, %c0_i32_0 : i32, i32
  }
  func.func @transform_4(%arg0: i32) -> (i32, i32) {
    %c0_i32 = arith.constant 0 : i32
    %c0_i32_0 = arith.constant 0 : i32
    %c0_i32_1 = arith.constant 0 : i32
    return %c0_i32, %c0_i32_0 : i32, i32
  }
  func.func @transform_5(%arg0: i32) -> (i32, i32) {
    %c0_i32 = arith.constant 0 : i32
    %c0_i32_0 = arith.constant 0 : i32
    %c0_i32_1 = arith.constant 0 : i32
    return %c0_i32, %c0_i32_0 : i32, i32
  }
  func.func @transform_6(%arg0: i32) -> (i32, i32) {
    %c0_i32 = arith.constant 0 : i32
    %c0_i32_0 = arith.constant 0 : i32
    %c0_i32_1 = arith.constant 0 : i32
    return %c0_i32, %c0_i32_0 : i32, i32
  }
  func.func @transform_7(%arg0: i32) -> (i32, i32) {
    %c0_i32 = arith.constant 0 : i32
    %c0_i32_0 = arith.constant 0 : i32
    %c0_i32_1 = arith.constant 0 : i32
    return %c0_i32, %c0_i32_0 : i32, i32
  }
  func.func @transform_8(%arg0: i32) -> (i32, i32) {
    %c0_i32 = arith.constant 0 : i32
    %c0_i32_0 = arith.constant 0 : i32
    %c0_i32_1 = arith.constant 0 : i32
    return %c0_i32, %c0_i32_0 : i32, i32
  }
  func.func @transform_9(%arg0: i32) -> (i32, i32) {
    %c0_i32 = arith.constant 0 : i32
    %c0_i32_0 = arith.constant 0 : i32
    %c0_i32_1 = arith.constant 0 : i32
    return %c0_i32, %c0_i32_0 : i32, i32
  }
  func.func @transform_10(%arg0: i32) -> (i32, i32) {
    %c0_i32 = arith.constant 0 : i32
    %c0_i32_0 = arith.constant 0 : i32
    %c0_i32_1 = arith.constant 0 : i32
    return %c0_i32, %c0_i32_0 : i32, i32
  }
  func.func @transform_11(%arg0: i32) -> (i32, i32) {
    %c0_i32 = arith.constant 0 : i32
    %c0_i32_0 = arith.constant 0 : i32
    %c0_i32_1 = arith.constant 0 : i32
    return %c0_i32, %c0_i32_0 : i32, i32
  }
  func.func @transform_12(%arg0: i32) -> (i32, i32) {
    %c0_i32 = arith.constant 0 : i32
    %c0_i32_0 = arith.constant 0 : i32
    %c0_i32_1 = arith.constant 0 : i32
    return %c0_i32, %c0_i32_0 : i32, i32
  }
  func.func @transform_13(%arg0: i32) -> (i32, i32) {
    %c0_i32 = arith.constant 0 : i32
    %c0_i32_0 = arith.constant 0 : i32
    %c0_i32_1 = arith.constant 0 : i32
    return %c0_i32, %c0_i32_0 : i32, i32
  }
  func.func @transform_14(%arg0: i32) -> (i32, i32) {
    %c0_i32 = arith.constant 0 : i32
    %c0_i32_0 = arith.constant 0 : i32
    %c0_i32_1 = arith.constant 0 : i32
    return %c0_i32, %c0_i32_0 : i32, i32
  }
  func.func @transform_15(%arg0: i32) -> (i32, i32) {
    %c0_i32 = arith.constant 0 : i32
    %c0_i32_0 = arith.constant 0 : i32
    %c0_i32_1 = arith.constant 0 : i32
    return %c0_i32, %c0_i32_0 : i32, i32
  }
  func.func @transform_16(%arg0: i32) -> (i32, i32) {
    %c0_i32 = arith.constant 0 : i32
    %c0_i32_0 = arith.constant 0 : i32
    %c0_i32_1 = arith.constant 0 : i32
    return %c0_i32, %c0_i32_0 : i32, i32
  }
  func.func @transform_17(%arg0: i32) -> (i32, i32) {
    %c0_i32 = arith.constant 0 : i32
    %c0_i32_0 = arith.constant 0 : i32
    %c0_i32_1 = arith.constant 0 : i32
    return %c0_i32, %c0_i32_0 : i32, i32
  }
  func.func @transform_18(%arg0: i32) -> (i32, i32) {
    %c0_i32 = arith.constant 0 : i32
    %c0_i32_0 = arith.constant 0 : i32
    %c0_i32_1 = arith.constant 0 : i32
    return %c0_i32, %c0_i32_0 : i32, i32
  }
  func.func @transform_19(%arg0: i32) -> (i32, i32) {
    %c0_i32 = arith.constant 0 : i32
    %c0_i32_0 = arith.constant 0 : i32
    %c0_i32_1 = arith.constant 0 : i32
    return %c0_i32, %c0_i32_0 : i32, i32
  }
  func.func @transform_20(%arg0: i32) -> (i32, i32) {
    %c0_i32 = arith.constant 0 : i32
    %c0_i32_0 = arith.constant 0 : i32
    %c0_i32_1 = arith.constant 0 : i32
    return %c0_i32, %c0_i32_0 : i32, i32
  }
  func.func @transform_21(%arg0: i32) -> (i32, i32) {
    %c0_i32 = arith.constant 0 : i32
    %c0_i32_0 = arith.constant 0 : i32
    %c0_i32_1 = arith.constant 0 : i32
    return %c0_i32, %c0_i32_0 : i32, i32
  }
  func.func @transform_22(%arg0: i32) -> (i32, i32) {
    %c0_i32 = arith.constant 0 : i32
    %c0_i32_0 = arith.constant 0 : i32
    %c0_i32_1 = arith.constant 0 : i32
    return %c0_i32, %c0_i32_0 : i32, i32
  }
  func.func @transform_23(%arg0: i32) -> (i32, i32) {
    %c0_i32 = arith.constant 0 : i32
    %c0_i32_0 = arith.constant 0 : i32
    %c0_i32_1 = arith.constant 0 : i32
    return %c0_i32, %c0_i32_0 : i32, i32
  }
  func.func @transform_24(%arg0: i32) -> (i32, i32) {
    %c0_i32 = arith.constant 0 : i32
    %c0_i32_0 = arith.constant 0 : i32
    %c0_i32_1 = arith.constant 0 : i32
    return %c0_i32, %c0_i32_0 : i32, i32
  }
  func.func @transform_25(%arg0: i32) -> (i32, i32) {
    %c0_i32 = arith.constant 0 : i32
    %c0_i32_0 = arith.constant 0 : i32
    %c0_i32_1 = arith.constant 0 : i32
    return %c0_i32, %c0_i32_0 : i32, i32
  }
  func.func @transform_26(%arg0: i32) -> (i32, i32) {
    %c0_i32 = arith.constant 0 : i32
    %c0_i32_0 = arith.constant 0 : i32
    %c0_i32_1 = arith.constant 0 : i32
    return %c0_i32, %c0_i32_0 : i32, i32
  }
  func.func @transform_27(%arg0: i32) -> (i32, i32) {
    %c0_i32 = arith.constant 0 : i32
    %c0_i32_0 = arith.constant 0 : i32
    %c0_i32_1 = arith.constant 0 : i32
    return %c0_i32, %c0_i32_0 : i32, i32
  }
  func.func @transform_28(%arg0: i32) -> (i32, i32) {
    %c0_i32 = arith.constant 0 : i32
    %c0_i32_0 = arith.constant 0 : i32
    %c0_i32_1 = arith.constant 0 : i32
    return %c0_i32, %c0_i32_0 : i32, i32
  }
  func.func @transform_29(%arg0: i32) -> (i32, i32) {
    %c0_i32 = arith.constant 0 : i32
    %c0_i32_0 = arith.constant 0 : i32
    %c0_i32_1 = arith.constant 0 : i32
    return %c0_i32, %c0_i32_0 : i32, i32
  }
  func.func @transform_30(%arg0: i32) -> (i32, i32) {
    %c0_i32 = arith.constant 0 : i32
    %c0_i32_0 = arith.constant 0 : i32
    %c0_i32_1 = arith.constant 0 : i32
    return %c0_i32, %c0_i32_0 : i32, i32
  }
  func.func @transform_31(%arg0: i32) -> (i32, i32, i32) {
    %c0_i32 = arith.constant 0 : i32
    %c0_i32_0 = arith.constant 0 : i32
    %c0_i32_1 = arith.constant 0 : i32
    return %arg0, %c0_i32, %c0_i32_0 : i32, i32, i32
  }
}

</mosaic_0001>

<llo_original>
// kernel: vit_forward.1
$region0: #{vit_forward.1}
  #allocation0 [shape = 'u32[]', space=smem, size = 0x4, offset = 0x4, fixed_abs, tag = 'smem constant byte address 0x4 - core index']
  #allocation1 [shape = 'u32[144,128]{1,0:T(1,128)}', space=vmem, size = 0x12000, scoped, tag = 'internal scratch']
  %s0 = inlined_call_operand.smem [shape: u32[32], index: -1, kind: input, shape index: {}]
  %s1 = sld [smem:[%s0]]
  %s2 = scalar_lea.smem %s0, 1
  %s3 = sld [smem:[%s2]]
  %s4 = scalar_lea.smem %s0, 2
  %s5 = sld [smem:[%s4]]
  %s6 = scalar_lea.smem %s0, 3
  %s7 = sld [smem:[%s6]]
  %s8 = scalar_lea.smem %s0, 4
  %s9 = sld [smem:[%s8]]
  %s10 = scalar_lea.smem %s0, 5
  %s11 = sld [smem:[%s10]]
  %s12 = scalar_lea.smem %s0, 6
  %s13 = sld [smem:[%s12]]
  %s14 = scalar_lea.smem %s0, 7
  %s15 = sld [smem:[%s14]]
  %s16 = scalar_lea.smem %s0, 8
  %s17 = sld [smem:[%s16]]
  %s18 = scalar_lea.smem %s0, 9
  %s19 = sld [smem:[%s18]]
  %s20 = scalar_lea.smem %s0, 10
  %s21 = sld [smem:[%s20]]
  %s22 = scalar_lea.smem %s0, 11
  %s23 = sld [smem:[%s22]]
  %s24 = scalar_lea.smem %s0, 12
  %s25 = sld [smem:[%s24]]
  %s26 = scalar_lea.smem %s0, 13
  %s27 = sld [smem:[%s26]]
  %s28 = scalar_lea.smem %s0, 14
  %s29 = sld [smem:[%s28]]
  %s30 = scalar_lea.smem %s0, 15
  %s31 = sld [smem:[%s30]]
  %s32 = scalar_lea.smem %s0, 16
  %s33 = sld [smem:[%s32]]
  %s34 = scalar_lea.smem %s0, 17
  %s35 = sld [smem:[%s34]]
  %s36 = scalar_lea.smem %s0, 18
  %s37 = sld [smem:[%s36]]
  %s38 = scalar_lea.smem %s0, 19
  %s39 = sld [smem:[%s38]]
  %s40 = scalar_lea.smem %s0, 20
  %s41 = sld [smem:[%s40]]
  %s42 = scalar_lea.smem %s0, 21
  %s43 = sld [smem:[%s42]]
  %s44 = scalar_lea.smem %s0, 22
  %s45 = sld [smem:[%s44]]
  %s46 = scalar_lea.smem %s0, 23
  %s47 = sld [smem:[%s46]]
  %s48 = scalar_lea.smem %s0, 24
  %s49 = sld [smem:[%s48]]
  %s50 = scalar_lea.smem %s0, 25
  %s51 = sld [smem:[%s50]]
  %s52 = scalar_lea.smem %s0, 26
  %s53 = sld [smem:[%s52]]
  %s54 = scalar_lea.smem %s0, 27
  %s55 = sld [smem:[%s54]]
  %s56 = scalar_lea.smem %s0, 28
  %s57 = sld [smem:[%s56]]
  %s58 = scalar_lea.smem %s0, 29
  %s59 = sld [smem:[%s58]]
  %s60 = scalar_lea.smem %s0, 30
  %s61 = sld [smem:[%s60]]
  %s62 = scalar_lea.smem %s0, 31
  %s63 = sld [smem:[%s62]]
  %s64 = sld [smem:[#allocation0]]
  $region157: #{vit_forward.1} parent=0
    _
  %s66 = ssub.s32 1, %s64
  %s67 = scalar_select 0, %s66, %s64
  $region1: #{vit_forward.1} parent=0
    #allocation2 [shape = 'u8[1024]{0}', space=vmem, size = 0x400, scoped, tag = 'output window, operand 0']
    #allocation3 [shape = 's32[2]{0}', space=sflag, size = 0x8, scoped, tag = 'scoped memory for vit_forward.1']
    %68 = vsyncpa [#allocation3], 0
    %s69 = scalar_lea.sflag [#allocation3], 1
    %70 = vsyncpa %s69, 0
    loop: start=0, step=1, limit=4
    $region2: #{vit_forward.1} parent=1 // loop_pre_header
      _
    $region3: #{vit_forward.1} parent=1 // loop_header
      %s72 = sphi 0, %s76
      %p73 = scmp.ge.s32.totalorder %s72, 4
      %s82 = sphi 0, %s84
      %s85 = sphi 0, %s82
      %s86 = sphi 0, %s85
      %s102 = sphi 0, %s86
      %s106 = sphi 0, %s106
      %s108 = sphi 0, %s106
      %s109 = sphi 0, %s108
      %s123 = sphi 0, %s109
      %s127 = sphi 0, %s127
      %s129 = sphi 0, %s127
      %s130 = sphi 0, %s129
      %s144 = sphi 0, %s130
      %s148 = sphi 0, %s148
      %s150 = sphi 0, %s148
      %s151 = sphi 0, %s150
      %s165 = sphi 0, %s151
      %s169 = sphi 0, %s169
      %s171 = sphi 0, %s169
      %s172 = sphi 0, %s171
      %s186 = sphi 0, %s172
      %s190 = sphi 0, %s190
      %s192 = sphi 0, %s190
      %s193 = sphi 0, %s192
      %s207 = sphi 0, %s193
      %s211 = sphi 0, %s211
      %s213 = sphi 0, %s211
      %s214 = sphi 0, %s213
      %s228 = sphi 0, %s214
      %s232 = sphi 0, %s232
      %s234 = sphi 0, %s232
      %s235 = sphi 0, %s234
      %s249 = sphi 0, %s235
      %s253 = sphi 0, %s253
      %s255 = sphi 0, %s253
      %s256 = sphi 0, %s255
      %s270 = sphi 0, %s256
      %s274 = sphi 0, %s274
      %s276 = sphi 0, %s274
      %s277 = sphi 0, %s276
      %s291 = sphi 0, %s277
      %s295 = sphi 0, %s295
      %s297 = sphi 0, %s295
      %s298 = sphi 0, %s297
      %s312 = sphi 0, %s298
      %s316 = sphi 0, %s316
      %s318 = sphi 0, %s316
      %s319 = sphi 0, %s318
      %s333 = sphi 0, %s319
      %s337 = sphi 0, %s337
      %s339 = sphi 0, %s337
      %s340 = sphi 0, %s339
      %s354 = sphi 0, %s340
      %s358 = sphi 0, %s358
      %s360 = sphi 0, %s358
      %s361 = sphi 0, %s360
      %s375 = sphi 0, %s361
      %s379 = sphi 0, %s379
      %s381 = sphi 0, %s379
      %s382 = sphi 0, %s381
      %s396 = sphi 0, %s382
      %s400 = sphi 0, %s400
      %s402 = sphi 0, %s400
      %s403 = sphi 0, %s402
      %s417 = sphi 0, %s403
      %s421 = sphi 0, %s421
      %s423 = sphi 0, %s421
      %s424 = sphi 0, %s423
      %s438 = sphi 0, %s424
      %s442 = sphi 0, %s442
      %s444 = sphi 0, %s442
      %s445 = sphi 0, %s444
      %s459 = sphi 0, %s445
      %s463 = sphi 0, %s463
      %s465 = sphi 0, %s463
      %s466 = sphi 0, %s465
      %s480 = sphi 0, %s466
      %s484 = sphi 0, %s484
      %s486 = sphi 0, %s484
      %s487 = sphi 0, %s486
      %s501 = sphi 0, %s487
      %s505 = sphi 0, %s505
      %s507 = sphi 0, %s505
      %s508 = sphi 0, %s507
      %s522 = sphi 0, %s508
      %s526 = sphi 0, %s526
      %s528 = sphi 0, %s526
      %s529 = sphi 0, %s528
      %s543 = sphi 0, %s529
      %s547 = sphi 0, %s547
      %s549 = sphi 0, %s547
      %s550 = sphi 0, %s549
      %s564 = sphi 0, %s550
      %s568 = sphi 0, %s568
      %s570 = sphi 0, %s568
      %s571 = sphi 0, %s570
      %s585 = sphi 0, %s571
      %s589 = sphi 0, %s589
      %s591 = sphi 0, %s589
      %s592 = sphi 0, %s591
      %s606 = sphi 0, %s592
      %s610 = sphi 0, %s610
      %s612 = sphi 0, %s610
      %s613 = sphi 0, %s612
      %s627 = sphi 0, %s613
      %s631 = sphi 0, %s631
      %s633 = sphi 0, %s631
      %s634 = sphi 0, %s633
      %s648 = sphi 0, %s634
      %s652 = sphi 0, %s652
      %s654 = sphi 0, %s652
      %s655 = sphi 0, %s654
      %s669 = sphi 0, %s655
      %s673 = sphi 0, %s673
      %s675 = sphi 0, %s673
      %s676 = sphi 0, %s675
      %s690 = sphi 0, %s676
      %s694 = sphi 0, %s694
      %s696 = sphi 0, %s694
      %s697 = sphi 0, %s696
      %s711 = sphi 0, %s697
      %s715 = sphi 0, %s715
      %s717 = sphi 0, %s715
      %s718 = sphi 0, %s717
      %s732 = sphi 0, %s718
      %s738 = sphi 0, %s740
      %s741 = sphi 0, %s738
      %s742 = sphi 0, %s741
      %s758 = sphi 0, %s742
    $region4: #{vit_forward.1} parent=1 // loop_header_branch
      %75 = sbr.rel (%p73) target = $region8
    $region5: #{vit_forward.1} parent=1 // loop_body
      %s77 = ssub.s32 %s72, 1
      %s78 = ssub.s32 %s72, 2
      %s79 = sadd.s32 %s72, 1
      %s80 = ssub.s32 %s72, %s79
      %p81 = scmp.eq.s32.totalorder %s80, 0
      %s83 = sadd.s32 %s82, 1
      %s84 = scalar_select %p81, %s82, %s83
      %p87 = pneg %p81
      %p88 = scmp.eq.s32.totalorder %s72, 1
      %p89 = por %p87, %p88
      %p90 = scmp.ne.s32.totalorder %s82, %s85
      %p91 = scmp.eq.s32.totalorder %s72, 0
      %p92 = por %p90, %p91
      %p93 = scmp.ne.s32.totalorder %s82, %s85
      %p94 = scmp.eq.s32.totalorder %s77, 1
      %p95 = por %p93, %p94
      %p96 = scmp.ne.s32.totalorder %s85, %s86
      %p97 = scmp.eq.s32.totalorder %s77, 0
      %p98 = por %p96, %p97
      %p99 = scmp.ne.s32.totalorder %s85, %s86
      %p100 = scmp.eq.s32.totalorder %s78, 1
      %p101 = por %p99, %p100
      %p103 = scmp.ne.s32.totalorder %s86, %s102
      %p104 = scmp.eq.s32.totalorder %s78, 0
      %p105 = por %p103, %p104
      %s107 = sadd.s32 %s106, 1
      %p110 = scmp.eq.s32.totalorder %s72, 1
      %p111 = scmp.ne.s32.totalorder %s106, %s108
      %p112 = scmp.eq.s32.totalorder %s72, 0
      %p113 = por %p111, %p112
      %p114 = scmp.ne.s32.totalorder %s106, %s108
      %p115 = scmp.eq.s32.totalorder %s77, 1
      %p116 = por %p114, %p115
      %p117 = scmp.ne.s32.totalorder %s108, %s109
      %p118 = scmp.eq.s32.totalorder %s77, 0
      %p119 = por %p117, %p118
      %p120 = scmp.ne.s32.totalorder %s108, %s109
      %p121 = scmp.eq.s32.totalorder %s78, 1
      %p122 = por %p120, %p121
      %p124 = scmp.ne.s32.totalorder %s109, %s123
      %p125 = scmp.eq.s32.totalorder %s78, 0
      %p126 = por %p124, %p125
      %s128 = sadd.s32 %s127, 1
      %p131 = scmp.eq.s32.totalorder %s72, 1
      %p132 = scmp.ne.s32.totalorder %s127, %s129
      %p133 = scmp.eq.s32.totalorder %s72, 0
      %p134 = por %p132, %p133
      %p135 = scmp.ne.s32.totalorder %s127, %s129
      %p136 = scmp.eq.s32.totalorder %s77, 1
      %p137 = por %p135, %p136
      %p138 = scmp.ne.s32.totalorder %s129, %s130
      %p139 = scmp.eq.s32.totalorder %s77, 0
      %p140 = por %p138, %p139
      %p141 = scmp.ne.s32.totalorder %s129, %s130
      %p142 = scmp.eq.s32.totalorder %s78, 1
      %p143 = por %p141, %p142
      %p145 = scmp.ne.s32.totalorder %s130, %s144
      %p146 = scmp.eq.s32.totalorder %s78, 0
      %p147 = por %p145, %p146
      %s149 = sadd.s32 %s148, 1
      %p152 = scmp.eq.s32.totalorder %s72, 1
      %p153 = scmp.ne.s32.totalorder %s148, %s150
      %p154 = scmp.eq.s32.totalorder %s72, 0
      %p155 = por %p153, %p154
      %p156 = scmp.ne.s32.totalorder %s148, %s150
      %p157 = scmp.eq.s32.totalorder %s77, 1
      %p158 = por %p156, %p157
      %p159 = scmp.ne.s32.totalorder %s150, %s151
      %p160 = scmp.eq.s32.totalorder %s77, 0
      %p161 = por %p159, %p160
      %p162 = scmp.ne.s32.totalorder %s150, %s151
      %p163 = scmp.eq.s32.totalorder %s78, 1
      %p164 = por %p162, %p163
      %p166 = scmp.ne.s32.totalorder %s151, %s165
      %p167 = scmp.eq.s32.totalorder %s78, 0
      %p168 = por %p166, %p167
      %s170 = sadd.s32 %s169, 1
      %p173 = scmp.eq.s32.totalorder %s72, 1
      %p174 = scmp.ne.s32.totalorder %s169, %s171
      %p175 = scmp.eq.s32.totalorder %s72, 0
      %p176 = por %p174, %p175
      %p177 = scmp.ne.s32.totalorder %s169, %s171
      %p178 = scmp.eq.s32.totalorder %s77, 1
      %p179 = por %p177, %p178
      %p180 = scmp.ne.s32.totalorder %s171, %s172
      %p181 = scmp.eq.s32.totalorder %s77, 0
      %p182 = por %p180, %p181
      %p183 = scmp.ne.s32.totalorder %s171, %s172
      %p184 = scmp.eq.s32.totalorder %s78, 1
      %p185 = por %p183, %p184
      %p187 = scmp.ne.s32.totalorder %s172, %s186
      %p188 = scmp.eq.s32.totalorder %s78, 0
      %p189 = por %p187, %p188
      %s191 = sadd.s32 %s190, 1
      %p194 = scmp.eq.s32.totalorder %s72, 1
      %p195 = scmp.ne.s32.totalorder %s190, %s192
      %p196 = scmp.eq.s32.totalorder %s72, 0
      %p197 = por %p195, %p196
      %p198 = scmp.ne.s32.totalorder %s190, %s192
      %p199 = scmp.eq.s32.totalorder %s77, 1
      %p200 = por %p198, %p199
      %p201 = scmp.ne.s32.totalorder %s192, %s193
      %p202 = scmp.eq.s32.totalorder %s77, 0
      %p203 = por %p201, %p202
      %p204 = scmp.ne.s32.totalorder %s192, %s193
      %p205 = scmp.eq.s32.totalorder %s78, 1
      %p206 = por %p204, %p205
      %p208 = scmp.ne.s32.totalorder %s193, %s207
      %p209 = scmp.eq.s32.totalorder %s78, 0
      %p210 = por %p208, %p209
      %s212 = sadd.s32 %s211, 1
      %p215 = scmp.eq.s32.totalorder %s72, 1
      %p216 = scmp.ne.s32.totalorder %s211, %s213
      %p217 = scmp.eq.s32.totalorder %s72, 0
      %p218 = por %p216, %p217
      %p219 = scmp.ne.s32.totalorder %s211, %s213
      %p220 = scmp.eq.s32.totalorder %s77, 1
      %p221 = por %p219, %p220
      %p222 = scmp.ne.s32.totalorder %s213, %s214
      %p223 = scmp.eq.s32.totalorder %s77, 0
      %p224 = por %p222, %p223
      %p225 = scmp.ne.s32.totalorder %s213, %s214
      %p226 = scmp.eq.s32.totalorder %s78, 1
      %p227 = por %p225, %p226
      %p229 = scmp.ne.s32.totalorder %s214, %s228
      %p230 = scmp.eq.s32.totalorder %s78, 0
      %p231 = por %p229, %p230
      %s233 = sadd.s32 %s232, 1
      %p236 = scmp.eq.s32.totalorder %s72, 1
      %p237 = scmp.ne.s32.totalorder %s232, %s234
      %p238 = scmp.eq.s32.totalorder %s72, 0
      %p239 = por %p237, %p238
      %p240 = scmp.ne.s32.totalorder %s232, %s234
      %p241 = scmp.eq.s32.totalorder %s77, 1
      %p242 = por %p240, %p241
      %p243 = scmp.ne.s32.totalorder %s234, %s235
      %p244 = scmp.eq.s32.totalorder %s77, 0
      %p245 = por %p243, %p244
      %p246 = scmp.ne.s32.totalorder %s234, %s235
      %p247 = scmp.eq.s32.totalorder %s78, 1
      %p248 = por %p246, %p247
      %p250 = scmp.ne.s32.totalorder %s235, %s249
      %p251 = scmp.eq.s32.totalorder %s78, 0
      %p252 = por %p250, %p251
      %s254 = sadd.s32 %s253, 1
      %p257 = scmp.eq.s32.totalorder %s72, 1
      %p258 = scmp.ne.s32.totalorder %s253, %s255
      %p259 = scmp.eq.s32.totalorder %s72, 0
      %p260 = por %p258, %p259
      %p261 = scmp.ne.s32.totalorder %s253, %s255
      %p262 = scmp.eq.s32.totalorder %s77, 1
      %p263 = por %p261, %p262
      %p264 = scmp.ne.s32.totalorder %s255, %s256
      %p265 = scmp.eq.s32.totalorder %s77, 0
      %p266 = por %p264, %p265
      %p267 = scmp.ne.s32.totalorder %s255, %s256
      %p268 = scmp.eq.s32.totalorder %s78, 1
      %p269 = por %p267, %p268
      %p271 = scmp.ne.s32.totalorder %s256, %s270
      %p272 = scmp.eq.s32.totalorder %s78, 0
      %p273 = por %p271, %p272
      %s275 = sadd.s32 %s274, 1
      %p278 = scmp.eq.s32.totalorder %s72, 1
      %p279 = scmp.ne.s32.totalorder %s274, %s276
      %p280 = scmp.eq.s32.totalorder %s72, 0
      %p281 = por %p279, %p280
      %p282 = scmp.ne.s32.totalorder %s274, %s276
      %p283 = scmp.eq.s32.totalorder %s77, 1
      %p284 = por %p282, %p283
      %p285 = scmp.ne.s32.totalorder %s276, %s277
      %p286 = scmp.eq.s32.totalorder %s77, 0
      %p287 = por %p285, %p286
      %p288 = scmp.ne.s32.totalorder %s276, %s277
      %p289 = scmp.eq.s32.totalorder %s78, 1
      %p290 = por %p288, %p289
      %p292 = scmp.ne.s32.totalorder %s277, %s291
      %p293 = scmp.eq.s32.totalorder %s78, 0
      %p294 = por %p292, %p293
      %s296 = sadd.s32 %s295, 1
      %p299 = scmp.eq.s32.totalorder %s72, 1
      %p300 = scmp.ne.s32.totalorder %s295, %s297
      %p301 = scmp.eq.s32.totalorder %s72, 0
      %p302 = por %p300, %p301
      %p303 = scmp.ne.s32.totalorder %s295, %s297
      %p304 = scmp.eq.s32.totalorder %s77, 1
      %p305 = por %p303, %p304
      %p306 = scmp.ne.s32.totalorder %s297, %s298
      %p307 = scmp.eq.s32.totalorder %s77, 0
      %p308 = por %p306, %p307
      %p309 = scmp.ne.s32.totalorder %s297, %s298
      %p310 = scmp.eq.s32.totalorder %s78, 1
      %p311 = por %p309, %p310
      %p313 = scmp.ne.s32.totalorder %s298, %s312
      %p314 = scmp.eq.s32.totalorder %s78, 0
      %p315 = por %p313, %p314
      %s317 = sadd.s32 %s316, 1
      %p320 = scmp.eq.s32.totalorder %s72, 1
      %p321 = scmp.ne.s32.totalorder %s316, %s318
      %p322 = scmp.eq.s32.totalorder %s72, 0
      %p323 = por %p321, %p322
      %p324 = scmp.ne.s32.totalorder %s316, %s318
      %p325 = scmp.eq.s32.totalorder %s77, 1
      %p326 = por %p324, %p325
      %p327 = scmp.ne.s32.totalorder %s318, %s319
      %p328 = scmp.eq.s32.totalorder %s77, 0
      %p329 = por %p327, %p328
      %p330 = scmp.ne.s32.totalorder %s318, %s319
      %p331 = scmp.eq.s32.totalorder %s78, 1
      %p332 = por %p330, %p331
      %p334 = scmp.ne.s32.totalorder %s319, %s333
      %p335 = scmp.eq.s32.totalorder %s78, 0
      %p336 = por %p334, %p335
      %s338 = sadd.s32 %s337, 1
      %p341 = scmp.eq.s32.totalorder %s72, 1
      %p342 = scmp.ne.s32.totalorder %s337, %s339
      %p343 = scmp.eq.s32.totalorder %s72, 0
      %p344 = por %p342, %p343
      %p345 = scmp.ne.s32.totalorder %s337, %s339
      %p346 = scmp.eq.s32.totalorder %s77, 1
      %p347 = por %p345, %p346
      %p348 = scmp.ne.s32.totalorder %s339, %s340
      %p349 = scmp.eq.s32.totalorder %s77, 0
      %p350 = por %p348, %p349
      %p351 = scmp.ne.s32.totalorder %s339, %s340
      %p352 = scmp.eq.s32.totalorder %s78, 1
      %p353 = por %p351, %p352
      %p355 = scmp.ne.s32.totalorder %s340, %s354
      %p356 = scmp.eq.s32.totalorder %s78, 0
      %p357 = por %p355, %p356
      %s359 = sadd.s32 %s358, 1
      %p362 = scmp.eq.s32.totalorder %s72, 1
      %p363 = scmp.ne.s32.totalorder %s358, %s360
      %p364 = scmp.eq.s32.totalorder %s72, 0
      %p365 = por %p363, %p364
      %p366 = scmp.ne.s32.totalorder %s358, %s360
      %p367 = scmp.eq.s32.totalorder %s77, 1
      %p368 = por %p366, %p367
      %p369 = scmp.ne.s32.totalorder %s360, %s361
      %p370 = scmp.eq.s32.totalorder %s77, 0
      %p371 = por %p369, %p370
      %p372 = scmp.ne.s32.totalorder %s360, %s361
      %p373 = scmp.eq.s32.totalorder %s78, 1
      %p374 = por %p372, %p373
      %p376 = scmp.ne.s32.totalorder %s361, %s375
      %p377 = scmp.eq.s32.totalorder %s78, 0
      %p378 = por %p376, %p377
      %s380 = sadd.s32 %s379, 1
      %p383 = scmp.eq.s32.totalorder %s72, 1
      %p384 = scmp.ne.s32.totalorder %s379, %s381
      %p385 = scmp.eq.s32.totalorder %s72, 0
      %p386 = por %p384, %p385
      %p387 = scmp.ne.s32.totalorder %s379, %s381
      %p388 = scmp.eq.s32.totalorder %s77, 1
      %p389 = por %p387, %p388
      %p390 = scmp.ne.s32.totalorder %s381, %s382
      %p391 = scmp.eq.s32.totalorder %s77, 0
      %p392 = por %p390, %p391
      %p393 = scmp.ne.s32.totalorder %s381, %s382
      %p394 = scmp.eq.s32.totalorder %s78, 1
      %p395 = por %p393, %p394
      %p397 = scmp.ne.s32.totalorder %s382, %s396
      %p398 = scmp.eq.s32.totalorder %s78, 0
      %p399 = por %p397, %p398
      %s401 = sadd.s32 %s400, 1
      %p404 = scmp.eq.s32.totalorder %s72, 1
      %p405 = scmp.ne.s32.totalorder %s400, %s402
      %p406 = scmp.eq.s32.totalorder %s72, 0
      %p407 = por %p405, %p406
      %p408 = scmp.ne.s32.totalorder %s400, %s402
      %p409 = scmp.eq.s32.totalorder %s77, 1
      %p410 = por %p408, %p409
      %p411 = scmp.ne.s32.totalorder %s402, %s403
      %p412 = scmp.eq.s32.totalorder %s77, 0
      %p413 = por %p411, %p412
      %p414 = scmp.ne.s32.totalorder %s402, %s403
      %p415 = scmp.eq.s32.totalorder %s78, 1
      %p416 = por %p414, %p415
      %p418 = scmp.ne.s32.totalorder %s403, %s417
      %p419 = scmp.eq.s32.totalorder %s78, 0
      %p420 = por %p418, %p419
      %s422 = sadd.s32 %s421, 1
      %p425 = scmp.eq.s32.totalorder %s72, 1
      %p426 = scmp.ne.s32.totalorder %s421, %s423
      %p427 = scmp.eq.s32.totalorder %s72, 0
      %p428 = por %p426, %p427
      %p429 = scmp.ne.s32.totalorder %s421, %s423
      %p430 = scmp.eq.s32.totalorder %s77, 1
      %p431 = por %p429, %p430
      %p432 = scmp.ne.s32.totalorder %s423, %s424
      %p433 = scmp.eq.s32.totalorder %s77, 0
      %p434 = por %p432, %p433
      %p435 = scmp.ne.s32.totalorder %s423, %s424
      %p436 = scmp.eq.s32.totalorder %s78, 1
      %p437 = por %p435, %p436
      %p439 = scmp.ne.s32.totalorder %s424, %s438
      %p440 = scmp.eq.s32.totalorder %s78, 0
      %p441 = por %p439, %p440
      %s443 = sadd.s32 %s442, 1
      %p446 = scmp.eq.s32.totalorder %s72, 1
      %p447 = scmp.ne.s32.totalorder %s442, %s444
      %p448 = scmp.eq.s32.totalorder %s72, 0
      %p449 = por %p447, %p448
      %p450 = scmp.ne.s32.totalorder %s442, %s444
      %p451 = scmp.eq.s32.totalorder %s77, 1
      %p452 = por %p450, %p451
      %p453 = scmp.ne.s32.totalorder %s444, %s445
      %p454 = scmp.eq.s32.totalorder %s77, 0
      %p455 = por %p453, %p454
      %p456 = scmp.ne.s32.totalorder %s444, %s445
      %p457 = scmp.eq.s32.totalorder %s78, 1
      %p458 = por %p456, %p457
      %p460 = scmp.ne.s32.totalorder %s445, %s459
      %p461 = scmp.eq.s32.totalorder %s78, 0
      %p462 = por %p460, %p461
      %s464 = sadd.s32 %s463, 1
      %p467 = scmp.eq.s32.totalorder %s72, 1
      %p468 = scmp.ne.s32.totalorder %s463, %s465
      %p469 = scmp.eq.s32.totalorder %s72, 0
      %p470 = por %p468, %p469
      %p471 = scmp.ne.s32.totalorder %s463, %s465
      %p472 = scmp.eq.s32.totalorder %s77, 1
      %p473 = por %p471, %p472
      %p474 = scmp.ne.s32.totalorder %s465, %s466
      %p475 = scmp.eq.s32.totalorder %s77, 0
      %p476 = por %p474, %p475
      %p477 = scmp.ne.s32.totalorder %s465, %s466
      %p478 = scmp.eq.s32.totalorder %s78, 1
      %p479 = por %p477, %p478
      %p481 = scmp.ne.s32.totalorder %s466, %s480
      %p482 = scmp.eq.s32.totalorder %s78, 0
      %p483 = por %p481, %p482
      %s485 = sadd.s32 %s484, 1
      %p488 = scmp.eq.s32.totalorder %s72, 1
      %p489 = scmp.ne.s32.totalorder %s484, %s486
      %p490 = scmp.eq.s32.totalorder %s72, 0
      %p491 = por %p489, %p490
      %p492 = scmp.ne.s32.totalorder %s484, %s486
      %p493 = scmp.eq.s32.totalorder %s77, 1
      %p494 = por %p492, %p493
      %p495 = scmp.ne.s32.totalorder %s486, %s487
      %p496 = scmp.eq.s32.totalorder %s77, 0
      %p497 = por %p495, %p496
      %p498 = scmp.ne.s32.totalorder %s486, %s487
      %p499 = scmp.eq.s32.totalorder %s78, 1
      %p500 = por %p498, %p499
      %p502 = scmp.ne.s32.totalorder %s487, %s501
      %p503 = scmp.eq.s32.totalorder %s78, 0
      %p504 = por %p502, %p503
      %s506 = sadd.s32 %s505, 1
      %p509 = scmp.eq.s32.totalorder %s72, 1
      %p510 = scmp.ne.s32.totalorder %s505, %s507
      %p511 = scmp.eq.s32.totalorder %s72, 0
      %p512 = por %p510, %p511
      %p513 = scmp.ne.s32.totalorder %s505, %s507
      %p514 = scmp.eq.s32.totalorder %s77, 1
      %p515 = por %p513, %p514
      %p516 = scmp.ne.s32.totalorder %s507, %s508
      %p517 = scmp.eq.s32.totalorder %s77, 0
      %p518 = por %p516, %p517
      %p519 = scmp.ne.s32.totalorder %s507, %s508
      %p520 = scmp.eq.s32.totalorder %s78, 1
      %p521 = por %p519, %p520
      %p523 = scmp.ne.s32.totalorder %s508, %s522
      %p524 = scmp.eq.s32.totalorder %s78, 0
      %p525 = por %p523, %p524
      %s527 = sadd.s32 %s526, 1
      %p530 = scmp.eq.s32.totalorder %s72, 1
      %p531 = scmp.ne.s32.totalorder %s526, %s528
      %p532 = scmp.eq.s32.totalorder %s72, 0
      %p533 = por %p531, %p532
      %p534 = scmp.ne.s32.totalorder %s526, %s528
      %p535 = scmp.eq.s32.totalorder %s77, 1
      %p536 = por %p534, %p535
      %p537 = scmp.ne.s32.totalorder %s528, %s529
      %p538 = scmp.eq.s32.totalorder %s77, 0
      %p539 = por %p537, %p538
      %p540 = scmp.ne.s32.totalorder %s528, %s529
      %p541 = scmp.eq.s32.totalorder %s78, 1
      %p542 = por %p540, %p541
      %p544 = scmp.ne.s32.totalorder %s529, %s543
      %p545 = scmp.eq.s32.totalorder %s78, 0
      %p546 = por %p544, %p545
      %s548 = sadd.s32 %s547, 1
      %p551 = scmp.eq.s32.totalorder %s72, 1
      %p552 = scmp.ne.s32.totalorder %s547, %s549
      %p553 = scmp.eq.s32.totalorder %s72, 0
      %p554 = por %p552, %p553
      %p555 = scmp.ne.s32.totalorder %s547, %s549
      %p556 = scmp.eq.s32.totalorder %s77, 1
      %p557 = por %p555, %p556
      %p558 = scmp.ne.s32.totalorder %s549, %s550
      %p559 = scmp.eq.s32.totalorder %s77, 0
      %p560 = por %p558, %p559
      %p561 = scmp.ne.s32.totalorder %s549, %s550
      %p562 = scmp.eq.s32.totalorder %s78, 1
      %p563 = por %p561, %p562
      %p565 = scmp.ne.s32.totalorder %s550, %s564
      %p566 = scmp.eq.s32.totalorder %s78, 0
      %p567 = por %p565, %p566
      %s569 = sadd.s32 %s568, 1
      %p572 = scmp.eq.s32.totalorder %s72, 1
      %p573 = scmp.ne.s32.totalorder %s568, %s570
      %p574 = scmp.eq.s32.totalorder %s72, 0
      %p575 = por %p573, %p574
      %p576 = scmp.ne.s32.totalorder %s568, %s570
      %p577 = scmp.eq.s32.totalorder %s77, 1
      %p578 = por %p576, %p577
      %p579 = scmp.ne.s32.totalorder %s570, %s571
      %p580 = scmp.eq.s32.totalorder %s77, 0
      %p581 = por %p579, %p580
      %p582 = scmp.ne.s32.totalorder %s570, %s571
      %p583 = scmp.eq.s32.totalorder %s78, 1
      %p584 = por %p582, %p583
      %p586 = scmp.ne.s32.totalorder %s571, %s585
      %p587 = scmp.eq.s32.totalorder %s78, 0
      %p588 = por %p586, %p587
      %s590 = sadd.s32 %s589, 1
      %p593 = scmp.eq.s32.totalorder %s72, 1
      %p594 = scmp.ne.s32.totalorder %s589, %s591
      %p595 = scmp.eq.s32.totalorder %s72, 0
      %p596 = por %p594, %p595
      %p597 = scmp.ne.s32.totalorder %s589, %s591
      %p598 = scmp.eq.s32.totalorder %s77, 1
      %p599 = por %p597, %p598
      %p600 = scmp.ne.s32.totalorder %s591, %s592
      %p601 = scmp.eq.s32.totalorder %s77, 0
      %p602 = por %p600, %p601
      %p603 = scmp.ne.s32.totalorder %s591, %s592
      %p604 = scmp.eq.s32.totalorder %s78, 1
      %p605 = por %p603, %p604
      %p607 = scmp.ne.s32.totalorder %s592, %s606
      %p608 = scmp.eq.s32.totalorder %s78, 0
      %p609 = por %p607, %p608
      %s611 = sadd.s32 %s610, 1
      %p614 = scmp.eq.s32.totalorder %s72, 1
      %p615 = scmp.ne.s32.totalorder %s610, %s612
      %p616 = scmp.eq.s32.totalorder %s72, 0
      %p617 = por %p615, %p616
      %p618 = scmp.ne.s32.totalorder %s610, %s612
      %p619 = scmp.eq.s32.totalorder %s77, 1
      %p620 = por %p618, %p619
      %p621 = scmp.ne.s32.totalorder %s612, %s613
      %p622 = scmp.eq.s32.totalorder %s77, 0
      %p623 = por %p621, %p622
      %p624 = scmp.ne.s32.totalorder %s612, %s613
      %p625 = scmp.eq.s32.totalorder %s78, 1
      %p626 = por %p624, %p625
      %p628 = scmp.ne.s32.totalorder %s613, %s627
      %p629 = scmp.eq.s32.totalorder %s78, 0
      %p630 = por %p628, %p629
      %s632 = sadd.s32 %s631, 1
      %p635 = scmp.eq.s32.totalorder %s72, 1
      %p636 = scmp.ne.s32.totalorder %s631, %s633
      %p637 = scmp.eq.s32.totalorder %s72, 0
      %p638 = por %p636, %p637
      %p639 = scmp.ne.s32.totalorder %s631, %s633
      %p640 = scmp.eq.s32.totalorder %s77, 1
      %p641 = por %p639, %p640
      %p642 = scmp.ne.s32.totalorder %s633, %s634
      %p643 = scmp.eq.s32.totalorder %s77, 0
      %p644 = por %p642, %p643
      %p645 = scmp.ne.s32.totalorder %s633, %s634
      %p646 = scmp.eq.s32.totalorder %s78, 1
      %p647 = por %p645, %p646
      %p649 = scmp.ne.s32.totalorder %s634, %s648
      %p650 = scmp.eq.s32.totalorder %s78, 0
      %p651 = por %p649, %p650
      %s653 = sadd.s32 %s652, 1
      %p656 = scmp.eq.s32.totalorder %s72, 1
      %p657 = scmp.ne.s32.totalorder %s652, %s654
      %p658 = scmp.eq.s32.totalorder %s72, 0
      %p659 = por %p657, %p658
      %p660 = scmp.ne.s32.totalorder %s652, %s654
      %p661 = scmp.eq.s32.totalorder %s77, 1
      %p662 = por %p660, %p661
      %p663 = scmp.ne.s32.totalorder %s654, %s655
      %p664 = scmp.eq.s32.totalorder %s77, 0
      %p665 = por %p663, %p664
      %p666 = scmp.ne.s32.totalorder %s654, %s655
      %p667 = scmp.eq.s32.totalorder %s78, 1
      %p668 = por %p666, %p667
      %p670 = scmp.ne.s32.totalorder %s655, %s669
      %p671 = scmp.eq.s32.totalorder %s78, 0
      %p672 = por %p670, %p671
      %s674 = sadd.s32 %s673, 1
      %p677 = scmp.eq.s32.totalorder %s72, 1
      %p678 = scmp.ne.s32.totalorder %s673, %s675
      %p679 = scmp.eq.s32.totalorder %s72, 0
      %p680 = por %p678, %p679
      %p681 = scmp.ne.s32.totalorder %s673, %s675
      %p682 = scmp.eq.s32.totalorder %s77, 1
      %p683 = por %p681, %p682
      %p684 = scmp.ne.s32.totalorder %s675, %s676
      %p685 = scmp.eq.s32.totalorder %s77, 0
      %p686 = por %p684, %p685
      %p687 = scmp.ne.s32.totalorder %s675, %s676
      %p688 = scmp.eq.s32.totalorder %s78, 1
      %p689 = por %p687, %p688
      %p691 = scmp.ne.s32.totalorder %s676, %s690
      %p692 = scmp.eq.s32.totalorder %s78, 0
      %p693 = por %p691, %p692
      %s695 = sadd.s32 %s694, 1
      %p698 = scmp.eq.s32.totalorder %s72, 1
      %p699 = scmp.ne.s32.totalorder %s694, %s696
      %p700 = scmp.eq.s32.totalorder %s72, 0
      %p701 = por %p699, %p700
      %p702 = scmp.ne.s32.totalorder %s694, %s696
      %p703 = scmp.eq.s32.totalorder %s77, 1
      %p704 = por %p702, %p703
      %p705 = scmp.ne.s32.totalorder %s696, %s697
      %p706 = scmp.eq.s32.totalorder %s77, 0
      %p707 = por %p705, %p706
      %p708 = scmp.ne.s32.totalorder %s696, %s697
      %p709 = scmp.eq.s32.totalorder %s78, 1
      %p710 = por %p708, %p709
      %p712 = scmp.ne.s32.totalorder %s697, %s711
      %p713 = scmp.eq.s32.totalorder %s78, 0
      %p714 = por %p712, %p713
      %s716 = sadd.s32 %s715, 1
      %p719 = scmp.eq.s32.totalorder %s72, 1
      %p720 = scmp.ne.s32.totalorder %s715, %s717
      %p721 = scmp.eq.s32.totalorder %s72, 0
      %p722 = por %p720, %p721
      %p723 = scmp.ne.s32.totalorder %s715, %s717
      %p724 = scmp.eq.s32.totalorder %s77, 1
      %p725 = por %p723, %p724
      %p726 = scmp.ne.s32.totalorder %s717, %s718
      %p727 = scmp.eq.s32.totalorder %s77, 0
      %p728 = por %p726, %p727
      %p729 = scmp.ne.s32.totalorder %s717, %s718
      %p730 = scmp.eq.s32.totalorder %s78, 1
      %p731 = por %p729, %p730
      %p733 = scmp.ne.s32.totalorder %s718, %s732
      %p734 = scmp.eq.s32.totalorder %s78, 0
      %p735 = por %p733, %p734
      %s736 = ssub.s32 %s72, %s79
      %p737 = scmp.eq.s32.totalorder %s736, 0
      %s739 = sadd.s32 %s738, 1
      %s740 = scalar_select %p737, %s738, %s739
      %p743 = pneg %p737
      %p744 = scmp.eq.s32.totalorder %s72, 1
      %p745 = por %p743, %p744
      %p746 = scmp.ne.s32.totalorder %s738, %s741
      %p747 = scmp.eq.s32.totalorder %s72, 0
      %p748 = por %p746, %p747
      %p749 = scmp.ne.s32.totalorder %s738, %s741
      %p750 = scmp.eq.s32.totalorder %s77, 1
      %p751 = por %p749, %p750
      %p752 = scmp.ne.s32.totalorder %s741, %s742
      %p753 = scmp.eq.s32.totalorder %s77, 0
      %p754 = por %p752, %p753
      %p755 = scmp.ne.s32.totalorder %s741, %s742
      %p756 = scmp.eq.s32.totalorder %s78, 1
      %p757 = por %p755, %p756
      %p759 = scmp.ne.s32.totalorder %s742, %s758
      %p760 = scmp.eq.s32.totalorder %s78, 0
      %p761 = por %p759, %p760
      %p762 = scmp.le.s32.totalorder 1, %s72
      %p763 = scmp.lt.s32.totalorder %s72, 3
      %p764 = pnand %p762, %p763
      %p765 = pneg %p764
      // Predicated region
      $region9: #{vit_forward.1} parent=5 // pred_check
        _
      $region10: #{vit_forward.1} parent=5 // pred_check_branch
        %767 = sbr.rel (%p764) target = $region12
      $region11: #{vit_forward.1} parent=5 // pred_region
        %s768 = ssub.s32 %s72, 1
        // Predicated region
        $region13: #{vit_forward.1} parent=11 // pred_check
          %p769 = pneg %p119
        $region14: #{vit_forward.1} parent=11 // pred_check_branch
          %771 = sbr.rel (%p769) target = $region16
        $region15: #{vit_forward.1} parent=11 // pred_region
          _
        $region16: #{vit_forward.1} parent=11 // pred_fallthru
          _
        // Predicated region
        $region17: #{vit_forward.1} parent=11 // pred_check
          %p772 = pneg %p140
        $region18: #{vit_forward.1} parent=11 // pred_check_branch
          %774 = sbr.rel (%p772) target = $region20
        $region19: #{vit_forward.1} parent=11 // pred_region
          _
        $region20: #{vit_forward.1} parent=11 // pred_fallthru
          _
        // Predicated region
        $region21: #{vit_forward.1} parent=11 // pred_check
          %p775 = pneg %p161
        $region22: #{vit_forward.1} parent=11 // pred_check_branch
          %777 = sbr.rel (%p775) target = $region24
        $region23: #{vit_forward.1} parent=11 // pred_region
          _
        $region24: #{vit_forward.1} parent=11 // pred_fallthru
          _
        // Predicated region
        $region25: #{vit_forward.1} parent=11 // pred_check
          %p778 = pneg %p182
        $region26: #{vit_forward.1} parent=11 // pred_check_branch
          %780 = sbr.rel (%p778) target = $region28
        $region27: #{vit_forward.1} parent=11 // pred_region
          _
        $region28: #{vit_forward.1} parent=11 // pred_fallthru
          _
        // Predicated region
        $region29: #{vit_forward.1} parent=11 // pred_check
          %p781 = pneg %p203
        $region30: #{vit_forward.1} parent=11 // pred_check_branch
          %783 = sbr.rel (%p781) target = $region32
        $region31: #{vit_forward.1} parent=11 // pred_region
          _
        $region32: #{vit_forward.1} parent=11 // pred_fallthru
          _
        // Predicated region
        $region33: #{vit_forward.1} parent=11 // pred_check
          %p784 = pneg %p224
        $region34: #{vit_forward.1} parent=11 // pred_check_branch
          %786 = sbr.rel (%p784) target = $region36
        $region35: #{vit_forward.1} parent=11 // pred_region
          _
        $region36: #{vit_forward.1} parent=11 // pred_fallthru
          _
        // Predicated region
        $region37: #{vit_forward.1} parent=11 // pred_check
          %p787 = pneg %p245
        $region38: #{vit_forward.1} parent=11 // pred_check_branch
          %789 = sbr.rel (%p787) target = $region40
        $region39: #{vit_forward.1} parent=11 // pred_region
          _
        $region40: #{vit_forward.1} parent=11 // pred_fallthru
          _
        // Predicated region
        $region41: #{vit_forward.1} parent=11 // pred_check
          %p790 = pneg %p266
        $region42: #{vit_forward.1} parent=11 // pred_check_branch
          %792 = sbr.rel (%p790) target = $region44
        $region43: #{vit_forward.1} parent=11 // pred_region
          _
        $region44: #{vit_forward.1} parent=11 // pred_fallthru
          _
        // Predicated region
        $region45: #{vit_forward.1} parent=11 // pred_check
          %p793 = pneg %p287
        $region46: #{vit_forward.1} parent=11 // pred_check_branch
          %795 = sbr.rel (%p793) target = $region48
        $region47: #{vit_forward.1} parent=11 // pred_region
          _
        $region48: #{vit_forward.1} parent=11 // pred_fallthru
          _
        // Predicated region
        $region49: #{vit_forward.1} parent=11 // pred_check
          %p796 = pneg %p308
        $region50: #{vit_forward.1} parent=11 // pred_check_branch
          %798 = sbr.rel (%p796) target = $region52
        $region51: #{vit_forward.1} parent=11 // pred_region
          _
        $region52: #{vit_forward.1} parent=11 // pred_fallthru
          _
        // Predicated region
        $region53: #{vit_forward.1} parent=11 // pred_check
          %p799 = pneg %p329
        $region54: #{vit_forward.1} parent=11 // pred_check_branch
          %801 = sbr.rel (%p799) target = $region56
        $region55: #{vit_forward.1} parent=11 // pred_region
          _
        $region56: #{vit_forward.1} parent=11 // pred_fallthru
          _
        // Predicated region
        $region57: #{vit_forward.1} parent=11 // pred_check
          %p802 = pneg %p350
        $region58: #{vit_forward.1} parent=11 // pred_check_branch
          %804 = sbr.rel (%p802) target = $region60
        $region59: #{vit_forward.1} parent=11 // pred_region
          _
        $region60: #{vit_forward.1} parent=11 // pred_fallthru
          _
        // Predicated region
        $region61: #{vit_forward.1} parent=11 // pred_check
          %p805 = pneg %p371
        $region62: #{vit_forward.1} parent=11 // pred_check_branch
          %807 = sbr.rel (%p805) target = $region64
        $region63: #{vit_forward.1} parent=11 // pred_region
          _
        $region64: #{vit_forward.1} parent=11 // pred_fallthru
          _
        // Predicated region
        $region65: #{vit_forward.1} parent=11 // pred_check
          %p808 = pneg %p392
        $region66: #{vit_forward.1} parent=11 // pred_check_branch
          %810 = sbr.rel (%p808) target = $region68
        $region67: #{vit_forward.1} parent=11 // pred_region
          _
        $region68: #{vit_forward.1} parent=11 // pred_fallthru
          _
        // Predicated region
        $region69: #{vit_forward.1} parent=11 // pred_check
          %p811 = pneg %p413
        $region70: #{vit_forward.1} parent=11 // pred_check_branch
          %813 = sbr.rel (%p811) target = $region72
        $region71: #{vit_forward.1} parent=11 // pred_region
          _
        $region72: #{vit_forward.1} parent=11 // pred_fallthru
          _
        // Predicated region
        $region73: #{vit_forward.1} parent=11 // pred_check
          %p814 = pneg %p434
        $region74: #{vit_forward.1} parent=11 // pred_check_branch
          %816 = sbr.rel (%p814) target = $region76
        $region75: #{vit_forward.1} parent=11 // pred_region
          _
        $region76: #{vit_forward.1} parent=11 // pred_fallthru
          _
        // Predicated region
        $region77: #{vit_forward.1} parent=11 // pred_check
          %p817 = pneg %p455
        $region78: #{vit_forward.1} parent=11 // pred_check_branch
          %819 = sbr.rel (%p817) target = $region80
        $region79: #{vit_forward.1} parent=11 // pred_region
          _
        $region80: #{vit_forward.1} parent=11 // pred_fallthru
          _
        // Predicated region
        $region81: #{vit_forward.1} parent=11 // pred_check
          %p820 = pneg %p476
        $region82: #{vit_forward.1} parent=11 // pred_check_branch
          %822 = sbr.rel (%p820) target = $region84
        $region83: #{vit_forward.1} parent=11 // pred_region
          _
        $region84: #{vit_forward.1} parent=11 // pred_fallthru
          _
        // Predicated region
        $region85: #{vit_forward.1} parent=11 // pred_check
          %p823 = pneg %p497
        $region86: #{vit_forward.1} parent=11 // pred_check_branch
          %825 = sbr.rel (%p823) target = $region88
        $region87: #{vit_forward.1} parent=11 // pred_region
          _
        $region88: #{vit_forward.1} parent=11 // pred_fallthru
          _
        // Predicated region
        $region89: #{vit_forward.1} parent=11 // pred_check
          %p826 = pneg %p518
        $region90: #{vit_forward.1} parent=11 // pred_check_branch
          %828 = sbr.rel (%p826) target = $region92
        $region91: #{vit_forward.1} parent=11 // pred_region
          _
        $region92: #{vit_forward.1} parent=11 // pred_fallthru
          _
        // Predicated region
        $region93: #{vit_forward.1} parent=11 // pred_check
          %p829 = pneg %p539
        $region94: #{vit_forward.1} parent=11 // pred_check_branch
          %831 = sbr.rel (%p829) target = $region96
        $region95: #{vit_forward.1} parent=11 // pred_region
          _
        $region96: #{vit_forward.1} parent=11 // pred_fallthru
          _
        // Predicated region
        $region97: #{vit_forward.1} parent=11 // pred_check
          %p832 = pneg %p560
        $region98: #{vit_forward.1} parent=11 // pred_check_branch
          %834 = sbr.rel (%p832) target = $region100
        $region99: #{vit_forward.1} parent=11 // pred_region
          _
        $region100: #{vit_forward.1} parent=11 // pred_fallthru
          _
        // Predicated region
        $region101: #{vit_forward.1} parent=11 // pred_check
          %p835 = pneg %p581
        $region102: #{vit_forward.1} parent=11 // pred_check_branch
          %837 = sbr.rel (%p835) target = $region104
        $region103: #{vit_forward.1} parent=11 // pred_region
          _
        $region104: #{vit_forward.1} parent=11 // pred_fallthru
          _
        // Predicated region
        $region105: #{vit_forward.1} parent=11 // pred_check
          %p838 = pneg %p602
        $region106: #{vit_forward.1} parent=11 // pred_check_branch
          %840 = sbr.rel (%p838) target = $region108
        $region107: #{vit_forward.1} parent=11 // pred_region
          _
        $region108: #{vit_forward.1} parent=11 // pred_fallthru
          _
        // Predicated region
        $region109: #{vit_forward.1} parent=11 // pred_check
          %p841 = pneg %p623
        $region110: #{vit_forward.1} parent=11 // pred_check_branch
          %843 = sbr.rel (%p841) target = $region112
        $region111: #{vit_forward.1} parent=11 // pred_region
          _
        $region112: #{vit_forward.1} parent=11 // pred_fallthru
          _
        // Predicated region
        $region113: #{vit_forward.1} parent=11 // pred_check
          %p844 = pneg %p644
        $region114: #{vit_forward.1} parent=11 // pred_check_branch
          %846 = sbr.rel (%p844) target = $region116
        $region115: #{vit_forward.1} parent=11 // pred_region
          _
        $region116: #{vit_forward.1} parent=11 // pred_fallthru
          _
        // Predicated region
        $region117: #{vit_forward.1} parent=11 // pred_check
          %p847 = pneg %p665
        $region118: #{vit_forward.1} parent=11 // pred_check_branch
          %849 = sbr.rel (%p847) target = $region120
        $region119: #{vit_forward.1} parent=11 // pred_region
          _
        $region120: #{vit_forward.1} parent=11 // pred_fallthru
          _
        // Predicated region
        $region121: #{vit_forward.1} parent=11 // pred_check
          %p850 = pneg %p686
        $region122: #{vit_forward.1} parent=11 // pred_check_branch
          %852 = sbr.rel (%p850) target = $region124
        $region123: #{vit_forward.1} parent=11 // pred_region
          _
        $region124: #{vit_forward.1} parent=11 // pred_fallthru
          _
        // Predicated region
        $region125: #{vit_forward.1} parent=11 // pred_check
          %p853 = pneg %p707
        $region126: #{vit_forward.1} parent=11 // pred_check_branch
          %855 = sbr.rel (%p853) target = $region128
        $region127: #{vit_forward.1} parent=11 // pred_region
          _
        $region128: #{vit_forward.1} parent=11 // pred_fallthru
          _
        // Predicated region
        $region129: #{vit_forward.1} parent=11 // pred_check
          %p856 = pneg %p728
        $region130: #{vit_forward.1} parent=11 // pred_check_branch
          %858 = sbr.rel (%p856) target = $region132
        $region131: #{vit_forward.1} parent=11 // pred_region
          _
        $region132: #{vit_forward.1} parent=11 // pred_fallthru
          _
      $region12: #{vit_forward.1} parent=5 // pred_fallthru
        _
      %p859 = scmp.lt.s32.totalorder %s72, 2
      // Predicated region
      $region133: #{vit_forward.1} parent=5 // pred_check
        %p860 = pneg %p859
      $region134: #{vit_forward.1} parent=5 // pred_check_branch
        %862 = sbr.rel (%p860) target = $region136
      $region135: #{vit_forward.1} parent=5 // pred_region
        // Predicated region
        $region137: #{vit_forward.1} parent=135 // pred_check
          %p863 = pneg %p92
        $region138: #{vit_forward.1} parent=135 // pred_check_branch
          %865 = sbr.rel (%p863) target = $region140
        $region139: #{vit_forward.1} parent=135 // pred_region
          %p866 = scmp.lt.s32.totalorder %s72, 1
          %s867 = scalar_select %p866, %s72, 1
          %s868 = smul.addr %s867, 6
          %s869 = smul.addr %s868, 8
          %s870 = scalar_lea.vmem %s1, %s869
        $region140: #{vit_forward.1} parent=135 // pred_fallthru
          _
      $region136: #{vit_forward.1} parent=5 // pred_fallthru
        _
      %p871 = scmp.le.s32.totalorder 1, %s72
      %p872 = scmp.lt.s32.totalorder %s72, 3
      %p873 = pnand %p871, %p872
      %p874 = pneg %p873
      // Predicated region
      $region141: #{vit_forward.1} parent=5 // pred_check
        _
      $region142: #{vit_forward.1} parent=5 // pred_check_branch
        %876 = sbr.rel (%p873) target = $region144
      $region143: #{vit_forward.1} parent=5 // pred_region
        %s877 = ssub.s32 %s72, 1
        %p878 = scmp.lt.s32.totalorder %s77, 1
        %s879 = scalar_select %p878, %s77, 1
        %s880 = smul.addr %s879, 6
        %s881 = smul.addr %s880, 8
        %s882 = scalar_lea.vmem %s1, %s881
        %p883 = pneg %p98
        %p884 = pneg %p95
        %p885 = pneg %p119
        %p886 = pneg %p116
        %p887 = pneg %p140
        %p888 = pneg %p137
        %p889 = pneg %p161
        %p890 = pneg %p158
        %p891 = pneg %p182
        %p892 = pneg %p179
        %p893 = pneg %p203
        %p894 = pneg %p200
        %p895 = pneg %p224
        %p896 = pneg %p221
        %p897 = pneg %p245
        %p898 = pneg %p242
        %p899 = pneg %p266
        %p900 = pneg %p263
        %p901 = pneg %p287
        %p902 = pneg %p284
        %p903 = pneg %p308
        %p904 = pneg %p305
        %p905 = pneg %p329
        %p906 = pneg %p326
        %p907 = pneg %p350
        %p908 = pneg %p347
        %p909 = pneg %p371
        %p910 = pneg %p368
        %p911 = pneg %p392
        %p912 = pneg %p389
        %p913 = pneg %p413
        %p914 = pneg %p410
        %p915 = pneg %p434
        %p916 = pneg %p431
        %p917 = pneg %p455
        %p918 = pneg %p452
        %p919 = pneg %p476
        %p920 = pneg %p473
        %p921 = pneg %p497
        %p922 = pneg %p494
        %p923 = pneg %p518
        %p924 = pneg %p515
        %p925 = pneg %p539
        %p926 = pneg %p536
        %p927 = pneg %p560
        %p928 = pneg %p557
        %p929 = pneg %p581
        %p930 = pneg %p578
        %p931 = pneg %p602
        %p932 = pneg %p599
        %p933 = pneg %p623
        %p934 = pneg %p620
        %p935 = pneg %p644
        %p936 = pneg %p641
        %p937 = pneg %p665
        %p938 = pneg %p662
        %p939 = pneg %p686
        %p940 = pneg %p683
        %p941 = pneg %p707
        %p942 = pneg %p704
        %p943 = pneg %p728
        %p944 = pneg %p725
        %p945 = pneg %p754
        %p946 = pneg %p751
        %s947 = sand.u32 %s741, 1
        %s948 = scalar_lea.sflag [#allocation3], %s947
        %s949 = sand.u32 %s741, 1
        %s950 = scalar_lea.vmem [#allocation2], %s949
        %p951 = scmp.lt.s32.totalorder %s77, 1
        %s952 = scalar_select %p951, %s77, 1
        %s953 = smul.addr %s952, 6
        %s954 = smul.addr %s953, 8
        %s955 = scalar_lea.vmem %s1, %s954
        %v956 = vld [vmem:[%s955] sm:$0xff]
        %v957 = vld [vmem:[%s955 + $0x8] sm:$0xff]
        %v958 = vld [vmem:[%s955 + $0x10] sm:$0xff]
        %v959 = vld [vmem:[%s955 + $0x18] sm:$0xff]
        %v960 = vld [vmem:[%s955 + $0x20] sm:$0x1]
        %v961 = vld [vmem:[%s955 + $0x28] sm:$0x1]
        %v962 = vld [vmem:[%s3] sm:$0xff]
        %v963 = vld [vmem:[%s3 + $0x8] sm:$0xff]
        %v964 = vld [vmem:[%s3 + $0x10] sm:$0xff]
        %v965 = vld [vmem:[%s3 + $0x18] sm:$0xff]
        %v966 = vld [vmem:[%s3 + $0x20] sm:$0xff]
        %v967 = vld [vmem:[%s3 + $0x28] sm:$0xff]
        %v968 = vld [vmem:[%s3 + $0x30] sm:$0xff]
        %v969 = vld [vmem:[%s3 + $0x38] sm:$0xff]
        %v970 = vld [vmem:[%s3 + $0x40] sm:$0xff]
        %v971 = vld [vmem:[%s3 + $0x48] sm:$0xff]
        %v972 = vld [vmem:[%s3 + $0x50] sm:$0xff]
        %v973 = vld [vmem:[%s3 + $0x58] sm:$0xff]
        %v974 = vld [vmem:[%s3 + $0x60] sm:$0xff]
        %v975 = vld [vmem:[%s3 + $0x68] sm:$0xff]
        %v976 = vld [vmem:[%s3 + $0x70] sm:$0xff]
        %v977 = vld [vmem:[%s3 + $0x78] sm:$0xff]
        %v978 = vld [vmem:[%s3 + $0x80] sm:$0xff]
        %v979 = vld [vmem:[%s3 + $0x88] sm:$0xff]
        %v980 = vld [vmem:[%s3 + $0x90] sm:$0xff]
        %v981 = vld [vmem:[%s3 + $0x98] sm:$0xff]
        %v982 = vld [vmem:[%s3 + $0xa0] sm:$0xff]
        %v983 = vld [vmem:[%s3 + $0xa8] sm:$0xff]
        %v984 = vld [vmem:[%s3 + $0xb0] sm:$0xff]
        %v985 = vld [vmem:[%s3 + $0xb8] sm:$0xff]
        %v986 = vld [vmem:[%s5] sm:$0xff]
        %v987 = vld [vmem:[%s5 + $0x8] sm:$0xff]
        %v988 = vld [vmem:[%s5 + $0x10] sm:$0x1]
        %vm989 = vcmask 523264
        %v991 = vsel %vm989, %v957, 0
        %v994 = vsel %vm989, %v959, 0
        %v997 = vsel %vm989, %v961, 0
        %999 = vmatprep.subr.mxu0 0.0
        %1000 = vmatpush1.msra.mxu0 %v962
        %1001 = vmatprep.subr.mxu0 0.0
        %1002 = vmatpush1.msra.mxu0 %v963
        %1003 = vmatprep.subr.mxu0 0.0
        %1004 = vmatpush1.msra.mxu0 %v964
        %1005 = vmatprep.subr.mxu0 0.0
        %1006 = vmatpush1.msra.mxu0 %v965
        %1007 = vmatprep.subr.mxu0 0.0
        %1008 = vmatpush1.msra.mxu0 %v966
        %1009 = vmatprep.subr.mxu0 0.0
        %1010 = vmatpush1.msra.mxu0 %v967
        %1011 = vmatprep.subr.mxu0 0.0
        %1012 = vmatpush1.msra.mxu0 %v968
        %1013 = vmatprep.subr.mxu0 0.0
        %1014 = vmatpush1.msra.mxu0 %v969
        %1015 = vmatprep.subr.mxu0 0.0
        %1016 = vmatpush1.msra.mxu0 %v970
        %1017 = vmatprep.subr.mxu0 0.0
        %1018 = vmatpush1.msra.mxu0 %v971
        %1019 = vmatprep.subr.mxu0 0.0
        %1020 = vmatpush1.msra.mxu0 %v972
        %1021 = vmatprep.subr.mxu0 0.0
        %1022 = vmatpush1.msra.mxu0 %v973
        %1023 = vmatprep.subr.mxu0 0.0
        %1024 = vmatpush1.msra.mxu0 %v974
        %1025 = vmatprep.subr.mxu0 0.0
        %1026 = vmatpush1.msra.mxu0 %v975
        %1027 = vmatprep.subr.mxu0 0.0
        %1028 = vmatpush1.msra.mxu0 %v976
        %1029 = vmatprep.subr.mxu0 0.0
        %1030 = vmatpush1.msra.mxu0 %v977
        %1031 = vmatprep.subr.mxu0 0.0
        %1032 = vmatpush1.msra.mxu0 %v978
        %1033 = vmatprep.subr.mxu0 0.0
        %1034 = vmatpush1.msra.mxu0 %v979
        %1035 = vmatprep.subr.mxu0 0.0
        %1036 = vmatpush1.msra.mxu0 %v980
        %1037 = vmatprep.subr.mxu0 0.0
        %1038 = vmatpush1.msra.mxu0 %v981
        %1039 = vmatprep.subr.mxu0 0.0
        %1040 = vmatpush1.msra.mxu0 %v982
        %1041 = vmatprep.subr.mxu0 0.0
        %1042 = vmatpush1.msra.mxu0 %v983
        %1043 = vmatprep.subr.mxu0 0.0
        %1044 = vmatpush1.msra.mxu0 %v984
        %1045 = vmatprep.subr.mxu0 0.0
        %1046 = vmatpush1.msra.mxu0 %v985
        %1047 = vmatprep.subr.mxu0 0.0
        %1048 = vmatpush1.msra.mxu0 0.0
        %1049 = vmatprep.subr.mxu0 0.0
        %1050 = vmatpush1.msra.mxu0 0.0
        %1051 = vmatprep.subr.mxu0 0.0
        %1052 = vmatpush1.msra.mxu0 0.0
        %1053 = vmatprep.subr.mxu0 0.0
        %1054 = vmatpush1.msra.mxu0 0.0
        %1055 = vmatprep.subr.mxu0 0.0
        %1056 = vmatpush1.msra.mxu0 0.0
        %1057 = vmatprep.subr.mxu0 0.0
        %1058 = vmatpush1.msra.mxu0 0.0
        %1059 = vmatprep.subr.mxu0 0.0
        %1060 = vmatpush1.msra.mxu0 0.0
        %1061 = vmatprep.subr.mxu0 0.0
        %1062 = vmatpush1.msra.mxu0 0.0
        %1063 = vmatprep.mubr.f32.mxu0 %v991
        %1064 = vmatmul.mubr.f32.gmra.mrb[0].mxu0 %v956
        %v1065 = vpop.f32.mrb[0].mxu0
        %v1066 = vadd.f32 %v986, %v1065
        %v1067 = vpop.f32.mrb[0].mxu0
        %1068 = vmatprep.mubr.f32.mxu0 %v994
        %1069 = vmatmul.mubr.f32.gmra.mrb[0].mxu0 %v958
        %v1070 = vpop.f32.mrb[0].mxu0
        %v1071 = vadd.f32 %v987, %v1070
        %v1072 = vpop.f32.mrb[0].mxu0
        %1073 = vmatprep.mubr.f32.mxu0 %v997
        %1074 = vmatmul.mubr.f32.gmra.mrb[0].mxu0 %v960
        %v1075 = vpop.f32.mrb[0].mxu0
        %v1076 = vadd.f32 %v988, %v1075
        %v1077 = vpop.f32.mrb[0].mxu0
        %1078 = vdwg.mxu0
        %v1079 = vlaneseq
        %v1080 = vand.u32 %v1079, 127
        %vm1081 = vcmp.ge.s32.totalorder %v1080, 0
        %vm1082 = vcmp.lt.s32.totalorder %v1080, 32
        %vm1083 = vmand %vm1081, %vm1082
        %v1084 = vsel %vm1083, 1, 0
        %v1085 = vcvt.s32.f32 %v1084
        %vm1086 = vcmp.ge.s32.totalorder %v1080, 32
        %vm1087 = vcmp.lt.s32.totalorder %v1080, 64
        %vm1088 = vmand %vm1086, %vm1087
        %v1089 = vsel %vm1088, 1, 0
        %v1090 = vcvt.s32.f32 %v1089
        %vm1091 = vcmp.ge.s32.totalorder %v1080, 64
        %vm1092 = vcmp.lt.s32.totalorder %v1080, 96
        %vm1093 = vmand %vm1091, %vm1092
        %v1094 = vsel %vm1093, 1, 0
        %v1095 = vcvt.s32.f32 %v1094
        %vm1096 = vcmp.ge.s32.totalorder %v1080, 96
        %vm1097 = vcmp.lt.s32.totalorder %v1080, 128
        %vm1098 = vmand %vm1096, %vm1097
        %v1099 = vsel %vm1098, 1, 0
        %v1100 = vcvt.s32.f32 %v1099
        %v1101 = vld [vmem:[%s7] sm:$0x1]
        %v1102 = vld [vmem:[%s9] sm:$0x1]
        %1103 = vadd.xlane.f32.xlu0 %v1066
        %v1104 = vpop.xlane.xlu0 %1103
        %1105 = vadd.xlane.f32.xlu0 %v1071
        %v1106 = vpop.xlane.xlu0 %1105
        %vm1107 = vcmask 1040384
        %v1108 = vsel %vm1107, %v1076, 0.0
        %1109 = vadd.xlane.f32.xlu0 %v1108
        %v1110 = vpop.xlane.xlu0 %1109
        %v1111 = vrcp.pop 128.0
        %v1112 = vmul.f32 %v1104, %v1111
        %v1113 = vmul.f32 %v1106, %v1111
        %v1114 = vmul.f32 %v1110, %v1111
        %v1115 = vsub.f32 %v1066, %v1112
        %v1116 = vsub.f32 %v1071, %v1113
        %v1117 = vsub.f32 %v1076, %v1114
        %v1118 = vmul.f32 %v1115, %v1115
        %v1119 = vmul.f32 %v1116, %v1116
        %v1120 = vmul.f32 %v1117, %v1117
        %1121 = vadd.xlane.f32.xlu0 %v1118
        %v1122 = vpop.xlane.xlu0 %1121
        %1123 = vadd.xlane.f32.xlu0 %v1119
        %v1124 = vpop.xlane.xlu0 %1123
        %v1125 = vsel %vm1107, %v1120, 0.0
        %1126 = vadd.xlane.f32.xlu0 %v1125
        %v1127 = vpop.xlane.xlu0 %1126
        %v1128 = vmul.f32 %v1122, %v1111
        %v1129 = vmul.f32 %v1124, %v1111
        %v1130 = vmul.f32 %v1127, %v1111
        %v1131 = vadd.f32 %v1128, 1e-05
        %v1132 = vadd.f32 %v1129, 1e-05
        %v1133 = vadd.f32 %v1130, 1e-05
        %v1134 = vrsqrt.pop %v1131
        %v1135 = vrsqrt.pop %v1132
        %v1136 = vrsqrt.pop %v1133
        %v1137 = vmul.f32 %v1115, %v1134
        %v1138 = vmul.f32 %v1116, %v1135
        %v1139 = vmul.f32 %v1117, %v1136
        %v1141 = vlaneseq
        %v1142 = vshrl.u32 %v1141, 7
        %v1143 = vsub.s32 0, %v1142
        %v1144 = vrot.slane %v1101, %v1143
        %v1146 = vmul.f32 %v1137, %v1144
        %v1147 = vmul.f32 %v1138, %v1144
        %v1148 = vmul.f32 %v1139, %v1144
        %v1150 = vlaneseq
        %v1151 = vshrl.u32 %v1150, 7
        %v1152 = vsub.s32 0, %v1151
        %v1153 = vrot.slane %v1102, %v1152
        %v1155 = vadd.f32 %v1146, %v1153
        %v1156 = vadd.f32 %v1147, %v1153
        %v1157 = vadd.f32 %v1148, %v1153
        %v1158 = vld [vmem:[%s11] sm:$0xff]
        %v1159 = vld [vmem:[%s11 + $0x8] sm:$0xff]
        %v1160 = vld [vmem:[%s11 + $0x10] sm:$0xff]
        %v1161 = vld [vmem:[%s11 + $0x18] sm:$0xff]
        %v1162 = vld [vmem:[%s11 + $0x20] sm:$0xff]
        %v1163 = vld [vmem:[%s11 + $0x28] sm:$0xff]
        %v1164 = vld [vmem:[%s11 + $0x30] sm:$0xff]
        %v1165 = vld [vmem:[%s11 + $0x38] sm:$0xff]
        %v1166 = vld [vmem:[%s11 + $0x40] sm:$0xff]
        %v1167 = vld [vmem:[%s11 + $0x48] sm:$0xff]
        %v1168 = vld [vmem:[%s11 + $0x50] sm:$0xff]
        %v1169 = vld [vmem:[%s11 + $0x58] sm:$0xff]
        %v1170 = vld [vmem:[%s11 + $0x60] sm:$0xff]
        %v1171 = vld [vmem:[%s11 + $0x68] sm:$0xff]
        %v1172 = vld [vmem:[%s11 + $0x70] sm:$0xff]
        %v1173 = vld [vmem:[%s11 + $0x78] sm:$0xff]
        %v1174 = vld [vmem:[%s11 + $0x80] sm:$0xff]
        %v1175 = vld [vmem:[%s11 + $0x88] sm:$0xff]
        %v1176 = vld [vmem:[%s11 + $0x90] sm:$0xff]
        %v1177 = vld [vmem:[%s11 + $0x98] sm:$0xff]
        %v1178 = vld [vmem:[%s11 + $0xa0] sm:$0xff]
        %v1179 = vld [vmem:[%s11 + $0xa8] sm:$0xff]
        %v1180 = vld [vmem:[%s11 + $0xb0] sm:$0xff]
        %v1181 = vld [vmem:[%s11 + $0xb8] sm:$0xff]
        %v1182 = vld [vmem:[%s11 + $0xc0] sm:$0xff]
        %v1183 = vld [vmem:[%s11 + $0xc8] sm:$0xff]
        %v1184 = vld [vmem:[%s11 + $0xd0] sm:$0xff]
        %v1185 = vld [vmem:[%s11 + $0xd8] sm:$0xff]
        %v1186 = vld [vmem:[%s11 + $0xe0] sm:$0xff]
        %v1187 = vld [vmem:[%s11 + $0xe8] sm:$0xff]
        %v1188 = vld [vmem:[%s11 + $0xf0] sm:$0xff]
        %v1189 = vld [vmem:[%s11 + $0xf8] sm:$0xff]
        %v1190 = vld [vmem:[%s11 + $0x100] sm:$0xff]
        %v1191 = vld [vmem:[%s11 + $0x108] sm:$0xff]
        %v1192 = vld [vmem:[%s11 + $0x110] sm:$0xff]
        %v1193 = vld [vmem:[%s11 + $0x118] sm:$0xff]
        %v1194 = vld [vmem:[%s11 + $0x120] sm:$0xff]
        %v1195 = vld [vmem:[%s11 + $0x128] sm:$0xff]
        %v1196 = vld [vmem:[%s11 + $0x130] sm:$0xff]
        %v1197 = vld [vmem:[%s11 + $0x138] sm:$0xff]
        %v1198 = vld [vmem:[%s11 + $0x140] sm:$0xff]
        %v1199 = vld [vmem:[%s11 + $0x148] sm:$0xff]
        %v1200 = vld [vmem:[%s11 + $0x150] sm:$0xff]
        %v1201 = vld [vmem:[%s11 + $0x158] sm:$0xff]
        %v1202 = vld [vmem:[%s11 + $0x160] sm:$0xff]
        %v1203 = vld [vmem:[%s11 + $0x168] sm:$0xff]
        %v1204 = vld [vmem:[%s11 + $0x170] sm:$0xff]
        %v1205 = vld [vmem:[%s11 + $0x178] sm:$0xff]
        %v1206 = vld [vmem:[%s13] sm:$0x7]
        %v1208 = vlaneseq
        %v1209 = vshrl.u32 %v1208, 7
        %v1210 = vsub.s32 0, %v1209
        %v1211 = vrot.slane %v1206, %v1210
        %v1212 = vlaneseq
        %v1213 = vshrl.u32 %v1212, 7
        %v1214 = vsub.s32 1, %v1213
        %v1215 = vrot.slane %v1206, %v1214
        %v1216 = vlaneseq
        %v1217 = vshrl.u32 %v1216, 7
        %v1218 = vsub.s32 2, %v1217
        %v1219 = vrot.slane %v1206, %v1218
        %1223 = vmatprep.subr.mxu0 %v1159
        %1224 = vmatpush1.msra.mxu0 %v1158
        %1225 = vmatprep.subr.mxu0 %v1162
        %1226 = vmatpush1.msra.mxu0 %v1161
        %1227 = vmatprep.subr.mxu0 %v1165
        %1228 = vmatpush1.msra.mxu0 %v1164
        %1229 = vmatprep.subr.mxu0 %v1168
        %1230 = vmatpush1.msra.mxu0 %v1167
        %1231 = vmatprep.subr.mxu0 %v1171
        %1232 = vmatpush1.msra.mxu0 %v1170
        %1233 = vmatprep.subr.mxu0 %v1174
        %1234 = vmatpush1.msra.mxu0 %v1173
        %1235 = vmatprep.subr.mxu0 %v1177
        %1236 = vmatpush1.msra.mxu0 %v1176
        %1237 = vmatprep.subr.mxu0 %v1180
        %1238 = vmatpush1.msra.mxu0 %v1179
        %1239 = vmatprep.subr.mxu0 %v1183
        %1240 = vmatpush1.msra.mxu0 %v1182
        %1241 = vmatprep.subr.mxu0 %v1186
        %1242 = vmatpush1.msra.mxu0 %v1185
        %1243 = vmatprep.subr.mxu0 %v1189
        %1244 = vmatpush1.msra.mxu0 %v1188
        %1245 = vmatprep.subr.mxu0 %v1192
        %1246 = vmatpush1.msra.mxu0 %v1191
        %1247 = vmatprep.subr.mxu0 %v1195
        %1248 = vmatpush1.msra.mxu0 %v1194
        %1249 = vmatprep.subr.mxu0 %v1198
        %1250 = vmatpush1.msra.mxu0 %v1197
        %1251 = vmatprep.subr.mxu0 %v1201
        %1252 = vmatpush1.msra.mxu0 %v1200
        %1253 = vmatprep.subr.mxu0 %v1204
        %1254 = vmatpush1.msra.mxu0 %v1203
        %1255 = vmatprep.subr.mxu0 0.0
        %1256 = vmatpush1.msra.mxu0 0.0
        %1257 = vmatprep.subr.mxu0 0.0
        %1258 = vmatpush1.msra.mxu0 0.0
        %1259 = vmatprep.subr.mxu0 0.0
        %1260 = vmatpush1.msra.mxu0 0.0
        %1261 = vmatprep.subr.mxu0 0.0
        %1262 = vmatpush1.msra.mxu0 0.0
        %1263 = vmatprep.subr.mxu0 0.0
        %1264 = vmatpush1.msra.mxu0 0.0
        %1265 = vmatprep.subr.mxu0 0.0
        %1266 = vmatpush1.msra.mxu0 0.0
        %1267 = vmatprep.subr.mxu0 0.0
        %1268 = vmatpush1.msra.mxu0 0.0
        %1269 = vmatprep.subr.mxu0 0.0
        %1270 = vmatpush1.msra.mxu0 0.0
        %1271 = vmatprep.subr.mxu0 0.0
        %1272 = vmatpush1.msra.mxu0 0.0
        %1273 = vmatprep.subr.mxu0 0.0
        %1274 = vmatpush1.msra.mxu0 0.0
        %1275 = vmatprep.subr.mxu0 0.0
        %1276 = vmatpush1.msra.mxu0 0.0
        %1277 = vmatprep.subr.mxu0 0.0
        %1278 = vmatpush1.msra.mxu0 0.0
        %1279 = vmatprep.subr.mxu0 0.0
        %1280 = vmatpush1.msra.mxu0 0.0
        %1281 = vmatprep.subr.mxu0 0.0
        %1282 = vmatpush1.msra.mxu0 0.0
        %1283 = vmatprep.subr.mxu0 0.0
        %1284 = vmatpush1.msra.mxu0 0.0
        %1285 = vmatprep.subr.mxu0 0.0
        %1286 = vmatpush1.msra.mxu0 0.0
        %1287 = vmatprep.mubr.f32.mxu0 0.0
        %1288 = vmatmul.mubr.f32.gmra.mrb[0].mxu0 %v1155
        %v1289 = vpop.f32.mrb[0].mxu0
        %v1290 = vadd.f32 %v1211, %v1289
        %v1291 = vpop.f32.mrb[0].mxu0
        %v1292 = vadd.f32 %v1215, %v1291
        %1293 = vmatprep.mubr.f32.mxu0 0.0
        %1294 = vmatmul.mubr.f32.gmra.mrb[0].mxu0 %v1156
        %v1295 = vpop.f32.mrb[0].mxu0
        %v1296 = vadd.f32 %v1211, %v1295
        %v1297 = vpop.f32.mrb[0].mxu0
        %v1298 = vadd.f32 %v1215, %v1297
        %1299 = vmatprep.mubr.f32.mxu0 0.0
        %1300 = vmatmul.mubr.f32.gmra.mrb[0].mxu0 %v1157
        %v1301 = vpop.f32.mrb[0].mxu0
        %v1302 = vadd.f32 %v1211, %v1301
        %v1303 = vpop.f32.mrb[0].mxu0
        %v1304 = vadd.f32 %v1215, %v1303
        %1305 = vdwg.mxu0
        %1306 = vmatprep.subr.mxu0 0.0
        %1307 = vmatpush1.msra.mxu0 %v1160
        %1308 = vmatprep.subr.mxu0 0.0
        %1309 = vmatpush1.msra.mxu0 %v1163
        %1310 = vmatprep.subr.mxu0 0.0
        %1311 = vmatpush1.msra.mxu0 %v1166
        %1312 = vmatprep.subr.mxu0 0.0
        %1313 = vmatpush1.msra.mxu0 %v1169
        %1314 = vmatprep.subr.mxu0 0.0
        %1315 = vmatpush1.msra.mxu0 %v1172
        %1316 = vmatprep.subr.mxu0 0.0
        %1317 = vmatpush1.msra.mxu0 %v1175
        %1318 = vmatprep.subr.mxu0 0.0
        %1319 = vmatpush1.msra.mxu0 %v1178
        %1320 = vmatprep.subr.mxu0 0.0
        %1321 = vmatpush1.msra.mxu0 %v1181
        %1322 = vmatprep.subr.mxu0 0.0
        %1323 = vmatpush1.msra.mxu0 %v1184
        %1324 = vmatprep.subr.mxu0 0.0
        %1325 = vmatpush1.msra.mxu0 %v1187
        %1326 = vmatprep.subr.mxu0 0.0
        %1327 = vmatpush1.msra.mxu0 %v1190
        %1328 = vmatprep.subr.mxu0 0.0
        %1329 = vmatpush1.msra.mxu0 %v1193
        %1330 = vmatprep.subr.mxu0 0.0
        %1331 = vmatpush1.msra.mxu0 %v1196
        %1332 = vmatprep.subr.mxu0 0.0
        %1333 = vmatpush1.msra.mxu0 %v1199
        %1334 = vmatprep.subr.mxu0 0.0
        %1335 = vmatpush1.msra.mxu0 %v1202
        %1336 = vmatprep.subr.mxu0 0.0
        %1337 = vmatpush1.msra.mxu0 %v1205
        %1338 = vmatprep.subr.mxu0 0.0
        %1339 = vmatpush1.msra.mxu0 0.0
        %1340 = vmatprep.subr.mxu0 0.0
        %1341 = vmatpush1.msra.mxu0 0.0
        %1342 = vmatprep.subr.mxu0 0.0
        %1343 = vmatpush1.msra.mxu0 0.0
        %1344 = vmatprep.subr.mxu0 0.0
        %1345 = vmatpush1.msra.mxu0 0.0
        %1346 = vmatprep.subr.mxu0 0.0
        %1347 = vmatpush1.msra.mxu0 0.0
        %1348 = vmatprep.subr.mxu0 0.0
        %1349 = vmatpush1.msra.mxu0 0.0
        %1350 = vmatprep.subr.mxu0 0.0
        %1351 = vmatpush1.msra.mxu0 0.0
        %1352 = vmatprep.subr.mxu0 0.0
        %1353 = vmatpush1.msra.mxu0 0.0
        %1354 = vmatprep.subr.mxu0 0.0
        %1355 = vmatpush1.msra.mxu0 0.0
        %1356 = vmatprep.subr.mxu0 0.0
        %1357 = vmatpush1.msra.mxu0 0.0
        %1358 = vmatprep.subr.mxu0 0.0
        %1359 = vmatpush1.msra.mxu0 0.0
        %1360 = vmatprep.subr.mxu0 0.0
        %1361 = vmatpush1.msra.mxu0 0.0
        %1362 = vmatprep.subr.mxu0 0.0
        %1363 = vmatpush1.msra.mxu0 0.0
        %1364 = vmatprep.subr.mxu0 0.0
        %1365 = vmatpush1.msra.mxu0 0.0
        %1366 = vmatprep.subr.mxu0 0.0
        %1367 = vmatpush1.msra.mxu0 0.0
        %1368 = vmatprep.subr.mxu0 0.0
        %1369 = vmatpush1.msra.mxu0 0.0
        %1370 = vmatprep.mubr.f32.mxu0 0.0
        %1371 = vmatmul.mubr.f32.gmra.mrb[0].mxu0 %v1155
        %v1372 = vpop.f32.mrb[0].mxu0
        %v1373 = vadd.f32 %v1219, %v1372
        %v1374 = vpop.f32.mrb[0].mxu0
        %1375 = vmatprep.mubr.f32.mxu0 0.0
        %1376 = vmatmul.mubr.f32.gmra.mrb[0].mxu0 %v1156
        %v1377 = vpop.f32.mrb[0].mxu0
        %v1378 = vadd.f32 %v1219, %v1377
        %v1379 = vpop.f32.mrb[0].mxu0
        %1380 = vmatprep.mubr.f32.mxu0 0.0
        %1381 = vmatmul.mubr.f32.gmra.mrb[0].mxu0 %v1157
        %v1382 = vpop.f32.mrb[0].mxu0
        %v1383 = vadd.f32 %v1219, %v1382
        %v1384 = vpop.f32.mrb[0].mxu0
        %1385 = vdwg.mxu0
        %v1386 = vmul.f32 %v1085, 0.17677669
        %v1387 = vmul.f32 %v1290, %v1386
        %v1388 = vmul.f32 %v1296, %v1386
        %v1389 = vmul.f32 %v1302, %v1386
        %1390 = vmatprep.subr.mxu0 0.0
        %1391 = vmatpush1.xpose.msra.mxu0 %v1292
        %1392 = vmatprep.subr.mxu0 0.0
        %1393 = vmatpush1.xpose.msra.mxu0 %v1298
        %1394 = vmatprep.subr.mxu0 0.0
        %1395 = vmatpush1.xpose.msra.mxu0 %v1304
        %1396 = vmatprep.subr.mxu0 0.0
        %1397 = vmatpush1.xpose.msra.mxu0 0.0
        %1398 = vmatprep.subr.mxu0 0.0
        %1399 = vmatpush1.xpose.msra.mxu0 0.0
        %1400 = vmatprep.subr.mxu0 0.0
        %1401 = vmatpush1.xpose.msra.mxu0 0.0
        %1402 = vmatprep.subr.mxu0 0.0
        %1403 = vmatpush1.xpose.msra.mxu0 0.0
        %1404 = vmatprep.subr.mxu0 0.0
        %1405 = vmatpush1.xpose.msra.mxu0 0.0
        %1406 = vmatprep.subr.mxu0 0.0
        %1407 = vmatpush1.xpose.msra.mxu0 0.0
        %1408 = vmatprep.subr.mxu0 0.0
        %1409 = vmatpush1.xpose.msra.mxu0 0.0
        %1410 = vmatprep.subr.mxu0 0.0
        %1411 = vmatpush1.xpose.msra.mxu0 0.0
        %1412 = vmatprep.subr.mxu0 0.0
        %1413 = vmatpush1.xpose.msra.mxu0 0.0
        %1414 = vmatprep.subr.mxu0 0.0
        %1415 = vmatpush1.xpose.msra.mxu0 0.0
        %1416 = vmatprep.subr.mxu0 0.0
        %1417 = vmatpush1.xpose.msra.mxu0 0.0
        %1418 = vmatprep.subr.mxu0 0.0
        %1419 = vmatpush1.xpose.msra.mxu0 0.0
        %1420 = vmatprep.subr.mxu0 0.0
        %1421 = vmatpush1.xpose.msra.mxu0 0.0
        %1422 = vmatprep.subr.mxu0 0.0
        %1423 = vmatpush1.xpose.msra.mxu0 0.0
        %1424 = vmatprep.subr.mxu0 0.0
        %1425 = vmatpush1.xpose.msra.mxu0 0.0
        %1426 = vmatprep.subr.mxu0 0.0
        %1427 = vmatpush1.xpose.msra.mxu0 0.0
        %1428 = vmatprep.subr.mxu0 0.0
        %1429 = vmatpush1.xpose.msra.mxu0 0.0
        %1430 = vmatprep.subr.mxu0 0.0
        %1431 = vmatpush1.xpose.msra.mxu0 0.0
        %1432 = vmatprep.subr.mxu0 0.0
        %1433 = vmatpush1.xpose.msra.mxu0 0.0
        %1434 = vmatprep.subr.mxu0 0.0
        %1435 = vmatpush1.xpose.msra.mxu0 0.0
        %1436 = vmatprep.subr.mxu0 0.0
        %1437 = vmatpush1.xpose.msra.mxu0 0.0
        %1438 = vmatprep.subr.mxu0 0.0
        %1439 = vmatpush1.xpose.msra.mxu0 0.0
        %1440 = vmatprep.subr.mxu0 0.0
        %1441 = vmatpush1.xpose.msra.mxu0 0.0
        %1442 = vmatprep.subr.mxu0 0.0
        %1443 = vmatpush1.xpose.msra.mxu0 0.0
        %1444 = vmatprep.subr.mxu0 0.0
        %1445 = vmatpush1.xpose.msra.mxu0 0.0
        %1446 = vmatprep.subr.mxu0 0.0
        %1447 = vmatpush1.xpose.msra.mxu0 0.0
        %1448 = vmatprep.subr.mxu0 0.0
        %1449 = vmatpush1.xpose.msra.mxu0 0.0
        %1450 = vmatprep.subr.mxu0 0.0
        %1451 = vmatpush1.xpose.msra.mxu0 0.0
        %1452 = vmatprep.subr.mxu0 0.0
        %1453 = vmatpush1.xpose.msra.mxu0 0.0
        %1454 = vmatprep.mubr.f32.mxu0 0.0
        %1455 = vmatmul.mubr.f32.gmra.mrb[0].mxu0 %v1387
        %v1456 = vpop.f32.mrb[0].mxu0
        %v1457 = vadd.f32 0.0, %v1456
        %v1458 = vpop.f32.mrb[0].mxu0
        %1459 = vmatprep.mubr.f32.mxu0 0.0
        %1460 = vmatmul.mubr.f32.gmra.mrb[0].mxu0 %v1388
        %v1461 = vpop.f32.mrb[0].mxu0
        %v1462 = vadd.f32 0.0, %v1461
        %v1463 = vpop.f32.mrb[0].mxu0
        %1464 = vmatprep.mubr.f32.mxu0 0.0
        %1465 = vmatmul.mubr.f32.gmra.mrb[0].mxu0 %v1389
        %v1466 = vpop.f32.mrb[0].mxu0
        %v1467 = vadd.f32 0.0, %v1466
        %v1468 = vpop.f32.mrb[0].mxu0
        %1469 = vdwg.mxu0
        %vm1470 = vcmask 138240
        %v1471 = vsel %vm1470, %v1457, -inf
        %1472 = vmax.xlane.f32.xlu0 %v1471
        %v1473 = vpop.xlane.xlu0 %1472
        %v1474 = vsel %vm1470, %v1462, -inf
        %1475 = vmax.xlane.f32.xlu0 %v1474
        %v1476 = vpop.xlane.xlu0 %1475
        %vm1477 = vcmask 131072
        %v1478 = vsel %vm1477, %v1467, -inf
        %1479 = vmax.xlane.f32.xlu0 %v1478
        %v1480 = vpop.xlane.xlu0 %1479
        %v1481 = vsub.f32 %v1457, %v1473
        %v1482 = vsub.f32 %v1462, %v1476
        %v1483 = vsub.f32 %v1467, %v1480
        %v1484 = vmul.f32 %v1481, 1.442695
        %v1485 = vpow.pop %v1484
        %v1486 = vmul.f32 %v1482, 1.442695
        %v1487 = vpow.pop %v1486
        %v1488 = vmul.f32 %v1483, 1.442695
        %v1489 = vpow.pop %v1488
        %v1490 = vsel %vm1470, %v1485, 0.0
        %1491 = vadd.xlane.f32.xlu0 %v1490
        %v1492 = vpop.xlane.xlu0 %1491
        %v1493 = vsel %vm1470, %v1487, 0.0
        %1494 = vadd.xlane.f32.xlu0 %v1493
        %v1495 = vpop.xlane.xlu0 %1494
        %v1496 = vsel %vm1477, %v1489, 0.0
        %1497 = vadd.xlane.f32.xlu0 %v1496
        %v1498 = vpop.xlane.xlu0 %1497
        %v1499 = vrcp.pop %v1492
        %v1500 = vmul.f32 %v1485, %v1499
        %v1501 = vrcp.pop %v1495
        %v1502 = vmul.f32 %v1487, %v1501
        %v1503 = vrcp.pop %v1498
        %v1504 = vmul.f32 %v1489, %v1503
        %v1505 = vmul.f32 %v1373, %v1085
        %v1506 = vmul.f32 %v1378, %v1085
        %v1507 = vmul.f32 %v1383, %v1085
        %v1508 = vmul.f32 %v1090, 0.17677669
        %v1509 = vmul.f32 %v1290, %v1508
        %v1510 = vmul.f32 %v1296, %v1508
        %v1511 = vmul.f32 %v1302, %v1508
        %1512 = vmatprep.subr.mxu0 0.0
        %1513 = vmatpush1.xpose.msra.mxu0 %v1292
        %1514 = vmatprep.subr.mxu0 0.0
        %1515 = vmatpush1.xpose.msra.mxu0 %v1298
        %1516 = vmatprep.subr.mxu0 0.0
        %1517 = vmatpush1.xpose.msra.mxu0 %v1304
        %1518 = vmatprep.subr.mxu0 0.0
        %1519 = vmatpush1.xpose.msra.mxu0 0.0
        %1520 = vmatprep.subr.mxu0 0.0
        %1521 = vmatpush1.xpose.msra.mxu0 0.0
        %1522 = vmatprep.subr.mxu0 0.0
        %1523 = vmatpush1.xpose.msra.mxu0 0.0
        %1524 = vmatprep.subr.mxu0 0.0
        %1525 = vmatpush1.xpose.msra.mxu0 0.0
        %1526 = vmatprep.subr.mxu0 0.0
        %1527 = vmatpush1.xpose.msra.mxu0 0.0
        %1528 = vmatprep.subr.mxu0 0.0
        %1529 = vmatpush1.xpose.msra.mxu0 0.0
        %1530 = vmatprep.subr.mxu0 0.0
        %1531 = vmatpush1.xpose.msra.mxu0 0.0
        %1532 = vmatprep.subr.mxu0 0.0
        %1533 = vmatpush1.xpose.msra.mxu0 0.0
        %1534 = vmatprep.subr.mxu0 0.0
        %1535 = vmatpush1.xpose.msra.mxu0 0.0
        %1536 = vmatprep.subr.mxu0 0.0
        %1537 = vmatpush1.xpose.msra.mxu0 0.0
        %1538 = vmatprep.subr.mxu0 0.0
        %1539 = vmatpush1.xpose.msra.mxu0 0.0
        %1540 = vmatprep.subr.mxu0 0.0
        %1541 = vmatpush1.xpose.msra.mxu0 0.0
        %1542 = vmatprep.subr.mxu0 0.0
        %1543 = vmatpush1.xpose.msra.mxu0 0.0
        %1544 = vmatprep.subr.mxu0 0.0
        %1545 = vmatpush1.xpose.msra.mxu0 0.0
        %1546 = vmatprep.subr.mxu0 0.0
        %1547 = vmatpush1.xpose.msra.mxu0 0.0
        %1548 = vmatprep.subr.mxu0 0.0
        %1549 = vmatpush1.xpose.msra.mxu0 0.0
        %1550 = vmatprep.subr.mxu0 0.0
        %1551 = vmatpush1.xpose.msra.mxu0 0.0
        %1552 = vmatprep.subr.mxu0 0.0
        %1553 = vmatpush1.xpose.msra.mxu0 0.0
        %1554 = vmatprep.subr.mxu0 0.0
        %1555 = vmatpush1.xpose.msra.mxu0 0.0
        %1556 = vmatprep.subr.mxu0 0.0
        %1557 = vmatpush1.xpose.msra.mxu0 0.0
        %1558 = vmatprep.subr.mxu0 0.0
        %1559 = vmatpush1.xpose.msra.mxu0 0.0
        %1560 = vmatprep.subr.mxu0 0.0
        %1561 = vmatpush1.xpose.msra.mxu0 0.0
        %1562 = vmatprep.subr.mxu0 0.0
        %1563 = vmatpush1.xpose.msra.mxu0 0.0
        %1564 = vmatprep.subr.mxu0 0.0
        %1565 = vmatpush1.xpose.msra.mxu0 0.0
        %1566 = vmatprep.subr.mxu0 0.0
        %1567 = vmatpush1.xpose.msra.mxu0 0.0
        %1568 = vmatprep.subr.mxu0 0.0
        %1569 = vmatpush1.xpose.msra.mxu0 0.0
        %1570 = vmatprep.subr.mxu0 0.0
        %1571 = vmatpush1.xpose.msra.mxu0 0.0
        %1572 = vmatprep.subr.mxu0 0.0
        %1573 = vmatpush1.xpose.msra.mxu0 0.0
        %1574 = vmatprep.subr.mxu0 0.0
        %1575 = vmatpush1.xpose.msra.mxu0 0.0
        %1576 = vmatprep.mubr.f32.mxu0 0.0
        %1577 = vmatmul.mubr.f32.gmra.mrb[0].mxu0 %v1509
        %v1578 = vpop.f32.mrb[0].mxu0
        %v1579 = vadd.f32 0.0, %v1578
        %v1580 = vpop.f32.mrb[0].mxu0
        %1581 = vmatprep.mubr.f32.mxu0 0.0
        %1582 = vmatmul.mubr.f32.gmra.mrb[0].mxu0 %v1510
        %v1583 = vpop.f32.mrb[0].mxu0
        %v1584 = vadd.f32 0.0, %v1583
        %v1585 = vpop.f32.mrb[0].mxu0
        %1586 = vmatprep.mubr.f32.mxu0 0.0
        %1587 = vmatmul.mubr.f32.gmra.mrb[0].mxu0 %v1511
        %v1588 = vpop.f32.mrb[0].mxu0
        %v1589 = vadd.f32 0.0, %v1588
        %v1590 = vpop.f32.mrb[0].mxu0
        %1591 = vdwg.mxu0
        %v1592 = vsel %vm1470, %v1579, -inf
        %1593 = vmax.xlane.f32.xlu0 %v1592
        %v1594 = vpop.xlane.xlu0 %1593
        %v1595 = vsel %vm1470, %v1584, -inf
        %1596 = vmax.xlane.f32.xlu0 %v1595
        %v1597 = vpop.xlane.xlu0 %1596
        %v1598 = vsel %vm1477, %v1589, -inf
        %1599 = vmax.xlane.f32.xlu0 %v1598
        %v1600 = vpop.xlane.xlu0 %1599
        %v1601 = vsub.f32 %v1579, %v1594
        %v1602 = vsub.f32 %v1584, %v1597
        %v1603 = vsub.f32 %v1589, %v1600
        %v1604 = vmul.f32 %v1601, 1.442695
        %v1605 = vpow.pop %v1604
        %v1606 = vmul.f32 %v1602, 1.442695
        %v1607 = vpow.pop %v1606
        %v1608 = vmul.f32 %v1603, 1.442695
        %v1609 = vpow.pop %v1608
        %v1610 = vsel %vm1470, %v1605, 0.0
        %1611 = vadd.xlane.f32.xlu0 %v1610
        %v1612 = vpop.xlane.xlu0 %1611
        %v1613 = vsel %vm1470, %v1607, 0.0
        %1614 = vadd.xlane.f32.xlu0 %v1613
        %v1615 = vpop.xlane.xlu0 %1614
        %v1616 = vsel %vm1477, %v1609, 0.0
        %1617 = vadd.xlane.f32.xlu0 %v1616
        %v1618 = vpop.xlane.xlu0 %1617
        %v1619 = vrcp.pop %v1612
        %v1620 = vmul.f32 %v1605, %v1619
        %v1621 = vrcp.pop %v1615
        %v1622 = vmul.f32 %v1607, %v1621
        %v1623 = vrcp.pop %v1618
        %v1624 = vmul.f32 %v1609, %v1623
        %v1625 = vmul.f32 %v1373, %v1090
        %v1626 = vmul.f32 %v1378, %v1090
        %v1627 = vmul.f32 %v1383, %v1090
        %v1629 = vsel %vm1470, %v1620, 0
        %v1632 = vsel %vm1470, %v1622, 0
        %v1635 = vsel %vm1470, %v1624, 0
        %v1638 = vsel %vm1107, %v1627, 0
        %1640 = vmatprep.subr.mxu0 0.0
        %1641 = vmatpush1.msra.mxu0 %v1625
        %1642 = vmatprep.subr.mxu0 0.0
        %1643 = vmatpush1.msra.mxu0 %v1626
        %1644 = vmatprep.subr.mxu0 0.0
        %1645 = vmatpush1.msra.mxu0 %v1638
        %1646 = vmatprep.subr.mxu0 0.0
        %1647 = vmatpush1.msra.mxu0 0.0
        %1648 = vmatprep.subr.mxu0 0.0
        %1649 = vmatpush1.msra.mxu0 0.0
        %1650 = vmatprep.subr.mxu0 0.0
        %1651 = vmatpush1.msra.mxu0 0.0
        %1652 = vmatprep.subr.mxu0 0.0
        %1653 = vmatpush1.msra.mxu0 0.0
        %1654 = vmatprep.subr.mxu0 0.0
        %1655 = vmatpush1.msra.mxu0 0.0
        %1656 = vmatprep.subr.mxu0 0.0
        %1657 = vmatpush1.msra.mxu0 0.0
        %1658 = vmatprep.subr.mxu0 0.0
        %1659 = vmatpush1.msra.mxu0 0.0
        %1660 = vmatprep.subr.mxu0 0.0
        %1661 = vmatpush1.msra.mxu0 0.0
        %1662 = vmatprep.subr.mxu0 0.0
        %1663 = vmatpush1.msra.mxu0 0.0
        %1664 = vmatprep.subr.mxu0 0.0
        %1665 = vmatpush1.msra.mxu0 0.0
        %1666 = vmatprep.subr.mxu0 0.0
        %1667 = vmatpush1.msra.mxu0 0.0
        %1668 = vmatprep.subr.mxu0 0.0
        %1669 = vmatpush1.msra.mxu0 0.0
        %1670 = vmatprep.subr.mxu0 0.0
        %1671 = vmatpush1.msra.mxu0 0.0
        %1672 = vmatprep.subr.mxu0 0.0
        %1673 = vmatpush1.msra.mxu0 0.0
        %1674 = vmatprep.subr.mxu0 0.0
        %1675 = vmatpush1.msra.mxu0 0.0
        %1676 = vmatprep.subr.mxu0 0.0
        %1677 = vmatpush1.msra.mxu0 0.0
        %1678 = vmatprep.subr.mxu0 0.0
        %1679 = vmatpush1.msra.mxu0 0.0
        %1680 = vmatprep.subr.mxu0 0.0
        %1681 = vmatpush1.msra.mxu0 0.0
        %1682 = vmatprep.subr.mxu0 0.0
        %1683 = vmatpush1.msra.mxu0 0.0
        %1684 = vmatprep.subr.mxu0 0.0
        %1685 = vmatpush1.msra.mxu0 0.0
        %1686 = vmatprep.subr.mxu0 0.0
        %1687 = vmatpush1.msra.mxu0 0.0
        %1688 = vmatprep.subr.mxu0 0.0
        %1689 = vmatpush1.msra.mxu0 0.0
        %1690 = vmatprep.subr.mxu0 0.0
        %1691 = vmatpush1.msra.mxu0 0.0
        %1692 = vmatprep.subr.mxu0 0.0
        %1693 = vmatpush1.msra.mxu0 0.0
        %1694 = vmatprep.subr.mxu0 0.0
        %1695 = vmatpush1.msra.mxu0 0.0
        %1696 = vmatprep.subr.mxu0 0.0
        %1697 = vmatpush1.msra.mxu0 0.0
        %1698 = vmatprep.subr.mxu0 0.0
        %1699 = vmatpush1.msra.mxu0 0.0
        %1700 = vmatprep.subr.mxu0 0.0
        %1701 = vmatpush1.msra.mxu0 0.0
        %1702 = vmatprep.subr.mxu0 0.0
        %1703 = vmatpush1.msra.mxu0 0.0
        %1704 = vmatprep.mubr.f32.mxu0 0.0
        %1705 = vmatmul.mubr.f32.gmra.mrb[0].mxu0 %v1629
        %v1706 = vpop.f32.mrb[0].mxu0
        %v1707 = vadd.f32 0.0, %v1706
        %v1708 = vpop.f32.mrb[0].mxu0
        %1709 = vmatprep.mubr.f32.mxu0 0.0
        %1710 = vmatmul.mubr.f32.gmra.mrb[0].mxu0 %v1632
        %v1711 = vpop.f32.mrb[0].mxu0
        %v1712 = vadd.f32 0.0, %v1711
        %v1713 = vpop.f32.mrb[0].mxu0
        %1714 = vmatprep.mubr.f32.mxu0 0.0
        %1715 = vmatmul.mubr.f32.gmra.mrb[0].mxu0 %v1635
        %v1716 = vpop.f32.mrb[0].mxu0
        %v1717 = vadd.f32 0.0, %v1716
        %v1718 = vpop.f32.mrb[0].mxu0
        %1719 = vdwg.mxu0
        %v1721 = vsel %vm1470, %v1500, 0
        %v1724 = vsel %vm1470, %v1502, 0
        %v1727 = vsel %vm1470, %v1504, 0
        %v1730 = vsel %vm1107, %v1507, 0
        %1732 = vmatprep.subr.mxu0 0.0
        %1733 = vmatpush1.msra.mxu0 %v1505
        %1734 = vmatprep.subr.mxu0 0.0
        %1735 = vmatpush1.msra.mxu0 %v1506
        %1736 = vmatprep.subr.mxu0 0.0
        %1737 = vmatpush1.msra.mxu0 %v1730
        %1738 = vmatprep.subr.mxu0 0.0
        %1739 = vmatpush1.msra.mxu0 0.0
        %1740 = vmatprep.subr.mxu0 0.0
        %1741 = vmatpush1.msra.mxu0 0.0
        %1742 = vmatprep.subr.mxu0 0.0
        %1743 = vmatpush1.msra.mxu0 0.0
        %1744 = vmatprep.subr.mxu0 0.0
        %1745 = vmatpush1.msra.mxu0 0.0
        %1746 = vmatprep.subr.mxu0 0.0
        %1747 = vmatpush1.msra.mxu0 0.0
        %1748 = vmatprep.subr.mxu0 0.0
        %1749 = vmatpush1.msra.mxu0 0.0
        %1750 = vmatprep.subr.mxu0 0.0
        %1751 = vmatpush1.msra.mxu0 0.0
        %1752 = vmatprep.subr.mxu0 0.0
        %1753 = vmatpush1.msra.mxu0 0.0
        %1754 = vmatprep.subr.mxu0 0.0
        %1755 = vmatpush1.msra.mxu0 0.0
        %1756 = vmatprep.subr.mxu0 0.0
        %1757 = vmatpush1.msra.mxu0 0.0
        %1758 = vmatprep.subr.mxu0 0.0
        %1759 = vmatpush1.msra.mxu0 0.0
        %1760 = vmatprep.subr.mxu0 0.0
        %1761 = vmatpush1.msra.mxu0 0.0
        %1762 = vmatprep.subr.mxu0 0.0
        %1763 = vmatpush1.msra.mxu0 0.0
        %1764 = vmatprep.subr.mxu0 0.0
        %1765 = vmatpush1.msra.mxu0 0.0
        %1766 = vmatprep.subr.mxu0 0.0
        %1767 = vmatpush1.msra.mxu0 0.0
        %1768 = vmatprep.subr.mxu0 0.0
        %1769 = vmatpush1.msra.mxu0 0.0
        %1770 = vmatprep.subr.mxu0 0.0
        %1771 = vmatpush1.msra.mxu0 0.0
        %1772 = vmatprep.subr.mxu0 0.0
        %1773 = vmatpush1.msra.mxu0 0.0
        %1774 = vmatprep.subr.mxu0 0.0
        %1775 = vmatpush1.msra.mxu0 0.0
        %1776 = vmatprep.subr.mxu0 0.0
        %1777 = vmatpush1.msra.mxu0 0.0
        %1778 = vmatprep.subr.mxu0 0.0
        %1779 = vmatpush1.msra.mxu0 0.0
        %1780 = vmatprep.subr.mxu0 0.0
        %1781 = vmatpush1.msra.mxu0 0.0
        %1782 = vmatprep.subr.mxu0 0.0
        %1783 = vmatpush1.msra.mxu0 0.0
        %1784 = vmatprep.subr.mxu0 0.0
        %1785 = vmatpush1.msra.mxu0 0.0
        %1786 = vmatprep.subr.mxu0 0.0
        %1787 = vmatpush1.msra.mxu0 0.0
        %1788 = vmatprep.subr.mxu0 0.0
        %1789 = vmatpush1.msra.mxu0 0.0
        %1790 = vmatprep.subr.mxu0 0.0
        %1791 = vmatpush1.msra.mxu0 0.0
        %1792 = vmatprep.subr.mxu0 0.0
        %1793 = vmatpush1.msra.mxu0 0.0
        %1794 = vmatprep.subr.mxu0 0.0
        %1795 = vmatpush1.msra.mxu0 0.0
        %1796 = vmatprep.mubr.f32.mxu0 0.0
        %1797 = vmatmul.mubr.f32.gmra.mrb[0].mxu0 %v1721
        %v1798 = vpop.f32.mrb[0].mxu0
        %v1799 = vadd.f32 %v1707, %v1798
        %v1800 = vpop.f32.mrb[0].mxu0
        %1801 = vmatprep.mubr.f32.mxu0 0.0
        %1802 = vmatmul.mubr.f32.gmra.mrb[0].mxu0 %v1724
        %v1803 = vpop.f32.mrb[0].mxu0
        %v1804 = vadd.f32 %v1712, %v1803
        %v1805 = vpop.f32.mrb[0].mxu0
        %1806 = vmatprep.mubr.f32.mxu0 0.0
        %1807 = vmatmul.mubr.f32.gmra.mrb[0].mxu0 %v1727
        %v1808 = vpop.f32.mrb[0].mxu0
        %v1809 = vadd.f32 %v1717, %v1808
        %v1810 = vpop.f32.mrb[0].mxu0
        %1811 = vdwg.mxu0
        %v1812 = vmul.f32 %v1095, 0.17677669
        %v1813 = vmul.f32 %v1290, %v1812
        %v1814 = vmul.f32 %v1296, %v1812
        %v1815 = vmul.f32 %v1302, %v1812
        %1816 = vmatprep.subr.mxu0 0.0
        %1817 = vmatpush1.xpose.msra.mxu0 %v1292
        %1818 = vmatprep.subr.mxu0 0.0
        %1819 = vmatpush1.xpose.msra.mxu0 %v1298
        %1820 = vmatprep.subr.mxu0 0.0
        %1821 = vmatpush1.xpose.msra.mxu0 %v1304
        %1822 = vmatprep.subr.mxu0 0.0
        %1823 = vmatpush1.xpose.msra.mxu0 0.0
        %1824 = vmatprep.subr.mxu0 0.0
        %1825 = vmatpush1.xpose.msra.mxu0 0.0
        %1826 = vmatprep.subr.mxu0 0.0
        %1827 = vmatpush1.xpose.msra.mxu0 0.0
        %1828 = vmatprep.subr.mxu0 0.0
        %1829 = vmatpush1.xpose.msra.mxu0 0.0
        %1830 = vmatprep.subr.mxu0 0.0
        %1831 = vmatpush1.xpose.msra.mxu0 0.0
        %1832 = vmatprep.subr.mxu0 0.0
        %1833 = vmatpush1.xpose.msra.mxu0 0.0
        %1834 = vmatprep.subr.mxu0 0.0
        %1835 = vmatpush1.xpose.msra.mxu0 0.0
        %1836 = vmatprep.subr.mxu0 0.0
        %1837 = vmatpush1.xpose.msra.mxu0 0.0
        %1838 = vmatprep.subr.mxu0 0.0
        %1839 = vmatpush1.xpose.msra.mxu0 0.0
        %1840 = vmatprep.subr.mxu0 0.0
        %1841 = vmatpush1.xpose.msra.mxu0 0.0
        %1842 = vmatprep.subr.mxu0 0.0
        %1843 = vmatpush1.xpose.msra.mxu0 0.0
        %1844 = vmatprep.subr.mxu0 0.0
        %1845 = vmatpush1.xpose.msra.mxu0 0.0
        %1846 = vmatprep.subr.mxu0 0.0
        %1847 = vmatpush1.xpose.msra.mxu0 0.0
        %1848 = vmatprep.subr.mxu0 0.0
        %1849 = vmatpush1.xpose.msra.mxu0 0.0
        %1850 = vmatprep.subr.mxu0 0.0
        %1851 = vmatpush1.xpose.msra.mxu0 0.0
        %1852 = vmatprep.subr.mxu0 0.0
        %1853 = vmatpush1.xpose.msra.mxu0 0.0
        %1854 = vmatprep.subr.mxu0 0.0
        %1855 = vmatpush1.xpose.msra.mxu0 0.0
        %1856 = vmatprep.subr.mxu0 0.0
        %1857 = vmatpush1.xpose.msra.mxu0 0.0
        %1858 = vmatprep.subr.mxu0 0.0
        %1859 = vmatpush1.xpose.msra.mxu0 0.0
        %1860 = vmatprep.subr.mxu0 0.0
        %1861 = vmatpush1.xpose.msra.mxu0 0.0
        %1862 = vmatprep.subr.mxu0 0.0
        %1863 = vmatpush1.xpose.msra.mxu0 0.0
        %1864 = vmatprep.subr.mxu0 0.0
        %1865 = vmatpush1.xpose.msra.mxu0 0.0
        %1866 = vmatprep.subr.mxu0 0.0
        %1867 = vmatpush1.xpose.msra.mxu0 0.0
        %1868 = vmatprep.subr.mxu0 0.0
        %1869 = vmatpush1.xpose.msra.mxu0 0.0
        %1870 = vmatprep.subr.mxu0 0.0
        %1871 = vmatpush1.xpose.msra.mxu0 0.0
        %1872 = vmatprep.subr.mxu0 0.0
        %1873 = vmatpush1.xpose.msra.mxu0 0.0
        %1874 = vmatprep.subr.mxu0 0.0
        %1875 = vmatpush1.xpose.msra.mxu0 0.0
        %1876 = vmatprep.subr.mxu0 0.0
        %1877 = vmatpush1.xpose.msra.mxu0 0.0
        %1878 = vmatprep.subr.mxu0 0.0
        %1879 = vmatpush1.xpose.msra.mxu0 0.0
        %1880 = vmatprep.mubr.f32.mxu0 0.0
        %1881 = vmatmul.mubr.f32.gmra.mrb[0].mxu0 %v1813
        %v1882 = vpop.f32.mrb[0].mxu0
        %v1883 = vadd.f32 0.0, %v1882
        %v1884 = vpop.f32.mrb[0].mxu0
        %1885 = vmatprep.mubr.f32.mxu0 0.0
        %1886 = vmatmul.mubr.f32.gmra.mrb[0].mxu0 %v1814
        %v1887 = vpop.f32.mrb[0].mxu0
        %v1888 = vadd.f32 0.0, %v1887
        %v1889 = vpop.f32.mrb[0].mxu0
        %1890 = vmatprep.mubr.f32.mxu0 0.0
        %1891 = vmatmul.mubr.f32.gmra.mrb[0].mxu0 %v1815
        %v1892 = vpop.f32.mrb[0].mxu0
        %v1893 = vadd.f32 0.0, %v1892
        %v1894 = vpop.f32.mrb[0].mxu0
        %1895 = vdwg.mxu0
        %v1896 = vsel %vm1470, %v1883, -inf
        %1897 = vmax.xlane.f32.xlu0 %v1896
        %v1898 = vpop.xlane.xlu0 %1897
        %v1899 = vsel %vm1470, %v1888, -inf
        %1900 = vmax.xlane.f32.xlu0 %v1899
        %v1901 = vpop.xlane.xlu0 %1900
        %v1902 = vsel %vm1477, %v1893, -inf
        %1903 = vmax.xlane.f32.xlu0 %v1902
        %v1904 = vpop.xlane.xlu0 %1903
        %v1905 = vsub.f32 %v1883, %v1898
        %v1906 = vsub.f32 %v1888, %v1901
        %v1907 = vsub.f32 %v1893, %v1904
        %v1908 = vmul.f32 %v1905, 1.442695
        %v1909 = vpow.pop %v1908
        %v1910 = vmul.f32 %v1906, 1.442695
        %v1911 = vpow.pop %v1910
        %v1912 = vmul.f32 %v1907, 1.442695
        %v1913 = vpow.pop %v1912
        %v1914 = vsel %vm1470, %v1909, 0.0
        %1915 = vadd.xlane.f32.xlu0 %v1914
        %v1916 = vpop.xlane.xlu0 %1915
        %v1917 = vsel %vm1470, %v1911, 0.0
        %1918 = vadd.xlane.f32.xlu0 %v1917
        %v1919 = vpop.xlane.xlu0 %1918
        %v1920 = vsel %vm1477, %v1913, 0.0
        %1921 = vadd.xlane.f32.xlu0 %v1920
        %v1922 = vpop.xlane.xlu0 %1921
        %v1923 = vrcp.pop %v1916
        %v1924 = vmul.f32 %v1909, %v1923
        %v1925 = vrcp.pop %v1919
        %v1926 = vmul.f32 %v1911, %v1925
        %v1927 = vrcp.pop %v1922
        %v1928 = vmul.f32 %v1913, %v1927
        %v1929 = vmul.f32 %v1373, %v1095
        %v1930 = vmul.f32 %v1378, %v1095
        %v1931 = vmul.f32 %v1383, %v1095
        %v1933 = vsel %vm1470, %v1924, 0
        %v1936 = vsel %vm1470, %v1926, 0
        %v1939 = vsel %vm1470, %v1928, 0
        %v1942 = vsel %vm1107, %v1931, 0
        %1944 = vmatprep.subr.mxu0 0.0
        %1945 = vmatpush1.msra.mxu0 %v1929
        %1946 = vmatprep.subr.mxu0 0.0
        %1947 = vmatpush1.msra.mxu0 %v1930
        %1948 = vmatprep.subr.mxu0 0.0
        %1949 = vmatpush1.msra.mxu0 %v1942
        %1950 = vmatprep.subr.mxu0 0.0
        %1951 = vmatpush1.msra.mxu0 0.0
        %1952 = vmatprep.subr.mxu0 0.0
        %1953 = vmatpush1.msra.mxu0 0.0
        %1954 = vmatprep.subr.mxu0 0.0
        %1955 = vmatpush1.msra.mxu0 0.0
        %1956 = vmatprep.subr.mxu0 0.0
        %1957 = vmatpush1.msra.mxu0 0.0
        %1958 = vmatprep.subr.mxu0 0.0
        %1959 = vmatpush1.msra.mxu0 0.0
        %1960 = vmatprep.subr.mxu0 0.0
        %1961 = vmatpush1.msra.mxu0 0.0
        %1962 = vmatprep.subr.mxu0 0.0
        %1963 = vmatpush1.msra.mxu0 0.0
        %1964 = vmatprep.subr.mxu0 0.0
        %1965 = vmatpush1.msra.mxu0 0.0
        %1966 = vmatprep.subr.mxu0 0.0
        %1967 = vmatpush1.msra.mxu0 0.0
        %1968 = vmatprep.subr.mxu0 0.0
        %1969 = vmatpush1.msra.mxu0 0.0
        %1970 = vmatprep.subr.mxu0 0.0
        %1971 = vmatpush1.msra.mxu0 0.0
        %1972 = vmatprep.subr.mxu0 0.0
        %1973 = vmatpush1.msra.mxu0 0.0
        %1974 = vmatprep.subr.mxu0 0.0
        %1975 = vmatpush1.msra.mxu0 0.0
        %1976 = vmatprep.subr.mxu0 0.0
        %1977 = vmatpush1.msra.mxu0 0.0
        %1978 = vmatprep.subr.mxu0 0.0
        %1979 = vmatpush1.msra.mxu0 0.0
        %1980 = vmatprep.subr.mxu0 0.0
        %1981 = vmatpush1.msra.mxu0 0.0
        %1982 = vmatprep.subr.mxu0 0.0
        %1983 = vmatpush1.msra.mxu0 0.0
        %1984 = vmatprep.subr.mxu0 0.0
        %1985 = vmatpush1.msra.mxu0 0.0
        %1986 = vmatprep.subr.mxu0 0.0
        %1987 = vmatpush1.msra.mxu0 0.0
        %1988 = vmatprep.subr.mxu0 0.0
        %1989 = vmatpush1.msra.mxu0 0.0
        %1990 = vmatprep.subr.mxu0 0.0
        %1991 = vmatpush1.msra.mxu0 0.0
        %1992 = vmatprep.subr.mxu0 0.0
        %1993 = vmatpush1.msra.mxu0 0.0
        %1994 = vmatprep.subr.mxu0 0.0
        %1995 = vmatpush1.msra.mxu0 0.0
        %1996 = vmatprep.subr.mxu0 0.0
        %1997 = vmatpush1.msra.mxu0 0.0
        %1998 = vmatprep.subr.mxu0 0.0
        %1999 = vmatpush1.msra.mxu0 0.0
        %2000 = vmatprep.subr.mxu0 0.0
        %2001 = vmatpush1.msra.mxu0 0.0
        %2002 = vmatprep.subr.mxu0 0.0
        %2003 = vmatpush1.msra.mxu0 0.0
        %2004 = vmatprep.subr.mxu0 0.0
        %2005 = vmatpush1.msra.mxu0 0.0
        %2006 = vmatprep.subr.mxu0 0.0
        %2007 = vmatpush1.msra.mxu0 0.0
        %2008 = vmatprep.mubr.f32.mxu0 0.0
        %2009 = vmatmul.mubr.f32.gmra.mrb[0].mxu0 %v1933
        %v2010 = vpop.f32.mrb[0].mxu0
        %v2011 = vadd.f32 0.0, %v2010
        %v2012 = vpop.f32.mrb[0].mxu0
        %2013 = vmatprep.mubr.f32.mxu0 0.0
        %2014 = vmatmul.mubr.f32.gmra.mrb[0].mxu0 %v1936
        %v2015 = vpop.f32.mrb[0].mxu0
        %v2016 = vadd.f32 0.0, %v2015
        %v2017 = vpop.f32.mrb[0].mxu0
        %2018 = vmatprep.mubr.f32.mxu0 0.0
        %2019 = vmatmul.mubr.f32.gmra.mrb[0].mxu0 %v1939
        %v2020 = vpop.f32.mrb[0].mxu0
        %v2021 = vadd.f32 0.0, %v2020
        %v2022 = vpop.f32.mrb[0].mxu0
        %2023 = vdwg.mxu0
        %v2024 = vadd.f32 %v1799, %v2011
        %v2025 = vadd.f32 %v1804, %v2016
        %v2026 = vadd.f32 %v1809, %v2021
        %v2027 = vmul.f32 %v1100, 0.17677669
        %v2028 = vmul.f32 %v1290, %v2027
        %v2029 = vmul.f32 %v1296, %v2027
        %v2030 = vmul.f32 %v1302, %v2027
        %2031 = vmatprep.subr.mxu0 0.0
        %2032 = vmatpush1.xpose.msra.mxu0 %v1292
        %2033 = vmatprep.subr.mxu0 0.0
        %2034 = vmatpush1.xpose.msra.mxu0 %v1298
        %2035 = vmatprep.subr.mxu0 0.0
        %2036 = vmatpush1.xpose.msra.mxu0 %v1304
        %2037 = vmatprep.subr.mxu0 0.0
        %2038 = vmatpush1.xpose.msra.mxu0 0.0
        %2039 = vmatprep.subr.mxu0 0.0
        %2040 = vmatpush1.xpose.msra.mxu0 0.0
        %2041 = vmatprep.subr.mxu0 0.0
        %2042 = vmatpush1.xpose.msra.mxu0 0.0
        %2043 = vmatprep.subr.mxu0 0.0
        %2044 = vmatpush1.xpose.msra.mxu0 0.0
        %2045 = vmatprep.subr.mxu0 0.0
        %2046 = vmatpush1.xpose.msra.mxu0 0.0
        %2047 = vmatprep.subr.mxu0 0.0
        %2048 = vmatpush1.xpose.msra.mxu0 0.0
        %2049 = vmatprep.subr.mxu0 0.0
        %2050 = vmatpush1.xpose.msra.mxu0 0.0
        %2051 = vmatprep.subr.mxu0 0.0
        %2052 = vmatpush1.xpose.msra.mxu0 0.0
        %2053 = vmatprep.subr.mxu0 0.0
        %2054 = vmatpush1.xpose.msra.mxu0 0.0
        %2055 = vmatprep.subr.mxu0 0.0
        %2056 = vmatpush1.xpose.msra.mxu0 0.0
        %2057 = vmatprep.subr.mxu0 0.0
        %2058 = vmatpush1.xpose.msra.mxu0 0.0
        %2059 = vmatprep.subr.mxu0 0.0
        %2060 = vmatpush1.xpose.msra.mxu0 0.0
        %2061 = vmatprep.subr.mxu0 0.0
        %2062 = vmatpush1.xpose.msra.mxu0 0.0
        %2063 = vmatprep.subr.mxu0 0.0
        %2064 = vmatpush1.xpose.msra.mxu0 0.0
        %2065 = vmatprep.subr.mxu0 0.0
        %2066 = vmatpush1.xpose.msra.mxu0 0.0
        %2067 = vmatprep.subr.mxu0 0.0
        %2068 = vmatpush1.xpose.msra.mxu0 0.0
        %2069 = vmatprep.subr.mxu0 0.0
        %2070 = vmatpush1.xpose.msra.mxu0 0.0
        %2071 = vmatprep.subr.mxu0 0.0
        %2072 = vmatpush1.xpose.msra.mxu0 0.0
        %2073 = vmatprep.subr.mxu0 0.0
        %2074 = vmatpush1.xpose.msra.mxu0 0.0
        %2075 = vmatprep.subr.mxu0 0.0
        %2076 = vmatpush1.xpose.msra.mxu0 0.0
        %2077 = vmatprep.subr.mxu0 0.0
        %2078 = vmatpush1.xpose.msra.mxu0 0.0
        %2079 = vmatprep.subr.mxu0 0.0
        %2080 = vmatpush1.xpose.msra.mxu0 0.0
        %2081 = vmatprep.subr.mxu0 0.0
        %2082 = vmatpush1.xpose.msra.mxu0 0.0
        %2083 = vmatprep.subr.mxu0 0.0
        %2084 = vmatpush1.xpose.msra.mxu0 0.0
        %2085 = vmatprep.subr.mxu0 0.0
        %2086 = vmatpush1.xpose.msra.mxu0 0.0
        %2087 = vmatprep.subr.mxu0 0.0
        %2088 = vmatpush1.xpose.msra.mxu0 0.0
        %2089 = vmatprep.subr.mxu0 0.0
        %2090 = vmatpush1.xpose.msra.mxu0 0.0
        %2091 = vmatprep.subr.mxu0 0.0
        %2092 = vmatpush1.xpose.msra.mxu0 0.0
        %2093 = vmatprep.subr.mxu0 0.0
        %2094 = vmatpush1.xpose.msra.mxu0 0.0
        %2095 = vmatprep.mubr.f32.mxu0 0.0
        %2096 = vmatmul.mubr.f32.gmra.mrb[0].mxu0 %v2028
        %v2097 = vpop.f32.mrb[0].mxu0
        %v2098 = vadd.f32 0.0, %v2097
        %v2099 = vpop.f32.mrb[0].mxu0
        %2100 = vmatprep.mubr.f32.mxu0 0.0
        %2101 = vmatmul.mubr.f32.gmra.mrb[0].mxu0 %v2029
        %v2102 = vpop.f32.mrb[0].mxu0
        %v2103 = vadd.f32 0.0, %v2102
        %v2104 = vpop.f32.mrb[0].mxu0
        %2105 = vmatprep.mubr.f32.mxu0 0.0
        %2106 = vmatmul.mubr.f32.gmra.mrb[0].mxu0 %v2030
        %v2107 = vpop.f32.mrb[0].mxu0
        %v2108 = vadd.f32 0.0, %v2107
        %v2109 = vpop.f32.mrb[0].mxu0
        %2110 = vdwg.mxu0
        %v2111 = vsel %vm1470, %v2098, -inf
        %2112 = vmax.xlane.f32.xlu0 %v2111
        %v2113 = vpop.xlane.xlu0 %2112
        %v2114 = vsel %vm1470, %v2103, -inf
        %2115 = vmax.xlane.f32.xlu0 %v2114
        %v2116 = vpop.xlane.xlu0 %2115
        %v2117 = vsel %vm1477, %v2108, -inf
        %2118 = vmax.xlane.f32.xlu0 %v2117
        %v2119 = vpop.xlane.xlu0 %2118
        %v2120 = vsub.f32 %v2098, %v2113
        %v2121 = vsub.f32 %v2103, %v2116
        %v2122 = vsub.f32 %v2108, %v2119
        %v2123 = vmul.f32 %v2120, 1.442695
        %v2124 = vpow.pop %v2123
        %v2125 = vmul.f32 %v2121, 1.442695
        %v2126 = vpow.pop %v2125
        %v2127 = vmul.f32 %v2122, 1.442695
        %v2128 = vpow.pop %v2127
        %v2129 = vsel %vm1470, %v2124, 0.0
        %2130 = vadd.xlane.f32.xlu0 %v2129
        %v2131 = vpop.xlane.xlu0 %2130
        %v2132 = vsel %vm1470, %v2126, 0.0
        %2133 = vadd.xlane.f32.xlu0 %v2132
        %v2134 = vpop.xlane.xlu0 %2133
        %v2135 = vsel %vm1477, %v2128, 0.0
        %2136 = vadd.xlane.f32.xlu0 %v2135
        %v2137 = vpop.xlane.xlu0 %2136
        %v2138 = vrcp.pop %v2131
        %v2139 = vmul.f32 %v2124, %v2138
        %v2140 = vrcp.pop %v2134
        %v2141 = vmul.f32 %v2126, %v2140
        %v2142 = vrcp.pop %v2137
        %v2143 = vmul.f32 %v2128, %v2142
        %v2144 = vmul.f32 %v1373, %v1100
        %v2145 = vmul.f32 %v1378, %v1100
        %v2146 = vmul.f32 %v1383, %v1100
        %v2148 = vsel %vm1470, %v2139, 0
        %v2151 = vsel %vm1470, %v2141, 0
        %v2154 = vsel %vm1470, %v2143, 0
        %v2157 = vsel %vm1107, %v2146, 0
        %2159 = vmatprep.subr.mxu0 0.0
        %2160 = vmatpush1.msra.mxu0 %v2144
        %2161 = vmatprep.subr.mxu0 0.0
        %2162 = vmatpush1.msra.mxu0 %v2145
        %2163 = vmatprep.subr.mxu0 0.0
        %2164 = vmatpush1.msra.mxu0 %v2157
        %2165 = vmatprep.subr.mxu0 0.0
        %2166 = vmatpush1.msra.mxu0 0.0
        %2167 = vmatprep.subr.mxu0 0.0
        %2168 = vmatpush1.msra.mxu0 0.0
        %2169 = vmatprep.subr.mxu0 0.0
        %2170 = vmatpush1.msra.mxu0 0.0
        %2171 = vmatprep.subr.mxu0 0.0
        %2172 = vmatpush1.msra.mxu0 0.0
        %2173 = vmatprep.subr.mxu0 0.0
        %2174 = vmatpush1.msra.mxu0 0.0
        %2175 = vmatprep.subr.mxu0 0.0
        %2176 = vmatpush1.msra.mxu0 0.0
        %2177 = vmatprep.subr.mxu0 0.0
        %2178 = vmatpush1.msra.mxu0 0.0
        %2179 = vmatprep.subr.mxu0 0.0
        %2180 = vmatpush1.msra.mxu0 0.0
        %2181 = vmatprep.subr.mxu0 0.0
        %2182 = vmatpush1.msra.mxu0 0.0
        %2183 = vmatprep.subr.mxu0 0.0
        %2184 = vmatpush1.msra.mxu0 0.0
        %2185 = vmatprep.subr.mxu0 0.0
        %2186 = vmatpush1.msra.mxu0 0.0
        %2187 = vmatprep.subr.mxu0 0.0
        %2188 = vmatpush1.msra.mxu0 0.0
        %2189 = vmatprep.subr.mxu0 0.0
        %2190 = vmatpush1.msra.mxu0 0.0
        %2191 = vmatprep.subr.mxu0 0.0
        %2192 = vmatpush1.msra.mxu0 0.0
        %2193 = vmatprep.subr.mxu0 0.0
        %2194 = vmatpush1.msra.mxu0 0.0
        %2195 = vmatprep.subr.mxu0 0.0
        %2196 = vmatpush1.msra.mxu0 0.0
        %2197 = vmatprep.subr.mxu0 0.0
        %2198 = vmatpush1.msra.mxu0 0.0
        %2199 = vmatprep.subr.mxu0 0.0
        %2200 = vmatpush1.msra.mxu0 0.0
        %2201 = vmatprep.subr.mxu0 0.0
        %2202 = vmatpush1.msra.mxu0 0.0
        %2203 = vmatprep.subr.mxu0 0.0
        %2204 = vmatpush1.msra.mxu0 0.0
        %2205 = vmatprep.subr.mxu0 0.0
        %2206 = vmatpush1.msra.mxu0 0.0
        %2207 = vmatprep.subr.mxu0 0.0
        %2208 = vmatpush1.msra.mxu0 0.0
        %2209 = vmatprep.subr.mxu0 0.0
        %2210 = vmatpush1.msra.mxu0 0.0
        %2211 = vmatprep.subr.mxu0 0.0
        %2212 = vmatpush1.msra.mxu0 0.0
        %2213 = vmatprep.subr.mxu0 0.0
        %2214 = vmatpush1.msra.mxu0 0.0
        %2215 = vmatprep.subr.mxu0 0.0
        %2216 = vmatpush1.msra.mxu0 0.0
        %2217 = vmatprep.subr.mxu0 0.0
        %2218 = vmatpush1.msra.mxu0 0.0
        %2219 = vmatprep.subr.mxu0 0.0
        %2220 = vmatpush1.msra.mxu0 0.0
        %2221 = vmatprep.subr.mxu0 0.0
        %2222 = vmatpush1.msra.mxu0 0.0
        %2223 = vmatprep.mubr.f32.mxu0 0.0
        %2224 = vmatmul.mubr.f32.gmra.mrb[0].mxu0 %v2148
        %v2225 = vpop.f32.mrb[0].mxu0
        %v2226 = vadd.f32 0.0, %v2225
        %v2227 = vpop.f32.mrb[0].mxu0
        %2228 = vmatprep.mubr.f32.mxu0 0.0
        %2229 = vmatmul.mubr.f32.gmra.mrb[0].mxu0 %v2151
        %v2230 = vpop.f32.mrb[0].mxu0
        %v2231 = vadd.f32 0.0, %v2230
        %v2232 = vpop.f32.mrb[0].mxu0
        %2233 = vmatprep.mubr.f32.mxu0 0.0
        %2234 = vmatmul.mubr.f32.gmra.mrb[0].mxu0 %v2154
        %v2235 = vpop.f32.mrb[0].mxu0
        %v2236 = vadd.f32 0.0, %v2235
        %v2237 = vpop.f32.mrb[0].mxu0
        %2238 = vdwg.mxu0
        %v2239 = vadd.f32 %v2024, %v2226
        %v2240 = vadd.f32 %v2025, %v2231
        %v2241 = vadd.f32 %v2026, %v2236
        %v2242 = vld [vmem:[%s15] sm:$0xff]
        %v2243 = vld [vmem:[%s15 + $0x8] sm:$0xff]
        %v2244 = vld [vmem:[%s15 + $0x10] sm:$0xff]
        %v2245 = vld [vmem:[%s15 + $0x18] sm:$0xff]
        %v2246 = vld [vmem:[%s15 + $0x20] sm:$0xff]
        %v2247 = vld [vmem:[%s15 + $0x28] sm:$0xff]
        %v2248 = vld [vmem:[%s15 + $0x30] sm:$0xff]
        %v2249 = vld [vmem:[%s15 + $0x38] sm:$0xff]
        %v2250 = vld [vmem:[%s15 + $0x40] sm:$0xff]
        %v2251 = vld [vmem:[%s15 + $0x48] sm:$0xff]
        %v2252 = vld [vmem:[%s15 + $0x50] sm:$0xff]
        %v2253 = vld [vmem:[%s15 + $0x58] sm:$0xff]
        %v2254 = vld [vmem:[%s15 + $0x60] sm:$0xff]
        %v2255 = vld [vmem:[%s15 + $0x68] sm:$0xff]
        %v2256 = vld [vmem:[%s15 + $0x70] sm:$0xff]
        %v2257 = vld [vmem:[%s15 + $0x78] sm:$0xff]
        %2258 = vmatprep.subr.mxu0 0.0
        %2259 = vmatpush1.msra.mxu0 %v2242
        %2260 = vmatprep.subr.mxu0 0.0
        %2261 = vmatpush1.msra.mxu0 %v2243
        %2262 = vmatprep.subr.mxu0 0.0
        %2263 = vmatpush1.msra.mxu0 %v2244
        %2264 = vmatprep.subr.mxu0 0.0
        %2265 = vmatpush1.msra.mxu0 %v2245
        %2266 = vmatprep.subr.mxu0 0.0
        %2267 = vmatpush1.msra.mxu0 %v2246
        %2268 = vmatprep.subr.mxu0 0.0
        %2269 = vmatpush1.msra.mxu0 %v2247
        %2270 = vmatprep.subr.mxu0 0.0
        %2271 = vmatpush1.msra.mxu0 %v2248
        %2272 = vmatprep.subr.mxu0 0.0
        %2273 = vmatpush1.msra.mxu0 %v2249
        %2274 = vmatprep.subr.mxu0 0.0
        %2275 = vmatpush1.msra.mxu0 %v2250
        %2276 = vmatprep.subr.mxu0 0.0
        %2277 = vmatpush1.msra.mxu0 %v2251
        %2278 = vmatprep.subr.mxu0 0.0
        %2279 = vmatpush1.msra.mxu0 %v2252
        %2280 = vmatprep.subr.mxu0 0.0
        %2281 = vmatpush1.msra.mxu0 %v2253
        %2282 = vmatprep.subr.mxu0 0.0
        %2283 = vmatpush1.msra.mxu0 %v2254
        %2284 = vmatprep.subr.mxu0 0.0
        %2285 = vmatpush1.msra.mxu0 %v2255
        %2286 = vmatprep.subr.mxu0 0.0
        %2287 = vmatpush1.msra.mxu0 %v2256
        %2288 = vmatprep.subr.mxu0 0.0
        %2289 = vmatpush1.msra.mxu0 %v2257
        %2290 = vmatprep.subr.mxu0 0.0
        %2291 = vmatpush1.msra.mxu0 0.0
        %2292 = vmatprep.subr.mxu0 0.0
        %2293 = vmatpush1.msra.mxu0 0.0
        %2294 = vmatprep.subr.mxu0 0.0
        %2295 = vmatpush1.msra.mxu0 0.0
        %2296 = vmatprep.subr.mxu0 0.0
        %2297 = vmatpush1.msra.mxu0 0.0
        %2298 = vmatprep.subr.mxu0 0.0
        %2299 = vmatpush1.msra.mxu0 0.0
        %2300 = vmatprep.subr.mxu0 0.0
        %2301 = vmatpush1.msra.mxu0 0.0
        %2302 = vmatprep.subr.mxu0 0.0
        %2303 = vmatpush1.msra.mxu0 0.0
        %2304 = vmatprep.subr.mxu0 0.0
        %2305 = vmatpush1.msra.mxu0 0.0
        %2306 = vmatprep.subr.mxu0 0.0
        %2307 = vmatpush1.msra.mxu0 0.0
        %2308 = vmatprep.subr.mxu0 0.0
        %2309 = vmatpush1.msra.mxu0 0.0
        %2310 = vmatprep.subr.mxu0 0.0
        %2311 = vmatpush1.msra.mxu0 0.0
        %2312 = vmatprep.subr.mxu0 0.0
        %2313 = vmatpush1.msra.mxu0 0.0
        %2314 = vmatprep.subr.mxu0 0.0
        %2315 = vmatpush1.msra.mxu0 0.0
        %2316 = vmatprep.subr.mxu0 0.0
        %2317 = vmatpush1.msra.mxu0 0.0
        %2318 = vmatprep.subr.mxu0 0.0
        %2319 = vmatpush1.msra.mxu0 0.0
        %2320 = vmatprep.subr.mxu0 0.0
        %2321 = vmatpush1.msra.mxu0 0.0
        %2322 = vmatprep.mubr.f32.mxu0 0.0
        %2323 = vmatmul.mubr.f32.gmra.mrb[0].mxu0 %v2239
        %v2324 = vpop.f32.mrb[0].mxu0
        %v2325 = vadd.f32 0.0, %v2324
        %v2326 = vpop.f32.mrb[0].mxu0
        %2327 = vmatprep.mubr.f32.mxu0 0.0
        %2328 = vmatmul.mubr.f32.gmra.mrb[0].mxu0 %v2240
        %v2329 = vpop.f32.mrb[0].mxu0
        %v2330 = vadd.f32 0.0, %v2329
        %v2331 = vpop.f32.mrb[0].mxu0
        %2332 = vmatprep.mubr.f32.mxu0 0.0
        %2333 = vmatmul.mubr.f32.gmra.mrb[0].mxu0 %v2241
        %v2334 = vpop.f32.mrb[0].mxu0
        %v2335 = vadd.f32 0.0, %v2334
        %v2336 = vpop.f32.mrb[0].mxu0
        %2337 = vdwg.mxu0
        %v2338 = vadd.f32 %v1066, %v2325
        %v2339 = vadd.f32 %v1071, %v2330
        %v2340 = vadd.f32 %v1076, %v2335
        %v2341 = vld [vmem:[%s17] sm:$0x1]
        %v2343 = vlaneseq
        %v2344 = vshrl.u32 %v2343, 7
        %v2345 = vsub.s32 0, %v2344
        %v2346 = vrot.slane %v2341, %v2345
        %v2348 = vadd.f32 %v2338, %v2346
        %v2349 = vadd.f32 %v2339, %v2346
        %v2350 = vadd.f32 %v2340, %v2346
        %v2351 = vld [vmem:[%s19] sm:$0x1]
        %v2352 = vld [vmem:[%s21] sm:$0x1]
        %2353 = vadd.xlane.f32.xlu0 %v2348
        %v2354 = vpop.xlane.xlu0 %2353
        %2355 = vadd.xlane.f32.xlu0 %v2349
        %v2356 = vpop.xlane.xlu0 %2355
        %v2357 = vsel %vm1107, %v2350, 0.0
        %2358 = vadd.xlane.f32.xlu0 %v2357
        %v2359 = vpop.xlane.xlu0 %2358
        %v2360 = vmul.f32 %v2354, %v1111
        %v2361 = vmul.f32 %v2356, %v1111
        %v2362 = vmul.f32 %v2359, %v1111
        %v2363 = vsub.f32 %v2348, %v2360
        %v2364 = vsub.f32 %v2349, %v2361
        %v2365 = vsub.f32 %v2350, %v2362
        %v2366 = vmul.f32 %v2363, %v2363
        %v2367 = vmul.f32 %v2364, %v2364
        %v2368 = vmul.f32 %v2365, %v2365
        %2369 = vadd.xlane.f32.xlu0 %v2366
        %v2370 = vpop.xlane.xlu0 %2369
        %2371 = vadd.xlane.f32.xlu0 %v2367
        %v2372 = vpop.xlane.xlu0 %2371
        %v2373 = vsel %vm1107, %v2368, 0.0
        %2374 = vadd.xlane.f32.xlu0 %v2373
        %v2375 = vpop.xlane.xlu0 %2374
        %v2376 = vmul.f32 %v2370, %v1111
        %v2377 = vmul.f32 %v2372, %v1111
        %v2378 = vmul.f32 %v2375, %v1111
        %v2379 = vadd.f32 %v2376, 1e-05
        %v2380 = vadd.f32 %v2377, 1e-05
        %v2381 = vadd.f32 %v2378, 1e-05
        %v2382 = vrsqrt.pop %v2379
        %v2383 = vrsqrt.pop %v2380
        %v2384 = vrsqrt.pop %v2381
        %v2385 = vmul.f32 %v2363, %v2382
        %v2386 = vmul.f32 %v2364, %v2383
        %v2387 = vmul.f32 %v2365, %v2384
        %v2389 = vlaneseq
        %v2390 = vshrl.u32 %v2389, 7
        %v2391 = vsub.s32 0, %v2390
        %v2392 = vrot.slane %v2351, %v2391
        %v2394 = vmul.f32 %v2385, %v2392
        %v2395 = vmul.f32 %v2386, %v2392
        %v2396 = vmul.f32 %v2387, %v2392
        %v2398 = vlaneseq
        %v2399 = vshrl.u32 %v2398, 7
        %v2400 = vsub.s32 0, %v2399
        %v2401 = vrot.slane %v2352, %v2400
        %v2403 = vadd.f32 %v2394, %v2401
        %v2404 = vadd.f32 %v2395, %v2401
        %v2405 = vadd.f32 %v2396, %v2401
        %v2406 = vld [vmem:[%s23] sm:$0xff]
        %v2407 = vld [vmem:[%s23 + $0x8] sm:$0xff]
        %v2408 = vld [vmem:[%s23 + $0x10] sm:$0xff]
        %v2409 = vld [vmem:[%s23 + $0x18] sm:$0xff]
        %v2410 = vld [vmem:[%s23 + $0x20] sm:$0xff]
        %v2411 = vld [vmem:[%s23 + $0x28] sm:$0xff]
        %v2412 = vld [vmem:[%s23 + $0x30] sm:$0xff]
        %v2413 = vld [vmem:[%s23 + $0x38] sm:$0xff]
        %v2414 = vld [vmem:[%s23 + $0x40] sm:$0xff]
        %v2415 = vld [vmem:[%s23 + $0x48] sm:$0xff]
        %v2416 = vld [vmem:[%s23 + $0x50] sm:$0xff]
        %v2417 = vld [vmem:[%s23 + $0x58] sm:$0xff]
        %v2418 = vld [vmem:[%s23 + $0x60] sm:$0xff]
        %v2419 = vld [vmem:[%s23 + $0x68] sm:$0xff]
        %v2420 = vld [vmem:[%s23 + $0x70] sm:$0xff]
        %v2421 = vld [vmem:[%s23 + $0x78] sm:$0xff]
        %v2422 = vld [vmem:[%s23 + $0x80] sm:$0xff]
        %v2423 = vld [vmem:[%s23 + $0x88] sm:$0xff]
        %v2424 = vld [vmem:[%s23 + $0x90] sm:$0xff]
        %v2425 = vld [vmem:[%s23 + $0x98] sm:$0xff]
        %v2426 = vld [vmem:[%s23 + $0xa0] sm:$0xff]
        %v2427 = vld [vmem:[%s23 + $0xa8] sm:$0xff]
        %v2428 = vld [vmem:[%s23 + $0xb0] sm:$0xff]
        %v2429 = vld [vmem:[%s23 + $0xb8] sm:$0xff]
        %v2430 = vld [vmem:[%s23 + $0xc0] sm:$0xff]
        %v2431 = vld [vmem:[%s23 + $0xc8] sm:$0xff]
        %v2432 = vld [vmem:[%s23 + $0xd0] sm:$0xff]
        %v2433 = vld [vmem:[%s23 + $0xd8] sm:$0xff]
        %v2434 = vld [vmem:[%s23 + $0xe0] sm:$0xff]
        %v2435 = vld [vmem:[%s23 + $0xe8] sm:$0xff]
        %v2436 = vld [vmem:[%s23 + $0xf0] sm:$0xff]
        %v2437 = vld [vmem:[%s23 + $0xf8] sm:$0xff]
        %v2438 = vld [vmem:[%s25] sm:$0x3]
        %v2440 = vlaneseq
        %v2441 = vshrl.u32 %v2440, 7
        %v2442 = vsub.s32 0, %v2441
        %v2443 = vrot.slane %v2438, %v2442
        %v2444 = vlaneseq
        %v2445 = vshrl.u32 %v2444, 7
        %v2446 = vsub.s32 1, %v2445
        %v2447 = vrot.slane %v2438, %v2446
        %2450 = vmatprep.subr.mxu0 %v2407
        %2451 = vmatpush1.msra.mxu0 %v2406
        %2452 = vmatprep.subr.mxu0 %v2409
        %2453 = vmatpush1.msra.mxu0 %v2408
        %2454 = vmatprep.subr.mxu0 %v2411
        %2455 = vmatpush1.msra.mxu0 %v2410
        %2456 = vmatprep.subr.mxu0 %v2413
        %2457 = vmatpush1.msra.mxu0 %v2412
        %2458 = vmatprep.subr.mxu0 %v2415
        %2459 = vmatpush1.msra.mxu0 %v2414
        %2460 = vmatprep.subr.mxu0 %v2417
        %2461 = vmatpush1.msra.mxu0 %v2416
        %2462 = vmatprep.subr.mxu0 %v2419
        %2463 = vmatpush1.msra.mxu0 %v2418
        %2464 = vmatprep.subr.mxu0 %v2421
        %2465 = vmatpush1.msra.mxu0 %v2420
        %2466 = vmatprep.subr.mxu0 %v2423
        %2467 = vmatpush1.msra.mxu0 %v2422
        %2468 = vmatprep.subr.mxu0 %v2425
        %2469 = vmatpush1.msra.mxu0 %v2424
        %2470 = vmatprep.subr.mxu0 %v2427
        %2471 = vmatpush1.msra.mxu0 %v2426
        %2472 = vmatprep.subr.mxu0 %v2429
        %2473 = vmatpush1.msra.mxu0 %v2428
        %2474 = vmatprep.subr.mxu0 %v2431
        %2475 = vmatpush1.msra.mxu0 %v2430
        %2476 = vmatprep.subr.mxu0 %v2433
        %2477 = vmatpush1.msra.mxu0 %v2432
        %2478 = vmatprep.subr.mxu0 %v2435
        %2479 = vmatpush1.msra.mxu0 %v2434
        %2480 = vmatprep.subr.mxu0 %v2437
        %2481 = vmatpush1.msra.mxu0 %v2436
        %2482 = vmatprep.subr.mxu0 0.0
        %2483 = vmatpush1.msra.mxu0 0.0
        %2484 = vmatprep.subr.mxu0 0.0
        %2485 = vmatpush1.msra.mxu0 0.0
        %2486 = vmatprep.subr.mxu0 0.0
        %2487 = vmatpush1.msra.mxu0 0.0
        %2488 = vmatprep.subr.mxu0 0.0
        %2489 = vmatpush1.msra.mxu0 0.0
        %2490 = vmatprep.subr.mxu0 0.0
        %2491 = vmatpush1.msra.mxu0 0.0
        %2492 = vmatprep.subr.mxu0 0.0
        %2493 = vmatpush1.msra.mxu0 0.0
        %2494 = vmatprep.subr.mxu0 0.0
        %2495 = vmatpush1.msra.mxu0 0.0
        %2496 = vmatprep.subr.mxu0 0.0
        %2497 = vmatpush1.msra.mxu0 0.0
        %2498 = vmatprep.subr.mxu0 0.0
        %2499 = vmatpush1.msra.mxu0 0.0
        %2500 = vmatprep.subr.mxu0 0.0
        %2501 = vmatpush1.msra.mxu0 0.0
        %2502 = vmatprep.subr.mxu0 0.0
        %2503 = vmatpush1.msra.mxu0 0.0
        %2504 = vmatprep.subr.mxu0 0.0
        %2505 = vmatpush1.msra.mxu0 0.0
        %2506 = vmatprep.subr.mxu0 0.0
        %2507 = vmatpush1.msra.mxu0 0.0
        %2508 = vmatprep.subr.mxu0 0.0
        %2509 = vmatpush1.msra.mxu0 0.0
        %2510 = vmatprep.subr.mxu0 0.0
        %2511 = vmatpush1.msra.mxu0 0.0
        %2512 = vmatprep.subr.mxu0 0.0
        %2513 = vmatpush1.msra.mxu0 0.0
        %2514 = vmatprep.mubr.f32.mxu0 0.0
        %2515 = vmatmul.mubr.f32.gmra.mrb[0].mxu0 %v2403
        %v2516 = vpop.f32.mrb[0].mxu0
        %v2517 = vadd.f32 %v2443, %v2516
        %v2518 = vpop.f32.mrb[0].mxu0
        %v2519 = vadd.f32 %v2447, %v2518
        %2520 = vmatprep.mubr.f32.mxu0 0.0
        %2521 = vmatmul.mubr.f32.gmra.mrb[0].mxu0 %v2404
        %v2522 = vpop.f32.mrb[0].mxu0
        %v2523 = vadd.f32 %v2443, %v2522
        %v2524 = vpop.f32.mrb[0].mxu0
        %v2525 = vadd.f32 %v2447, %v2524
        %2526 = vmatprep.mubr.f32.mxu0 0.0
        %2527 = vmatmul.mubr.f32.gmra.mrb[0].mxu0 %v2405
        %v2528 = vpop.f32.mrb[0].mxu0
        %v2529 = vadd.f32 %v2443, %v2528
        %v2530 = vpop.f32.mrb[0].mxu0
        %v2531 = vadd.f32 %v2447, %v2530
        %2532 = vdwg.mxu0
        %v2533 = vmul.f32 %v2517, 0.5
        %v2534 = vmul.f32 %v2519, 0.5
        %v2535 = vmul.f32 %v2523, 0.5
        %v2536 = vmul.f32 %v2525, 0.5
        %v2537 = vmul.f32 %v2529, 0.5
        %v2538 = vmul.f32 %v2531, 0.5
        %v2539 = vmul.f32 %v2517, 0.044715
        %v2540 = vmul.f32 %v2519, 0.044715
        %v2541 = vmul.f32 %v2523, 0.044715
        %v2542 = vmul.f32 %v2525, 0.044715
        %v2543 = vmul.f32 %v2529, 0.044715
        %v2544 = vmul.f32 %v2531, 0.044715
        %v2545 = vmul.f32 %v2539, %v2517
        %v2546 = vmul.f32 %v2540, %v2519
        %v2547 = vmul.f32 %v2541, %v2523
        %v2548 = vmul.f32 %v2542, %v2525
        %v2549 = vmul.f32 %v2543, %v2529
        %v2550 = vmul.f32 %v2544, %v2531
        %v2551 = vmul.f32 %v2545, %v2517
        %v2552 = vmul.f32 %v2546, %v2519
        %v2553 = vmul.f32 %v2547, %v2523
        %v2554 = vmul.f32 %v2548, %v2525
        %v2555 = vmul.f32 %v2549, %v2529
        %v2556 = vmul.f32 %v2550, %v2531
        %v2557 = vadd.f32 %v2517, %v2551
        %v2558 = vadd.f32 %v2519, %v2552
        %v2559 = vadd.f32 %v2523, %v2553
        %v2560 = vadd.f32 %v2525, %v2554
        %v2561 = vadd.f32 %v2529, %v2555
        %v2562 = vadd.f32 %v2531, %v2556
        %v2563 = vmul.f32 %v2557, 0.7978846
        %v2564 = vmul.f32 %v2558, 0.7978846
        %v2565 = vmul.f32 %v2559, 0.7978846
        %v2566 = vmul.f32 %v2560, 0.7978846
        %v2567 = vmul.f32 %v2561, 0.7978846
        %v2568 = vmul.f32 %v2562, 0.7978846
        %v2569 = vtanh.pop %v2563
        %v2570 = vtanh.pop %v2564
        %v2571 = vtanh.pop %v2565
        %v2572 = vtanh.pop %v2566
        %v2573 = vtanh.pop %v2567
        %v2574 = vtanh.pop %v2568
        %v2575 = vadd.f32 %v2569, 1.0
        %v2576 = vadd.f32 %v2570, 1.0
        %v2577 = vadd.f32 %v2571, 1.0
        %v2578 = vadd.f32 %v2572, 1.0
        %v2579 = vadd.f32 %v2573, 1.0
        %v2580 = vadd.f32 %v2574, 1.0
        %v2581 = vmul.f32 %v2533, %v2575
        %v2582 = vmul.f32 %v2534, %v2576
        %v2583 = vmul.f32 %v2535, %v2577
        %v2584 = vmul.f32 %v2536, %v2578
        %v2585 = vmul.f32 %v2537, %v2579
        %v2586 = vmul.f32 %v2538, %v2580
        %v2587 = vld [vmem:[%s27] sm:$0xff]
        %v2588 = vld [vmem:[%s27 + $0x8] sm:$0xff]
        %v2589 = vld [vmem:[%s27 + $0x10] sm:$0xff]
        %v2590 = vld [vmem:[%s27 + $0x18] sm:$0xff]
        %v2591 = vld [vmem:[%s27 + $0x20] sm:$0xff]
        %v2592 = vld [vmem:[%s27 + $0x28] sm:$0xff]
        %v2593 = vld [vmem:[%s27 + $0x30] sm:$0xff]
        %v2594 = vld [vmem:[%s27 + $0x38] sm:$0xff]
        %v2595 = vld [vmem:[%s27 + $0x40] sm:$0xff]
        %v2596 = vld [vmem:[%s27 + $0x48] sm:$0xff]
        %v2597 = vld [vmem:[%s27 + $0x50] sm:$0xff]
        %v2598 = vld [vmem:[%s27 + $0x58] sm:$0xff]
        %v2599 = vld [vmem:[%s27 + $0x60] sm:$0xff]
        %v2600 = vld [vmem:[%s27 + $0x68] sm:$0xff]
        %v2601 = vld [vmem:[%s27 + $0x70] sm:$0xff]
        %v2602 = vld [vmem:[%s27 + $0x78] sm:$0xff]
        %v2603 = vld [vmem:[%s27 + $0x80] sm:$0xff]
        %v2604 = vld [vmem:[%s27 + $0x88] sm:$0xff]
        %v2605 = vld [vmem:[%s27 + $0x90] sm:$0xff]
        %v2606 = vld [vmem:[%s27 + $0x98] sm:$0xff]
        %v2607 = vld [vmem:[%s27 + $0xa0] sm:$0xff]
        %v2608 = vld [vmem:[%s27 + $0xa8] sm:$0xff]
        %v2609 = vld [vmem:[%s27 + $0xb0] sm:$0xff]
        %v2610 = vld [vmem:[%s27 + $0xb8] sm:$0xff]
        %v2611 = vld [vmem:[%s27 + $0xc0] sm:$0xff]
        %v2612 = vld [vmem:[%s27 + $0xc8] sm:$0xff]
        %v2613 = vld [vmem:[%s27 + $0xd0] sm:$0xff]
        %v2614 = vld [vmem:[%s27 + $0xd8] sm:$0xff]
        %v2615 = vld [vmem:[%s27 + $0xe0] sm:$0xff]
        %v2616 = vld [vmem:[%s27 + $0xe8] sm:$0xff]
        %v2617 = vld [vmem:[%s27 + $0xf0] sm:$0xff]
        %v2618 = vld [vmem:[%s27 + $0xf8] sm:$0xff]
        %2619 = vmatprep.subr.mxu0 0.0
        %2620 = vmatpush1.msra.mxu0 %v2587
        %2621 = vmatprep.subr.mxu0 0.0
        %2622 = vmatpush1.msra.mxu0 %v2588
        %2623 = vmatprep.subr.mxu0 0.0
        %2624 = vmatpush1.msra.mxu0 %v2589
        %2625 = vmatprep.subr.mxu0 0.0
        %2626 = vmatpush1.msra.mxu0 %v2590
        %2627 = vmatprep.subr.mxu0 0.0
        %2628 = vmatpush1.msra.mxu0 %v2591
        %2629 = vmatprep.subr.mxu0 0.0
        %2630 = vmatpush1.msra.mxu0 %v2592
        %2631 = vmatprep.subr.mxu0 0.0
        %2632 = vmatpush1.msra.mxu0 %v2593
        %2633 = vmatprep.subr.mxu0 0.0
        %2634 = vmatpush1.msra.mxu0 %v2594
        %2635 = vmatprep.subr.mxu0 0.0
        %2636 = vmatpush1.msra.mxu0 %v2595
        %2637 = vmatprep.subr.mxu0 0.0
        %2638 = vmatpush1.msra.mxu0 %v2596
        %2639 = vmatprep.subr.mxu0 0.0
        %2640 = vmatpush1.msra.mxu0 %v2597
        %2641 = vmatprep.subr.mxu0 0.0
        %2642 = vmatpush1.msra.mxu0 %v2598
        %2643 = vmatprep.subr.mxu0 0.0
        %2644 = vmatpush1.msra.mxu0 %v2599
        %2645 = vmatprep.subr.mxu0 0.0
        %2646 = vmatpush1.msra.mxu0 %v2600
        %2647 = vmatprep.subr.mxu0 0.0
        %2648 = vmatpush1.msra.mxu0 %v2601
        %2649 = vmatprep.subr.mxu0 0.0
        %2650 = vmatpush1.msra.mxu0 %v2602
        %2651 = vmatprep.subr.mxu0 0.0
        %2652 = vmatpush1.msra.mxu0 %v2603
        %2653 = vmatprep.subr.mxu0 0.0
        %2654 = vmatpush1.msra.mxu0 %v2604
        %2655 = vmatprep.subr.mxu0 0.0
        %2656 = vmatpush1.msra.mxu0 %v2605
        %2657 = vmatprep.subr.mxu0 0.0
        %2658 = vmatpush1.msra.mxu0 %v2606
        %2659 = vmatprep.subr.mxu0 0.0
        %2660 = vmatpush1.msra.mxu0 %v2607
        %2661 = vmatprep.subr.mxu0 0.0
        %2662 = vmatpush1.msra.mxu0 %v2608
        %2663 = vmatprep.subr.mxu0 0.0
        %2664 = vmatpush1.msra.mxu0 %v2609
        %2665 = vmatprep.subr.mxu0 0.0
        %2666 = vmatpush1.msra.mxu0 %v2610
        %2667 = vmatprep.subr.mxu0 0.0
        %2668 = vmatpush1.msra.mxu0 %v2611
        %2669 = vmatprep.subr.mxu0 0.0
        %2670 = vmatpush1.msra.mxu0 %v2612
        %2671 = vmatprep.subr.mxu0 0.0
        %2672 = vmatpush1.msra.mxu0 %v2613
        %2673 = vmatprep.subr.mxu0 0.0
        %2674 = vmatpush1.msra.mxu0 %v2614
        %2675 = vmatprep.subr.mxu0 0.0
        %2676 = vmatpush1.msra.mxu0 %v2615
        %2677 = vmatprep.subr.mxu0 0.0
        %2678 = vmatpush1.msra.mxu0 %v2616
        %2679 = vmatprep.subr.mxu0 0.0
        %2680 = vmatpush1.msra.mxu0 %v2617
        %2681 = vmatprep.subr.mxu0 0.0
        %2682 = vmatpush1.msra.mxu0 %v2618
        %2683 = vmatprep.mubr.f32.mxu0 %v2582
        %2684 = vmatmul.mubr.f32.gmra.mrb[0].mxu0 %v2581
        %v2685 = vpop.f32.mrb[0].mxu0
        %v2686 = vadd.f32 0.0, %v2685
        %v2687 = vpop.f32.mrb[0].mxu0
        %2688 = vmatprep.mubr.f32.mxu0 %v2584
        %2689 = vmatmul.mubr.f32.gmra.mrb[0].mxu0 %v2583
        %v2690 = vpop.f32.mrb[0].mxu0
        %v2691 = vadd.f32 0.0, %v2690
        %v2692 = vpop.f32.mrb[0].mxu0
        %2693 = vmatprep.mubr.f32.mxu0 %v2586
        %2694 = vmatmul.mubr.f32.gmra.mrb[0].mxu0 %v2585
        %v2695 = vpop.f32.mrb[0].mxu0
        %v2696 = vadd.f32 0.0, %v2695
        %v2697 = vpop.f32.mrb[0].mxu0
        %2698 = vdwg.mxu0
        %v2699 = vadd.f32 %v2348, %v2686
        %v2700 = vadd.f32 %v2349, %v2691
        %v2701 = vadd.f32 %v2350, %v2696
        %v2702 = vld [vmem:[%s29] sm:$0x1]
        %v2704 = vlaneseq
        %v2705 = vshrl.u32 %v2704, 7
        %v2706 = vsub.s32 0, %v2705
        %v2707 = vrot.slane %v2702, %v2706
        %v2709 = vadd.f32 %v2699, %v2707
        %v2710 = vadd.f32 %v2700, %v2707
        %v2711 = vadd.f32 %v2701, %v2707
        %v2712 = vld [vmem:[%s31] sm:$0x1]
        %v2713 = vld [vmem:[%s33] sm:$0x1]
        %2714 = vadd.xlane.f32.xlu0 %v2709
        %v2715 = vpop.xlane.xlu0 %2714
        %2716 = vadd.xlane.f32.xlu0 %v2710
        %v2717 = vpop.xlane.xlu0 %2716
        %v2718 = vsel %vm1107, %v2711, 0.0
        %2719 = vadd.xlane.f32.xlu0 %v2718
        %v2720 = vpop.xlane.xlu0 %2719
        %v2721 = vmul.f32 %v2715, %v1111
        %v2722 = vmul.f32 %v2717, %v1111
        %v2723 = vmul.f32 %v2720, %v1111
        %v2724 = vsub.f32 %v2709, %v2721
        %v2725 = vsub.f32 %v2710, %v2722
        %v2726 = vsub.f32 %v2711, %v2723
        %v2727 = vmul.f32 %v2724, %v2724
        %v2728 = vmul.f32 %v2725, %v2725
        %v2729 = vmul.f32 %v2726, %v2726
        %2730 = vadd.xlane.f32.xlu0 %v2727
        %v2731 = vpop.xlane.xlu0 %2730
        %2732 = vadd.xlane.f32.xlu0 %v2728
        %v2733 = vpop.xlane.xlu0 %2732
        %v2734 = vsel %vm1107, %v2729, 0.0
        %2735 = vadd.xlane.f32.xlu0 %v2734
        %v2736 = vpop.xlane.xlu0 %2735
        %v2737 = vmul.f32 %v2731, %v1111
        %v2738 = vmul.f32 %v2733, %v1111
        %v2739 = vmul.f32 %v2736, %v1111
        %v2740 = vadd.f32 %v2737, 1e-05
        %v2741 = vadd.f32 %v2738, 1e-05
        %v2742 = vadd.f32 %v2739, 1e-05
        %v2743 = vrsqrt.pop %v2740
        %v2744 = vrsqrt.pop %v2741
        %v2745 = vrsqrt.pop %v2742
        %v2746 = vmul.f32 %v2724, %v2743
        %v2747 = vmul.f32 %v2725, %v2744
        %v2748 = vmul.f32 %v2726, %v2745
        %v2750 = vlaneseq
        %v2751 = vshrl.u32 %v2750, 7
        %v2752 = vsub.s32 0, %v2751
        %v2753 = vrot.slane %v2712, %v2752
        %v2755 = vmul.f32 %v2746, %v2753
        %v2756 = vmul.f32 %v2747, %v2753
        %v2757 = vmul.f32 %v2748, %v2753
        %v2759 = vlaneseq
        %v2760 = vshrl.u32 %v2759, 7
        %v2761 = vsub.s32 0, %v2760
        %v2762 = vrot.slane %v2713, %v2761
        %v2764 = vadd.f32 %v2755, %v2762
        %v2765 = vadd.f32 %v2756, %v2762
        %v2766 = vadd.f32 %v2757, %v2762
        %v2767 = vld [vmem:[%s35] sm:$0xff]
        %v2768 = vld [vmem:[%s35 + $0x8] sm:$0xff]
        %v2769 = vld [vmem:[%s35 + $0x10] sm:$0xff]
        %v2770 = vld [vmem:[%s35 + $0x18] sm:$0xff]
        %v2771 = vld [vmem:[%s35 + $0x20] sm:$0xff]
        %v2772 = vld [vmem:[%s35 + $0x28] sm:$0xff]
        %v2773 = vld [vmem:[%s35 + $0x30] sm:$0xff]
        %v2774 = vld [vmem:[%s35 + $0x38] sm:$0xff]
        %v2775 = vld [vmem:[%s35 + $0x40] sm:$0xff]
        %v2776 = vld [vmem:[%s35 + $0x48] sm:$0xff]
        %v2777 = vld [vmem:[%s35 + $0x50] sm:$0xff]
        %v2778 = vld [vmem:[%s35 + $0x58] sm:$0xff]
        %v2779 = vld [vmem:[%s35 + $0x60] sm:$0xff]
        %v2780 = vld [vmem:[%s35 + $0x68] sm:$0xff]
        %v2781 = vld [vmem:[%s35 + $0x70] sm:$0xff]
        %v2782 = vld [vmem:[%s35 + $0x78] sm:$0xff]
        %v2783 = vld [vmem:[%s35 + $0x80] sm:$0xff]
        %v2784 = vld [vmem:[%s35 + $0x88] sm:$0xff]
        %v2785 = vld [vmem:[%s35 + $0x90] sm:$0xff]
        %v2786 = vld [vmem:[%s35 + $0x98] sm:$0xff]
        %v2787 = vld [vmem:[%s35 + $0xa0] sm:$0xff]
        %v2788 = vld [vmem:[%s35 + $0xa8] sm:$0xff]
        %v2789 = vld [vmem:[%s35 + $0xb0] sm:$0xff]
        %v2790 = vld [vmem:[%s35 + $0xb8] sm:$0xff]
        %v2791 = vld [vmem:[%s35 + $0xc0] sm:$0xff]
        %v2792 = vld [vmem:[%s35 + $0xc8] sm:$0xff]
        %v2793 = vld [vmem:[%s35 + $0xd0] sm:$0xff]
        %v2794 = vld [vmem:[%s35 + $0xd8] sm:$0xff]
        %v2795 = vld [vmem:[%s35 + $0xe0] sm:$0xff]
        %v2796 = vld [vmem:[%s35 + $0xe8] sm:$0xff]
        %v2797 = vld [vmem:[%s35 + $0xf0] sm:$0xff]
        %v2798 = vld [vmem:[%s35 + $0xf8] sm:$0xff]
        %v2799 = vld [vmem:[%s35 + $0x100] sm:$0xff]
        %v2800 = vld [vmem:[%s35 + $0x108] sm:$0xff]
        %v2801 = vld [vmem:[%s35 + $0x110] sm:$0xff]
        %v2802 = vld [vmem:[%s35 + $0x118] sm:$0xff]
        %v2803 = vld [vmem:[%s35 + $0x120] sm:$0xff]
        %v2804 = vld [vmem:[%s35 + $0x128] sm:$0xff]
        %v2805 = vld [vmem:[%s35 + $0x130] sm:$0xff]
        %v2806 = vld [vmem:[%s35 + $0x138] sm:$0xff]
        %v2807 = vld [vmem:[%s35 + $0x140] sm:$0xff]
        %v2808 = vld [vmem:[%s35 + $0x148] sm:$0xff]
        %v2809 = vld [vmem:[%s35 + $0x150] sm:$0xff]
        %v2810 = vld [vmem:[%s35 + $0x158] sm:$0xff]
        %v2811 = vld [vmem:[%s35 + $0x160] sm:$0xff]
        %v2812 = vld [vmem:[%s35 + $0x168] sm:$0xff]
        %v2813 = vld [vmem:[%s35 + $0x170] sm:$0xff]
        %v2814 = vld [vmem:[%s35 + $0x178] sm:$0xff]
        %v2815 = vld [vmem:[%s37] sm:$0x7]
        %v2817 = vlaneseq
        %v2818 = vshrl.u32 %v2817, 7
        %v2819 = vsub.s32 0, %v2818
        %v2820 = vrot.slane %v2815, %v2819
        %v2821 = vlaneseq
        %v2822 = vshrl.u32 %v2821, 7
        %v2823 = vsub.s32 1, %v2822
        %v2824 = vrot.slane %v2815, %v2823
        %v2825 = vlaneseq
        %v2826 = vshrl.u32 %v2825, 7
        %v2827 = vsub.s32 2, %v2826
        %v2828 = vrot.slane %v2815, %v2827
        %2832 = vmatprep.subr.mxu0 %v2768
        %2833 = vmatpush1.msra.mxu0 %v2767
        %2834 = vmatprep.subr.mxu0 %v2771
        %2835 = vmatpush1.msra.mxu0 %v2770
        %2836 = vmatprep.subr.mxu0 %v2774
        %2837 = vmatpush1.msra.mxu0 %v2773
        %2838 = vmatprep.subr.mxu0 %v2777
        %2839 = vmatpush1.msra.mxu0 %v2776
        %2840 = vmatprep.subr.mxu0 %v2780
        %2841 = vmatpush1.msra.mxu0 %v2779
        %2842 = vmatprep.subr.mxu0 %v2783
        %2843 = vmatpush1.msra.mxu0 %v2782
        %2844 = vmatprep.subr.mxu0 %v2786
        %2845 = vmatpush1.msra.mxu0 %v2785
        %2846 = vmatprep.subr.mxu0 %v2789
        %2847 = vmatpush1.msra.mxu0 %v2788
        %2848 = vmatprep.subr.mxu0 %v2792
        %2849 = vmatpush1.msra.mxu0 %v2791
        %2850 = vmatprep.subr.mxu0 %v2795
        %2851 = vmatpush1.msra.mxu0 %v2794
        %2852 = vmatprep.subr.mxu0 %v2798
        %2853 = vmatpush1.msra.mxu0 %v2797
        %2854 = vmatprep.subr.mxu0 %v2801
        %2855 = vmatpush1.msra.mxu0 %v2800
        %2856 = vmatprep.subr.mxu0 %v2804
        %2857 = vmatpush1.msra.mxu0 %v2803
        %2858 = vmatprep.subr.mxu0 %v2807
        %2859 = vmatpush1.msra.mxu0 %v2806
        %2860 = vmatprep.subr.mxu0 %v2810
        %2861 = vmatpush1.msra.mxu0 %v2809
        %2862 = vmatprep.subr.mxu0 %v2813
        %2863 = vmatpush1.msra.mxu0 %v2812
        %2864 = vmatprep.subr.mxu0 0.0
        %2865 = vmatpush1.msra.mxu0 0.0
        %2866 = vmatprep.subr.mxu0 0.0
        %2867 = vmatpush1.msra.mxu0 0.0
        %2868 = vmatprep.subr.mxu0 0.0
        %2869 = vmatpush1.msra.mxu0 0.0
        %2870 = vmatprep.subr.mxu0 0.0
        %2871 = vmatpush1.msra.mxu0 0.0
        %2872 = vmatprep.subr.mxu0 0.0
        %2873 = vmatpush1.msra.mxu0 0.0
        %2874 = vmatprep.subr.mxu0 0.0
        %2875 = vmatpush1.msra.mxu0 0.0
        %2876 = vmatprep.subr.mxu0 0.0
        %2877 = vmatpush1.msra.mxu0 0.0
        %2878 = vmatprep.subr.mxu0 0.0
        %2879 = vmatpush1.msra.mxu0 0.0
        %2880 = vmatprep.subr.mxu0 0.0
        %2881 = vmatpush1.msra.mxu0 0.0
        %2882 = vmatprep.subr.mxu0 0.0
        %2883 = vmatpush1.msra.mxu0 0.0
        %2884 = vmatprep.subr.mxu0 0.0
        %2885 = vmatpush1.msra.mxu0 0.0
        %2886 = vmatprep.subr.mxu0 0.0
        %2887 = vmatpush1.msra.mxu0 0.0
        %2888 = vmatprep.subr.mxu0 0.0
        %2889 = vmatpush1.msra.mxu0 0.0
        %2890 = vmatprep.subr.mxu0 0.0
        %2891 = vmatpush1.msra.mxu0 0.0
        %2892 = vmatprep.subr.mxu0 0.0
        %2893 = vmatpush1.msra.mxu0 0.0
        %2894 = vmatprep.subr.mxu0 0.0
        %2895 = vmatpush1.msra.mxu0 0.0
        %2896 = vmatprep.mubr.f32.mxu0 0.0
        %2897 = vmatmul.mubr.f32.gmra.mrb[0].mxu0 %v2764
        %v2898 = vpop.f32.mrb[0].mxu0
        %v2899 = vadd.f32 %v2820, %v2898
        %v2900 = vpop.f32.mrb[0].mxu0
        %v2901 = vadd.f32 %v2824, %v2900
        %2902 = vmatprep.mubr.f32.mxu0 0.0
        %2903 = vmatmul.mubr.f32.gmra.mrb[0].mxu0 %v2765
        %v2904 = vpop.f32.mrb[0].mxu0
        %v2905 = vadd.f32 %v2820, %v2904
        %v2906 = vpop.f32.mrb[0].mxu0
        %v2907 = vadd.f32 %v2824, %v2906
        %2908 = vmatprep.mubr.f32.mxu0 0.0
        %2909 = vmatmul.mubr.f32.gmra.mrb[0].mxu0 %v2766
        %v2910 = vpop.f32.mrb[0].mxu0
        %v2911 = vadd.f32 %v2820, %v2910
        %v2912 = vpop.f32.mrb[0].mxu0
        %v2913 = vadd.f32 %v2824, %v2912
        %2914 = vdwg.mxu0
        %2915 = vmatprep.subr.mxu0 0.0
        %2916 = vmatpush1.msra.mxu0 %v2769
        %2917 = vmatprep.subr.mxu0 0.0
        %2918 = vmatpush1.msra.mxu0 %v2772
        %2919 = vmatprep.subr.mxu0 0.0
        %2920 = vmatpush1.msra.mxu0 %v2775
        %2921 = vmatprep.subr.mxu0 0.0
        %2922 = vmatpush1.msra.mxu0 %v2778
        %2923 = vmatprep.subr.mxu0 0.0
        %2924 = vmatpush1.msra.mxu0 %v2781
        %2925 = vmatprep.subr.mxu0 0.0
        %2926 = vmatpush1.msra.mxu0 %v2784
        %2927 = vmatprep.subr.mxu0 0.0
        %2928 = vmatpush1.msra.mxu0 %v2787
        %2929 = vmatprep.subr.mxu0 0.0
        %2930 = vmatpush1.msra.mxu0 %v2790
        %2931 = vmatprep.subr.mxu0 0.0
        %2932 = vmatpush1.msra.mxu0 %v2793
        %2933 = vmatprep.subr.mxu0 0.0
        %2934 = vmatpush1.msra.mxu0 %v2796
        %2935 = vmatprep.subr.mxu0 0.0
        %2936 = vmatpush1.msra.mxu0 %v2799
        %2937 = vmatprep.subr.mxu0 0.0
        %2938 = vmatpush1.msra.mxu0 %v2802
        %2939 = vmatprep.subr.mxu0 0.0
        %2940 = vmatpush1.msra.mxu0 %v2805
        %2941 = vmatprep.subr.mxu0 0.0
        %2942 = vmatpush1.msra.mxu0 %v2808
        %2943 = vmatprep.subr.mxu0 0.0
        %2944 = vmatpush1.msra.mxu0 %v2811
        %2945 = vmatprep.subr.mxu0 0.0
        %2946 = vmatpush1.msra.mxu0 %v2814
        %2947 = vmatprep.subr.mxu0 0.0
        %2948 = vmatpush1.msra.mxu0 0.0
        %2949 = vmatprep.subr.mxu0 0.0
        %2950 = vmatpush1.msra.mxu0 0.0
        %2951 = vmatprep.subr.mxu0 0.0
        %2952 = vmatpush1.msra.mxu0 0.0
        %2953 = vmatprep.subr.mxu0 0.0
        %2954 = vmatpush1.msra.mxu0 0.0
        %2955 = vmatprep.subr.mxu0 0.0
        %2956 = vmatpush1.msra.mxu0 0.0
        %2957 = vmatprep.subr.mxu0 0.0
        %2958 = vmatpush1.msra.mxu0 0.0
        %2959 = vmatprep.subr.mxu0 0.0
        %2960 = vmatpush1.msra.mxu0 0.0
        %2961 = vmatprep.subr.mxu0 0.0
        %2962 = vmatpush1.msra.mxu0 0.0
        %2963 = vmatprep.subr.mxu0 0.0
        %2964 = vmatpush1.msra.mxu0 0.0
        %2965 = vmatprep.subr.mxu0 0.0
        %2966 = vmatpush1.msra.mxu0 0.0
        %2967 = vmatprep.subr.mxu0 0.0
        %2968 = vmatpush1.msra.mxu0 0.0
        %2969 = vmatprep.subr.mxu0 0.0
        %2970 = vmatpush1.msra.mxu0 0.0
        %2971 = vmatprep.subr.mxu0 0.0
        %2972 = vmatpush1.msra.mxu0 0.0
        %2973 = vmatprep.subr.mxu0 0.0
        %2974 = vmatpush1.msra.mxu0 0.0
        %2975 = vmatprep.subr.mxu0 0.0
        %2976 = vmatpush1.msra.mxu0 0.0
        %2977 = vmatprep.subr.mxu0 0.0
        %2978 = vmatpush1.msra.mxu0 0.0
        %2979 = vmatprep.mubr.f32.mxu0 0.0
        %2980 = vmatmul.mubr.f32.gmra.mrb[0].mxu0 %v2764
        %v2981 = vpop.f32.mrb[0].mxu0
        %v2982 = vadd.f32 %v2828, %v2981
        %v2983 = vpop.f32.mrb[0].mxu0
        %2984 = vmatprep.mubr.f32.mxu0 0.0
        %2985 = vmatmul.mubr.f32.gmra.mrb[0].mxu0 %v2765
        %v2986 = vpop.f32.mrb[0].mxu0
        %v2987 = vadd.f32 %v2828, %v2986
        %v2988 = vpop.f32.mrb[0].mxu0
        %2989 = vmatprep.mubr.f32.mxu0 0.0
        %2990 = vmatmul.mubr.f32.gmra.mrb[0].mxu0 %v2766
        %v2991 = vpop.f32.mrb[0].mxu0
        %v2992 = vadd.f32 %v2828, %v2991
        %v2993 = vpop.f32.mrb[0].mxu0
        %2994 = vdwg.mxu0
        %v2995 = vmul.f32 %v2899, %v1386
        %v2996 = vmul.f32 %v2905, %v1386
        %v2997 = vmul.f32 %v2911, %v1386
        %2998 = vmatprep.subr.mxu0 0.0
        %2999 = vmatpush1.xpose.msra.mxu0 %v2901
        %3000 = vmatprep.subr.mxu0 0.0
        %3001 = vmatpush1.xpose.msra.mxu0 %v2907
        %3002 = vmatprep.subr.mxu0 0.0
        %3003 = vmatpush1.xpose.msra.mxu0 %v2913
        %3004 = vmatprep.subr.mxu0 0.0
        %3005 = vmatpush1.xpose.msra.mxu0 0.0
        %3006 = vmatprep.subr.mxu0 0.0
        %3007 = vmatpush1.xpose.msra.mxu0 0.0
        %3008 = vmatprep.subr.mxu0 0.0
        %3009 = vmatpush1.xpose.msra.mxu0 0.0
        %3010 = vmatprep.subr.mxu0 0.0
        %3011 = vmatpush1.xpose.msra.mxu0 0.0
        %3012 = vmatprep.subr.mxu0 0.0
        %3013 = vmatpush1.xpose.msra.mxu0 0.0
        %3014 = vmatprep.subr.mxu0 0.0
        %3015 = vmatpush1.xpose.msra.mxu0 0.0
        %3016 = vmatprep.subr.mxu0 0.0
        %3017 = vmatpush1.xpose.msra.mxu0 0.0
        %3018 = vmatprep.subr.mxu0 0.0
        %3019 = vmatpush1.xpose.msra.mxu0 0.0
        %3020 = vmatprep.subr.mxu0 0.0
        %3021 = vmatpush1.xpose.msra.mxu0 0.0
        %3022 = vmatprep.subr.mxu0 0.0
        %3023 = vmatpush1.xpose.msra.mxu0 0.0
        %3024 = vmatprep.subr.mxu0 0.0
        %3025 = vmatpush1.xpose.msra.mxu0 0.0
        %3026 = vmatprep.subr.mxu0 0.0
        %3027 = vmatpush1.xpose.msra.mxu0 0.0
        %3028 = vmatprep.subr.mxu0 0.0
        %3029 = vmatpush1.xpose.msra.mxu0 0.0
        %3030 = vmatprep.subr.mxu0 0.0
        %3031 = vmatpush1.xpose.msra.mxu0 0.0
        %3032 = vmatprep.subr.mxu0 0.0
        %3033 = vmatpush1.xpose.msra.mxu0 0.0
        %3034 = vmatprep.subr.mxu0 0.0
        %3035 = vmatpush1.xpose.msra.mxu0 0.0
        %3036 = vmatprep.subr.mxu0 0.0
        %3037 = vmatpush1.xpose.msra.mxu0 0.0
        %3038 = vmatprep.subr.mxu0 0.0
        %3039 = vmatpush1.xpose.msra.mxu0 0.0
        %3040 = vmatprep.subr.mxu0 0.0
        %3041 = vmatpush1.xpose.msra.mxu0 0.0
        %3042 = vmatprep.subr.mxu0 0.0
        %3043 = vmatpush1.xpose.msra.mxu0 0.0
        %3044 = vmatprep.subr.mxu0 0.0
        %3045 = vmatpush1.xpose.msra.mxu0 0.0
        %3046 = vmatprep.subr.mxu0 0.0
        %3047 = vmatpush1.xpose.msra.mxu0 0.0
        %3048 = vmatprep.subr.mxu0 0.0
        %3049 = vmatpush1.xpose.msra.mxu0 0.0
        %3050 = vmatprep.subr.mxu0 0.0
        %3051 = vmatpush1.xpose.msra.mxu0 0.0
        %3052 = vmatprep.subr.mxu0 0.0
        %3053 = vmatpush1.xpose.msra.mxu0 0.0
        %3054 = vmatprep.subr.mxu0 0.0
        %3055 = vmatpush1.xpose.msra.mxu0 0.0
        %3056 = vmatprep.subr.mxu0 0.0
        %3057 = vmatpush1.xpose.msra.mxu0 0.0
        %3058 = vmatprep.subr.mxu0 0.0
        %3059 = vmatpush1.xpose.msra.mxu0 0.0
        %3060 = vmatprep.subr.mxu0 0.0
        %3061 = vmatpush1.xpose.msra.mxu0 0.0
        %3062 = vmatprep.mubr.f32.mxu0 0.0
        %3063 = vmatmul.mubr.f32.gmra.mrb[0].mxu0 %v2995
        %v3064 = vpop.f32.mrb[0].mxu0
        %v3065 = vadd.f32 0.0, %v3064
        %v3066 = vpop.f32.mrb[0].mxu0
        %3067 = vmatprep.mubr.f32.mxu0 0.0
        %3068 = vmatmul.mubr.f32.gmra.mrb[0].mxu0 %v2996
        %v3069 = vpop.f32.mrb[0].mxu0
        %v3070 = vadd.f32 0.0, %v3069
        %v3071 = vpop.f32.mrb[0].mxu0
        %3072 = vmatprep.mubr.f32.mxu0 0.0
        %3073 = vmatmul.mubr.f32.gmra.mrb[0].mxu0 %v2997
        %v3074 = vpop.f32.mrb[0].mxu0
        %v3075 = vadd.f32 0.0, %v3074
        %v3076 = vpop.f32.mrb[0].mxu0
        %3077 = vdwg.mxu0
        %v3078 = vsel %vm1470, %v3065, -inf
        %3079 = vmax.xlane.f32.xlu0 %v3078
        %v3080 = vpop.xlane.xlu0 %3079
        %v3081 = vsel %vm1470, %v3070, -inf
        %3082 = vmax.xlane.f32.xlu0 %v3081
        %v3083 = vpop.xlane.xlu0 %3082
        %v3084 = vsel %vm1477, %v3075, -inf
        %3085 = vmax.xlane.f32.xlu0 %v3084
        %v3086 = vpop.xlane.xlu0 %3085
        %v3087 = vsub.f32 %v3065, %v3080
        %v3088 = vsub.f32 %v3070, %v3083
        %v3089 = vsub.f32 %v3075, %v3086
        %v3090 = vmul.f32 %v3087, 1.442695
        %v3091 = vpow.pop %v3090
        %v3092 = vmul.f32 %v3088, 1.442695
        %v3093 = vpow.pop %v3092
        %v3094 = vmul.f32 %v3089, 1.442695
        %v3095 = vpow.pop %v3094
        %v3096 = vsel %vm1470, %v3091, 0.0
        %3097 = vadd.xlane.f32.xlu0 %v3096
        %v3098 = vpop.xlane.xlu0 %3097
        %v3099 = vsel %vm1470, %v3093, 0.0
        %3100 = vadd.xlane.f32.xlu0 %v3099
        %v3101 = vpop.xlane.xlu0 %3100
        %v3102 = vsel %vm1477, %v3095, 0.0
        %3103 = vadd.xlane.f32.xlu0 %v3102
        %v3104 = vpop.xlane.xlu0 %3103
        %v3105 = vrcp.pop %v3098
        %v3106 = vmul.f32 %v3091, %v3105
        %v3107 = vrcp.pop %v3101
        %v3108 = vmul.f32 %v3093, %v3107
        %v3109 = vrcp.pop %v3104
        %v3110 = vmul.f32 %v3095, %v3109
        %v3111 = vmul.f32 %v2982, %v1085
        %v3112 = vmul.f32 %v2987, %v1085
        %v3113 = vmul.f32 %v2992, %v1085
        %v3114 = vmul.f32 %v2899, %v1508
        %v3115 = vmul.f32 %v2905, %v1508
        %v3116 = vmul.f32 %v2911, %v1508
        %3117 = vmatprep.subr.mxu0 0.0
        %3118 = vmatpush1.xpose.msra.mxu0 %v2901
        %3119 = vmatprep.subr.mxu0 0.0
        %3120 = vmatpush1.xpose.msra.mxu0 %v2907
        %3121 = vmatprep.subr.mxu0 0.0
        %3122 = vmatpush1.xpose.msra.mxu0 %v2913
        %3123 = vmatprep.subr.mxu0 0.0
        %3124 = vmatpush1.xpose.msra.mxu0 0.0
        %3125 = vmatprep.subr.mxu0 0.0
        %3126 = vmatpush1.xpose.msra.mxu0 0.0
        %3127 = vmatprep.subr.mxu0 0.0
        %3128 = vmatpush1.xpose.msra.mxu0 0.0
        %3129 = vmatprep.subr.mxu0 0.0
        %3130 = vmatpush1.xpose.msra.mxu0 0.0
        %3131 = vmatprep.subr.mxu0 0.0
        %3132 = vmatpush1.xpose.msra.mxu0 0.0
        %3133 = vmatprep.subr.mxu0 0.0
        %3134 = vmatpush1.xpose.msra.mxu0 0.0
        %3135 = vmatprep.subr.mxu0 0.0
        %3136 = vmatpush1.xpose.msra.mxu0 0.0
        %3137 = vmatprep.subr.mxu0 0.0
        %3138 = vmatpush1.xpose.msra.mxu0 0.0
        %3139 = vmatprep.subr.mxu0 0.0
        %3140 = vmatpush1.xpose.msra.mxu0 0.0
        %3141 = vmatprep.subr.mxu0 0.0
        %3142 = vmatpush1.xpose.msra.mxu0 0.0
        %3143 = vmatprep.subr.mxu0 0.0
        %3144 = vmatpush1.xpose.msra.mxu0 0.0
        %3145 = vmatprep.subr.mxu0 0.0
        %3146 = vmatpush1.xpose.msra.mxu0 0.0
        %3147 = vmatprep.subr.mxu0 0.0
        %3148 = vmatpush1.xpose.msra.mxu0 0.0
        %3149 = vmatprep.subr.mxu0 0.0
        %3150 = vmatpush1.xpose.msra.mxu0 0.0
        %3151 = vmatprep.subr.mxu0 0.0
        %3152 = vmatpush1.xpose.msra.mxu0 0.0
        %3153 = vmatprep.subr.mxu0 0.0
        %3154 = vmatpush1.xpose.msra.mxu0 0.0
        %3155 = vmatprep.subr.mxu0 0.0
        %3156 = vmatpush1.xpose.msra.mxu0 0.0
        %3157 = vmatprep.subr.mxu0 0.0
        %3158 = vmatpush1.xpose.msra.mxu0 0.0
        %3159 = vmatprep.subr.mxu0 0.0
        %3160 = vmatpush1.xpose.msra.mxu0 0.0
        %3161 = vmatprep.subr.mxu0 0.0
        %3162 = vmatpush1.xpose.msra.mxu0 0.0
        %3163 = vmatprep.subr.mxu0 0.0
        %3164 = vmatpush1.xpose.msra.mxu0 0.0
        %3165 = vmatprep.subr.mxu0 0.0
        %3166 = vmatpush1.xpose.msra.mxu0 0.0
        %3167 = vmatprep.subr.mxu0 0.0
        %3168 = vmatpush1.xpose.msra.mxu0 0.0
        %3169 = vmatprep.subr.mxu0 0.0
        %3170 = vmatpush1.xpose.msra.mxu0 0.0
        %3171 = vmatprep.subr.mxu0 0.0
        %3172 = vmatpush1.xpose.msra.mxu0 0.0
        %3173 = vmatprep.subr.mxu0 0.0
        %3174 = vmatpush1.xpose.msra.mxu0 0.0
        %3175 = vmatprep.subr.mxu0 0.0
        %3176 = vmatpush1.xpose.msra.mxu0 0.0
        %3177 = vmatprep.subr.mxu0 0.0
        %3178 = vmatpush1.xpose.msra.mxu0 0.0
        %3179 = vmatprep.subr.mxu0 0.0
        %3180 = vmatpush1.xpose.msra.mxu0 0.0
        %3181 = vmatprep.mubr.f32.mxu0 0.0
        %3182 = vmatmul.mubr.f32.gmra.mrb[0].mxu0 %v3114
        %v3183 = vpop.f32.mrb[0].mxu0
        %v3184 = vadd.f32 0.0, %v3183
        %v3185 = vpop.f32.mrb[0].mxu0
        %3186 = vmatprep.mubr.f32.mxu0 0.0
        %3187 = vmatmul.mubr.f32.gmra.mrb[0].mxu0 %v3115
        %v3188 = vpop.f32.mrb[0].mxu0
        %v3189 = vadd.f32 0.0, %v3188
        %v3190 = vpop.f32.mrb[0].mxu0
        %3191 = vmatprep.mubr.f32.mxu0 0.0
        %3192 = vmatmul.mubr.f32.gmra.mrb[0].mxu0 %v3116
        %v3193 = vpop.f32.mrb[0].mxu0
        %v3194 = vadd.f32 0.0, %v3193
        %v3195 = vpop.f32.mrb[0].mxu0
        %3196 = vdwg.mxu0
        %v3197 = vsel %vm1470, %v3184, -inf
        %3198 = vmax.xlane.f32.xlu0 %v3197
        %v3199 = vpop.xlane.xlu0 %3198
        %v3200 = vsel %vm1470, %v3189, -inf
        %3201 = vmax.xlane.f32.xlu0 %v3200
        %v3202 = vpop.xlane.xlu0 %3201
        %v3203 = vsel %vm1477, %v3194, -inf
        %3204 = vmax.xlane.f32.xlu0 %v3203
        %v3205 = vpop.xlane.xlu0 %3204
        %v3206 = vsub.f32 %v3184, %v3199
        %v3207 = vsub.f32 %v3189, %v3202
        %v3208 = vsub.f32 %v3194, %v3205
        %v3209 = vmul.f32 %v3206, 1.442695
        %v3210 = vpow.pop %v3209
        %v3211 = vmul.f32 %v3207, 1.442695
        %v3212 = vpow.pop %v3211
        %v3213 = vmul.f32 %v3208, 1.442695
        %v3214 = vpow.pop %v3213
        %v3215 = vsel %vm1470, %v3210, 0.0
        %3216 = vadd.xlane.f32.xlu0 %v3215
        %v3217 = vpop.xlane.xlu0 %3216
        %v3218 = vsel %vm1470, %v3212, 0.0
        %3219 = vadd.xlane.f32.xlu0 %v3218
        %v3220 = vpop.xlane.xlu0 %3219
        %v3221 = vsel %vm1477, %v3214, 0.0
        %3222 = vadd.xlane.f32.xlu0 %v3221
        %v3223 = vpop.xlane.xlu0 %3222
        %v3224 = vrcp.pop %v3217
        %v3225 = vmul.f32 %v3210, %v3224
        %v3226 = vrcp.pop %v3220
        %v3227 = vmul.f32 %v3212, %v3226
        %v3228 = vrcp.pop %v3223
        %v3229 = vmul.f32 %v3214, %v3228
        %v3230 = vmul.f32 %v2982, %v1090
        %v3231 = vmul.f32 %v2987, %v1090
        %v3232 = vmul.f32 %v2992, %v1090
        %v3234 = vsel %vm1470, %v3225, 0
        %v3237 = vsel %vm1470, %v3227, 0
        %v3240 = vsel %vm1470, %v3229, 0
        %v3243 = vsel %vm1107, %v3232, 0
        %3245 = vmatprep.subr.mxu0 0.0
        %3246 = vmatpush1.msra.mxu0 %v3230
        %3247 = vmatprep.subr.mxu0 0.0
        %3248 = vmatpush1.msra.mxu0 %v3231
        %3249 = vmatprep.subr.mxu0 0.0
        %3250 = vmatpush1.msra.mxu0 %v3243
        %3251 = vmatprep.subr.mxu0 0.0
        %3252 = vmatpush1.msra.mxu0 0.0
        %3253 = vmatprep.subr.mxu0 0.0
        %3254 = vmatpush1.msra.mxu0 0.0
        %3255 = vmatprep.subr.mxu0 0.0
        %3256 = vmatpush1.msra.mxu0 0.0
        %3257 = vmatprep.subr.mxu0 0.0
        %3258 = vmatpush1.msra.mxu0 0.0
        %3259 = vmatprep.subr.mxu0 0.0
        %3260 = vmatpush1.msra.mxu0 0.0
        %3261 = vmatprep.subr.mxu0 0.0
        %3262 = vmatpush1.msra.mxu0 0.0
        %3263 = vmatprep.subr.mxu0 0.0
        %3264 = vmatpush1.msra.mxu0 0.0
        %3265 = vmatprep.subr.mxu0 0.0
        %3266 = vmatpush1.msra.mxu0 0.0
        %3267 = vmatprep.subr.mxu0 0.0
        %3268 = vmatpush1.msra.mxu0 0.0
        %3269 = vmatprep.subr.mxu0 0.0
        %3270 = vmatpush1.msra.mxu0 0.0
        %3271 = vmatprep.subr.mxu0 0.0
        %3272 = vmatpush1.msra.mxu0 0.0
        %3273 = vmatprep.subr.mxu0 0.0
        %3274 = vmatpush1.msra.mxu0 0.0
        %3275 = vmatprep.subr.mxu0 0.0
        %3276 = vmatpush1.msra.mxu0 0.0
        %3277 = vmatprep.subr.mxu0 0.0
        %3278 = vmatpush1.msra.mxu0 0.0
        %3279 = vmatprep.subr.mxu0 0.0
        %3280 = vmatpush1.msra.mxu0 0.0
        %3281 = vmatprep.subr.mxu0 0.0
        %3282 = vmatpush1.msra.mxu0 0.0
        %3283 = vmatprep.subr.mxu0 0.0
        %3284 = vmatpush1.msra.mxu0 0.0
        %3285 = vmatprep.subr.mxu0 0.0
        %3286 = vmatpush1.msra.mxu0 0.0
        %3287 = vmatprep.subr.mxu0 0.0
        %3288 = vmatpush1.msra.mxu0 0.0
        %3289 = vmatprep.subr.mxu0 0.0
        %3290 = vmatpush1.msra.mxu0 0.0
        %3291 = vmatprep.subr.mxu0 0.0
        %3292 = vmatpush1.msra.mxu0 0.0
        %3293 = vmatprep.subr.mxu0 0.0
        %3294 = vmatpush1.msra.mxu0 0.0
        %3295 = vmatprep.subr.mxu0 0.0
        %3296 = vmatpush1.msra.mxu0 0.0
        %3297 = vmatprep.subr.mxu0 0.0
        %3298 = vmatpush1.msra.mxu0 0.0
        %3299 = vmatprep.subr.mxu0 0.0
        %3300 = vmatpush1.msra.mxu0 0.0
        %3301 = vmatprep.subr.mxu0 0.0
        %3302 = vmatpush1.msra.mxu0 0.0
        %3303 = vmatprep.subr.mxu0 0.0
        %3304 = vmatpush1.msra.mxu0 0.0
        %3305 = vmatprep.subr.mxu0 0.0
        %3306 = vmatpush1.msra.mxu0 0.0
        %3307 = vmatprep.subr.mxu0 0.0
        %3308 = vmatpush1.msra.mxu0 0.0
        %3309 = vmatprep.mubr.f32.mxu0 0.0
        %3310 = vmatmul.mubr.f32.gmra.mrb[0].mxu0 %v3234
        %v3311 = vpop.f32.mrb[0].mxu0
        %v3312 = vadd.f32 0.0, %v3311
        %v3313 = vpop.f32.mrb[0].mxu0
        %3314 = vmatprep.mubr.f32.mxu0 0.0
        %3315 = vmatmul.mubr.f32.gmra.mrb[0].mxu0 %v3237
        %v3316 = vpop.f32.mrb[0].mxu0
        %v3317 = vadd.f32 0.0, %v3316
        %v3318 = vpop.f32.mrb[0].mxu0
        %3319 = vmatprep.mubr.f32.mxu0 0.0
        %3320 = vmatmul.mubr.f32.gmra.mrb[0].mxu0 %v3240
        %v3321 = vpop.f32.mrb[0].mxu0
        %v3322 = vadd.f32 0.0, %v3321
        %v3323 = vpop.f32.mrb[0].mxu0
        %3324 = vdwg.mxu0
        %v3326 = vsel %vm1470, %v3106, 0
        %v3329 = vsel %vm1470, %v3108, 0
        %v3332 = vsel %vm1470, %v3110, 0
        %v3335 = vsel %vm1107, %v3113, 0
        %3337 = vmatprep.subr.mxu0 0.0
        %3338 = vmatpush1.msra.mxu0 %v3111
        %3339 = vmatprep.subr.mxu0 0.0
        %3340 = vmatpush1.msra.mxu0 %v3112
        %3341 = vmatprep.subr.mxu0 0.0
        %3342 = vmatpush1.msra.mxu0 %v3335
        %3343 = vmatprep.subr.mxu0 0.0
        %3344 = vmatpush1.msra.mxu0 0.0
        %3345 = vmatprep.subr.mxu0 0.0
        %3346 = vmatpush1.msra.mxu0 0.0
        %3347 = vmatprep.subr.mxu0 0.0
        %3348 = vmatpush1.msra.mxu0 0.0
        %3349 = vmatprep.subr.mxu0 0.0
        %3350 = vmatpush1.msra.mxu0 0.0
        %3351 = vmatprep.subr.mxu0 0.0
        %3352 = vmatpush1.msra.mxu0 0.0
        %3353 = vmatprep.subr.mxu0 0.0
        %3354 = vmatpush1.msra.mxu0 0.0
        %3355 = vmatprep.subr.mxu0 0.0
        %3356 = vmatpush1.msra.mxu0 0.0
        %3357 = vmatprep.subr.mxu0 0.0
        %3358 = vmatpush1.msra.mxu0 0.0
        %3359 = vmatprep.subr.mxu0 0.0
        %3360 = vmatpush1.msra.mxu0 0.0
        %3361 = vmatprep.subr.mxu0 0.0
        %3362 = vmatpush1.msra.mxu0 0.0
        %3363 = vmatprep.subr.mxu0 0.0
        %3364 = vmatpush1.msra.mxu0 0.0
        %3365 = vmatprep.subr.mxu0 0.0
        %3366 = vmatpush1.msra.mxu0 0.0
        %3367 = vmatprep.subr.mxu0 0.0
        %3368 = vmatpush1.msra.mxu0 0.0
        %3369 = vmatprep.subr.mxu0 0.0
        %3370 = vmatpush1.msra.mxu0 0.0
        %3371 = vmatprep.subr.mxu0 0.0
        %3372 = vmatpush1.msra.mxu0 0.0
        %3373 = vmatprep.subr.mxu0 0.0
        %3374 = vmatpush1.msra.mxu0 0.0
        %3375 = vmatprep.subr.mxu0 0.0
        %3376 = vmatpush1.msra.mxu0 0.0
        %3377 = vmatprep.subr.mxu0 0.0
        %3378 = vmatpush1.msra.mxu0 0.0
        %3379 = vmatprep.subr.mxu0 0.0
        %3380 = vmatpush1.msra.mxu0 0.0
        %3381 = vmatprep.subr.mxu0 0.0
        %3382 = vmatpush1.msra.mxu0 0.0
        %3383 = vmatprep.subr.mxu0 0.0
        %3384 = vmatpush1.msra.mxu0 0.0
        %3385 = vmatprep.subr.mxu0 0.0
        %3386 = vmatpush1.msra.mxu0 0.0
        %3387 = vmatprep.subr.mxu0 0.0
        %3388 = vmatpush1.msra.mxu0 0.0
        %3389 = vmatprep.subr.mxu0 0.0
        %3390 = vmatpush1.msra.mxu0 0.0
        %3391 = vmatprep.subr.mxu0 0.0
        %3392 = vmatpush1.msra.mxu0 0.0
        %3393 = vmatprep.subr.mxu0 0.0
        %3394 = vmatpush1.msra.mxu0 0.0
        %3395 = vmatprep.subr.mxu0 0.0
        %3396 = vmatpush1.msra.mxu0 0.0
        %3397 = vmatprep.subr.mxu0 0.0
        %3398 = vmatpush1.msra.mxu0 0.0
        %3399 = vmatprep.subr.mxu0 0.0
        %3400 = vmatpush1.msra.mxu0 0.0
        %3401 = vmatprep.mubr.f32.mxu0 0.0
        %3402 = vmatmul.mubr.f32.gmra.mrb[0].mxu0 %v3326
        %v3403 = vpop.f32.mrb[0].mxu0
        %v3404 = vadd.f32 %v3312, %v3403
        %v3405 = vpop.f32.mrb[0].mxu0
        %3406 = vmatprep.mubr.f32.mxu0 0.0
        %3407 = vmatmul.mubr.f32.gmra.mrb[0].mxu0 %v3329
        %v3408 = vpop.f32.mrb[0].mxu0
        %v3409 = vadd.f32 %v3317, %v3408
        %v3410 = vpop.f32.mrb[0].mxu0
        %3411 = vmatprep.mubr.f32.mxu0 0.0
        %3412 = vmatmul.mubr.f32.gmra.mrb[0].mxu0 %v3332
        %v3413 = vpop.f32.mrb[0].mxu0
        %v3414 = vadd.f32 %v3322, %v3413
        %v3415 = vpop.f32.mrb[0].mxu0
        %3416 = vdwg.mxu0
        %v3417 = vmul.f32 %v2899, %v1812
        %v3418 = vmul.f32 %v2905, %v1812
        %v3419 = vmul.f32 %v2911, %v1812
        %3420 = vmatprep.subr.mxu0 0.0
        %3421 = vmatpush1.xpose.msra.mxu0 %v2901
        %3422 = vmatprep.subr.mxu0 0.0
        %3423 = vmatpush1.xpose.msra.mxu0 %v2907
        %3424 = vmatprep.subr.mxu0 0.0
        %3425 = vmatpush1.xpose.msra.mxu0 %v2913
        %3426 = vmatprep.subr.mxu0 0.0
        %3427 = vmatpush1.xpose.msra.mxu0 0.0
        %3428 = vmatprep.subr.mxu0 0.0
        %3429 = vmatpush1.xpose.msra.mxu0 0.0
        %3430 = vmatprep.subr.mxu0 0.0
        %3431 = vmatpush1.xpose.msra.mxu0 0.0
        %3432 = vmatprep.subr.mxu0 0.0
        %3433 = vmatpush1.xpose.msra.mxu0 0.0
        %3434 = vmatprep.subr.mxu0 0.0
        %3435 = vmatpush1.xpose.msra.mxu0 0.0
        %3436 = vmatprep.subr.mxu0 0.0
        %3437 = vmatpush1.xpose.msra.mxu0 0.0
        %3438 = vmatprep.subr.mxu0 0.0
        %3439 = vmatpush1.xpose.msra.mxu0 0.0
        %3440 = vmatprep.subr.mxu0 0.0
        %3441 = vmatpush1.xpose.msra.mxu0 0.0
        %3442 = vmatprep.subr.mxu0 0.0
        %3443 = vmatpush1.xpose.msra.mxu0 0.0
        %3444 = vmatprep.subr.mxu0 0.0
        %3445 = vmatpush1.xpose.msra.mxu0 0.0
        %3446 = vmatprep.subr.mxu0 0.0
        %3447 = vmatpush1.xpose.msra.mxu0 0.0
        %3448 = vmatprep.subr.mxu0 0.0
        %3449 = vmatpush1.xpose.msra.mxu0 0.0
        %3450 = vmatprep.subr.mxu0 0.0
        %3451 = vmatpush1.xpose.msra.mxu0 0.0
        %3452 = vmatprep.subr.mxu0 0.0
        %3453 = vmatpush1.xpose.msra.mxu0 0.0
        %3454 = vmatprep.subr.mxu0 0.0
        %3455 = vmatpush1.xpose.msra.mxu0 0.0
        %3456 = vmatprep.subr.mxu0 0.0
        %3457 = vmatpush1.xpose.msra.mxu0 0.0
        %3458 = vmatprep.subr.mxu0 0.0
        %3459 = vmatpush1.xpose.msra.mxu0 0.0
        %3460 = vmatprep.subr.mxu0 0.0
        %3461 = vmatpush1.xpose.msra.mxu0 0.0
        %3462 = vmatprep.subr.mxu0 0.0
        %3463 = vmatpush1.xpose.msra.mxu0 0.0
        %3464 = vmatprep.subr.mxu0 0.0
        %3465 = vmatpush1.xpose.msra.mxu0 0.0
        %3466 = vmatprep.subr.mxu0 0.0
        %3467 = vmatpush1.xpose.msra.mxu0 0.0
        %3468 = vmatprep.subr.mxu0 0.0
        %3469 = vmatpush1.xpose.msra.mxu0 0.0
        %3470 = vmatprep.subr.mxu0 0.0
        %3471 = vmatpush1.xpose.msra.mxu0 0.0
        %3472 = vmatprep.subr.mxu0 0.0
        %3473 = vmatpush1.xpose.msra.mxu0 0.0
        %3474 = vmatprep.subr.mxu0 0.0
        %3475 = vmatpush1.xpose.msra.mxu0 0.0
        %3476 = vmatprep.subr.mxu0 0.0
        %3477 = vmatpush1.xpose.msra.mxu0 0.0
        %3478 = vmatprep.subr.mxu0 0.0
        %3479 = vmatpush1.xpose.msra.mxu0 0.0
        %3480 = vmatprep.subr.mxu0 0.0
        %3481 = vmatpush1.xpose.msra.mxu0 0.0
        %3482 = vmatprep.subr.mxu0 0.0
        %3483 = vmatpush1.xpose.msra.mxu0 0.0
        %3484 = vmatprep.mubr.f32.mxu0 0.0
        %3485 = vmatmul.mubr.f32.gmra.mrb[0].mxu0 %v3417
        %v3486 = vpop.f32.mrb[0].mxu0
        %v3487 = vadd.f32 0.0, %v3486
        %v3488 = vpop.f32.mrb[0].mxu0
        %3489 = vmatprep.mubr.f32.mxu0 0.0
        %3490 = vmatmul.mubr.f32.gmra.mrb[0].mxu0 %v3418
        %v3491 = vpop.f32.mrb[0].mxu0
        %v3492 = vadd.f32 0.0, %v3491
        %v3493 = vpop.f32.mrb[0].mxu0
        %3494 = vmatprep.mubr.f32.mxu0 0.0
        %3495 = vmatmul.mubr.f32.gmra.mrb[0].mxu0 %v3419
        %v3496 = vpop.f32.mrb[0].mxu0
        %v3497 = vadd.f32 0.0, %v3496
        %v3498 = vpop.f32.mrb[0].mxu0
        %3499 = vdwg.mxu0
        %v3500 = vsel %vm1470, %v3487, -inf
        %3501 = vmax.xlane.f32.xlu0 %v3500
        %v3502 = vpop.xlane.xlu0 %3501
        %v3503 = vsel %vm1470, %v3492, -inf
        %3504 = vmax.xlane.f32.xlu0 %v3503
        %v3505 = vpop.xlane.xlu0 %3504
        %v3506 = vsel %vm1477, %v3497, -inf
        %3507 = vmax.xlane.f32.xlu0 %v3506
        %v3508 = vpop.xlane.xlu0 %3507
        %v3509 = vsub.f32 %v3487, %v3502
        %v3510 = vsub.f32 %v3492, %v3505
        %v3511 = vsub.f32 %v3497, %v3508
        %v3512 = vmul.f32 %v3509, 1.442695
        %v3513 = vpow.pop %v3512
        %v3514 = vmul.f32 %v3510, 1.442695
        %v3515 = vpow.pop %v3514
        %v3516 = vmul.f32 %v3511, 1.442695
        %v3517 = vpow.pop %v3516
        %v3518 = vsel %vm1470, %v3513, 0.0
        %3519 = vadd.xlane.f32.xlu0 %v3518
        %v3520 = vpop.xlane.xlu0 %3519
        %v3521 = vsel %vm1470, %v3515, 0.0
        %3522 = vadd.xlane.f32.xlu0 %v3521
        %v3523 = vpop.xlane.xlu0 %3522
        %v3524 = vsel %vm1477, %v3517, 0.0
        %3525 = vadd.xlane.f32.xlu0 %v3524
        %v3526 = vpop.xlane.xlu0 %3525
        %v3527 = vrcp.pop %v3520
        %v3528 = vmul.f32 %v3513, %v3527
        %v3529 = vrcp.pop %v3523
        %v3530 = vmul.f32 %v3515, %v3529
        %v3531 = vrcp.pop %v3526
        %v3532 = vmul.f32 %v3517, %v3531
        %v3533 = vmul.f32 %v2982, %v1095
        %v3534 = vmul.f32 %v2987, %v1095
        %v3535 = vmul.f32 %v2992, %v1095
        %v3537 = vsel %vm1470, %v3528, 0
        %v3540 = vsel %vm1470, %v3530, 0
        %v3543 = vsel %vm1470, %v3532, 0
        %v3546 = vsel %vm1107, %v3535, 0
        %3548 = vmatprep.subr.mxu0 0.0
        %3549 = vmatpush1.msra.mxu0 %v3533
        %3550 = vmatprep.subr.mxu0 0.0
        %3551 = vmatpush1.msra.mxu0 %v3534
        %3552 = vmatprep.subr.mxu0 0.0
        %3553 = vmatpush1.msra.mxu0 %v3546
        %3554 = vmatprep.subr.mxu0 0.0
        %3555 = vmatpush1.msra.mxu0 0.0
        %3556 = vmatprep.subr.mxu0 0.0
        %3557 = vmatpush1.msra.mxu0 0.0
        %3558 = vmatprep.subr.mxu0 0.0
        %3559 = vmatpush1.msra.mxu0 0.0
        %3560 = vmatprep.subr.mxu0 0.0
        %3561 = vmatpush1.msra.mxu0 0.0
        %3562 = vmatprep.subr.mxu0 0.0
        %3563 = vmatpush1.msra.mxu0 0.0
        %3564 = vmatprep.subr.mxu0 0.0
        %3565 = vmatpush1.msra.mxu0 0.0
        %3566 = vmatprep.subr.mxu0 0.0
        %3567 = vmatpush1.msra.mxu0 0.0
        %3568 = vmatprep.subr.mxu0 0.0
        %3569 = vmatpush1.msra.mxu0 0.0
        %3570 = vmatprep.subr.mxu0 0.0
        %3571 = vmatpush1.msra.mxu0 0.0
        %3572 = vmatprep.subr.mxu0 0.0
        %3573 = vmatpush1.msra.mxu0 0.0
        %3574 = vmatprep.subr.mxu0 0.0
        %3575 = vmatpush1.msra.mxu0 0.0
        %3576 = vmatprep.subr.mxu0 0.0
        %3577 = vmatpush1.msra.mxu0 0.0
        %3578 = vmatprep.subr.mxu0 0.0
        %3579 = vmatpush1.msra.mxu0 0.0
        %3580 = vmatprep.subr.mxu0 0.0
        %3581 = vmatpush1.msra.mxu0 0.0
        %3582 = vmatprep.subr.mxu0 0.0
        %3583 = vmatpush1.msra.mxu0 0.0
        %3584 = vmatprep.subr.mxu0 0.0
        %3585 = vmatpush1.msra.mxu0 0.0
        %3586 = vmatprep.subr.mxu0 0.0
        %3587 = vmatpush1.msra.mxu0 0.0
        %3588 = vmatprep.subr.mxu0 0.0
        %3589 = vmatpush1.msra.mxu0 0.0
        %3590 = vmatprep.subr.mxu0 0.0
        %3591 = vmatpush1.msra.mxu0 0.0
        %3592 = vmatprep.subr.mxu0 0.0
        %3593 = vmatpush1.msra.mxu0 0.0
        %3594 = vmatprep.subr.mxu0 0.0
        %3595 = vmatpush1.msra.mxu0 0.0
        %3596 = vmatprep.subr.mxu0 0.0
        %3597 = vmatpush1.msra.mxu0 0.0
        %3598 = vmatprep.subr.mxu0 0.0
        %3599 = vmatpush1.msra.mxu0 0.0
        %3600 = vmatprep.subr.mxu0 0.0
        %3601 = vmatpush1.msra.mxu0 0.0
        %3602 = vmatprep.subr.mxu0 0.0
        %3603 = vmatpush1.msra.mxu0 0.0
        %3604 = vmatprep.subr.mxu0 0.0
        %3605 = vmatpush1.msra.mxu0 0.0
        %3606 = vmatprep.subr.mxu0 0.0
        %3607 = vmatpush1.msra.mxu0 0.0
        %3608 = vmatprep.subr.mxu0 0.0
        %3609 = vmatpush1.msra.mxu0 0.0
        %3610 = vmatprep.subr.mxu0 0.0
        %3611 = vmatpush1.msra.mxu0 0.0
        %3612 = vmatprep.mubr.f32.mxu0 0.0
        %3613 = vmatmul.mubr.f32.gmra.mrb[0].mxu0 %v3537
        %v3614 = vpop.f32.mrb[0].mxu0
        %v3615 = vadd.f32 0.0, %v3614
        %v3616 = vpop.f32.mrb[0].mxu0
        %3617 = vmatprep.mubr.f32.mxu0 0.0
        %3618 = vmatmul.mubr.f32.gmra.mrb[0].mxu0 %v3540
        %v3619 = vpop.f32.mrb[0].mxu0
        %v3620 = vadd.f32 0.0, %v3619
        %v3621 = vpop.f32.mrb[0].mxu0
        %3622 = vmatprep.mubr.f32.mxu0 0.0
        %3623 = vmatmul.mubr.f32.gmra.mrb[0].mxu0 %v3543
        %v3624 = vpop.f32.mrb[0].mxu0
        %v3625 = vadd.f32 0.0, %v3624
        %v3626 = vpop.f32.mrb[0].mxu0
        %3627 = vdwg.mxu0
        %v3628 = vadd.f32 %v3404, %v3615
        %v3629 = vadd.f32 %v3409, %v3620
        %v3630 = vadd.f32 %v3414, %v3625
        %v3631 = vmul.f32 %v2899, %v2027
        %v3632 = vmul.f32 %v2905, %v2027
        %v3633 = vmul.f32 %v2911, %v2027
        %3634 = vmatprep.subr.mxu0 0.0
        %3635 = vmatpush1.xpose.msra.mxu0 %v2901
        %3636 = vmatprep.subr.mxu0 0.0
        %3637 = vmatpush1.xpose.msra.mxu0 %v2907
        %3638 = vmatprep.subr.mxu0 0.0
        %3639 = vmatpush1.xpose.msra.mxu0 %v2913
        %3640 = vmatprep.subr.mxu0 0.0
        %3641 = vmatpush1.xpose.msra.mxu0 0.0
        %3642 = vmatprep.subr.mxu0 0.0
        %3643 = vmatpush1.xpose.msra.mxu0 0.0
        %3644 = vmatprep.subr.mxu0 0.0
        %3645 = vmatpush1.xpose.msra.mxu0 0.0
        %3646 = vmatprep.subr.mxu0 0.0
        %3647 = vmatpush1.xpose.msra.mxu0 0.0
        %3648 = vmatprep.subr.mxu0 0.0
        %3649 = vmatpush1.xpose.msra.mxu0 0.0
        %3650 = vmatprep.subr.mxu0 0.0
        %3651 = vmatpush1.xpose.msra.mxu0 0.0
        %3652 = vmatprep.subr.mxu0 0.0
        %3653 = vmatpush1.xpose.msra.mxu0 0.0
        %3654 = vmatprep.subr.mxu0 0.0
        %3655 = vmatpush1.xpose.msra.mxu0 0.0
        %3656 = vmatprep.subr.mxu0 0.0
        %3657 = vmatpush1.xpose.msra.mxu0 0.0
        %3658 = vmatprep.subr.mxu0 0.0
        %3659 = vmatpush1.xpose.msra.mxu0 0.0
        %3660 = vmatprep.subr.mxu0 0.0
        %3661 = vmatpush1.xpose.msra.mxu0 0.0
        %3662 = vmatprep.subr.mxu0 0.0
        %3663 = vmatpush1.xpose.msra.mxu0 0.0
        %3664 = vmatprep.subr.mxu0 0.0
        %3665 = vmatpush1.xpose.msra.mxu0 0.0
        %3666 = vmatprep.subr.mxu0 0.0
        %3667 = vmatpush1.xpose.msra.mxu0 0.0
        %3668 = vmatprep.subr.mxu0 0.0
        %3669 = vmatpush1.xpose.msra.mxu0 0.0
        %3670 = vmatprep.subr.mxu0 0.0
        %3671 = vmatpush1.xpose.msra.mxu0 0.0
        %3672 = vmatprep.subr.mxu0 0.0
        %3673 = vmatpush1.xpose.msra.mxu0 0.0
        %3674 = vmatprep.subr.mxu0 0.0
        %3675 = vmatpush1.xpose.msra.mxu0 0.0
        %3676 = vmatprep.subr.mxu0 0.0
        %3677 = vmatpush1.xpose.msra.mxu0 0.0
        %3678 = vmatprep.subr.mxu0 0.0
        %3679 = vmatpush1.xpose.msra.mxu0 0.0
        %3680 = vmatprep.subr.mxu0 0.0
        %3681 = vmatpush1.xpose.msra.mxu0 0.0
        %3682 = vmatprep.subr.mxu0 0.0
        %3683 = vmatpush1.xpose.msra.mxu0 0.0
        %3684 = vmatprep.subr.mxu0 0.0
        %3685 = vmatpush1.xpose.msra.mxu0 0.0
        %3686 = vmatprep.subr.mxu0 0.0
        %3687 = vmatpush1.xpose.msra.mxu0 0.0
        %3688 = vmatprep.subr.mxu0 0.0
        %3689 = vmatpush1.xpose.msra.mxu0 0.0
        %3690 = vmatprep.subr.mxu0 0.0
        %3691 = vmatpush1.xpose.msra.mxu0 0.0
        %3692 = vmatprep.subr.mxu0 0.0
        %3693 = vmatpush1.xpose.msra.mxu0 0.0
        %3694 = vmatprep.subr.mxu0 0.0
        %3695 = vmatpush1.xpose.msra.mxu0 0.0
        %3696 = vmatprep.subr.mxu0 0.0
        %3697 = vmatpush1.xpose.msra.mxu0 0.0
        %3698 = vmatprep.mubr.f32.mxu0 0.0
        %3699 = vmatmul.mubr.f32.gmra.mrb[0].mxu0 %v3631
        %v3700 = vpop.f32.mrb[0].mxu0
        %v3701 = vadd.f32 0.0, %v3700
        %v3702 = vpop.f32.mrb[0].mxu0
        %3703 = vmatprep.mubr.f32.mxu0 0.0
        %3704 = vmatmul.mubr.f32.gmra.mrb[0].mxu0 %v3632
        %v3705 = vpop.f32.mrb[0].mxu0
        %v3706 = vadd.f32 0.0, %v3705
        %v3707 = vpop.f32.mrb[0].mxu0
        %3708 = vmatprep.mubr.f32.mxu0 0.0
        %3709 = vmatmul.mubr.f32.gmra.mrb[0].mxu0 %v3633
        %v3710 = vpop.f32.mrb[0].mxu0
        %v3711 = vadd.f32 0.0, %v3710
        %v3712 = vpop.f32.mrb[0].mxu0
        %3713 = vdwg.mxu0
        %v3714 = vsel %vm1470, %v3701, -inf
        %3715 = vmax.xlane.f32.xlu0 %v3714
        %v3716 = vpop.xlane.xlu0 %3715
        %v3717 = vsel %vm1470, %v3706, -inf
        %3718 = vmax.xlane.f32.xlu0 %v3717
        %v3719 = vpop.xlane.xlu0 %3718
        %v3720 = vsel %vm1477, %v3711, -inf
        %3721 = vmax.xlane.f32.xlu0 %v3720
        %v3722 = vpop.xlane.xlu0 %3721
        %v3723 = vsub.f32 %v3701, %v3716
        %v3724 = vsub.f32 %v3706, %v3719
        %v3725 = vsub.f32 %v3711, %v3722
        %v3726 = vmul.f32 %v3723, 1.442695
        %v3727 = vpow.pop %v3726
        %v3728 = vmul.f32 %v3724, 1.442695
        %v3729 = vpow.pop %v3728
        %v3730 = vmul.f32 %v3725, 1.442695
        %v3731 = vpow.pop %v3730
        %v3732 = vsel %vm1470, %v3727, 0.0
        %3733 = vadd.xlane.f32.xlu0 %v3732
        %v3734 = vpop.xlane.xlu0 %3733
        %v3735 = vsel %vm1470, %v3729, 0.0
        %3736 = vadd.xlane.f32.xlu0 %v3735
        %v3737 = vpop.xlane.xlu0 %3736
        %v3738 = vsel %vm1477, %v3731, 0.0
        %3739 = vadd.xlane.f32.xlu0 %v3738
        %v3740 = vpop.xlane.xlu0 %3739
        %v3741 = vrcp.pop %v3734
        %v3742 = vmul.f32 %v3727, %v3741
        %v3743 = vrcp.pop %v3737
        %v3744 = vmul.f32 %v3729, %v3743
        %v3745 = vrcp.pop %v3740
        %v3746 = vmul.f32 %v3731, %v3745
        %v3747 = vmul.f32 %v2982, %v1100
        %v3748 = vmul.f32 %v2987, %v1100
        %v3749 = vmul.f32 %v2992, %v1100
        %v3751 = vsel %vm1470, %v3742, 0
        %v3754 = vsel %vm1470, %v3744, 0
        %v3757 = vsel %vm1470, %v3746, 0
        %v3760 = vsel %vm1107, %v3749, 0
        %3762 = vmatprep.subr.mxu0 0.0
        %3763 = vmatpush1.msra.mxu0 %v3747
        %3764 = vmatprep.subr.mxu0 0.0
        %3765 = vmatpush1.msra.mxu0 %v3748
        %3766 = vmatprep.subr.mxu0 0.0
        %3767 = vmatpush1.msra.mxu0 %v3760
        %3768 = vmatprep.subr.mxu0 0.0
        %3769 = vmatpush1.msra.mxu0 0.0
        %3770 = vmatprep.subr.mxu0 0.0
        %3771 = vmatpush1.msra.mxu0 0.0
        %3772 = vmatprep.subr.mxu0 0.0
        %3773 = vmatpush1.msra.mxu0 0.0
        %3774 = vmatprep.subr.mxu0 0.0
        %3775 = vmatpush1.msra.mxu0 0.0
        %3776 = vmatprep.subr.mxu0 0.0
        %3777 = vmatpush1.msra.mxu0 0.0
        %3778 = vmatprep.subr.mxu0 0.0
        %3779 = vmatpush1.msra.mxu0 0.0
        %3780 = vmatprep.subr.mxu0 0.0
        %3781 = vmatpush1.msra.mxu0 0.0
        %3782 = vmatprep.subr.mxu0 0.0
        %3783 = vmatpush1.msra.mxu0 0.0
        %3784 = vmatprep.subr.mxu0 0.0
        %3785 = vmatpush1.msra.mxu0 0.0
        %3786 = vmatprep.subr.mxu0 0.0
        %3787 = vmatpush1.msra.mxu0 0.0
        %3788 = vmatprep.subr.mxu0 0.0
        %3789 = vmatpush1.msra.mxu0 0.0
        %3790 = vmatprep.subr.mxu0 0.0
        %3791 = vmatpush1.msra.mxu0 0.0
        %3792 = vmatprep.subr.mxu0 0.0
        %3793 = vmatpush1.msra.mxu0 0.0
        %3794 = vmatprep.subr.mxu0 0.0
        %3795 = vmatpush1.msra.mxu0 0.0
        %3796 = vmatprep.subr.mxu0 0.0
        %3797 = vmatpush1.msra.mxu0 0.0
        %3798 = vmatprep.subr.mxu0 0.0
        %3799 = vmatpush1.msra.mxu0 0.0
        %3800 = vmatprep.subr.mxu0 0.0
        %3801 = vmatpush1.msra.mxu0 0.0
        %3802 = vmatprep.subr.mxu0 0.0
        %3803 = vmatpush1.msra.mxu0 0.0
        %3804 = vmatprep.subr.mxu0 0.0
        %3805 = vmatpush1.msra.mxu0 0.0
        %3806 = vmatprep.subr.mxu0 0.0
        %3807 = vmatpush1.msra.mxu0 0.0
        %3808 = vmatprep.subr.mxu0 0.0
        %3809 = vmatpush1.msra.mxu0 0.0
        %3810 = vmatprep.subr.mxu0 0.0
        %3811 = vmatpush1.msra.mxu0 0.0
        %3812 = vmatprep.subr.mxu0 0.0
        %3813 = vmatpush1.msra.mxu0 0.0
        %3814 = vmatprep.subr.mxu0 0.0
        %3815 = vmatpush1.msra.mxu0 0.0
        %3816 = vmatprep.subr.mxu0 0.0
        %3817 = vmatpush1.msra.mxu0 0.0
        %3818 = vmatprep.subr.mxu0 0.0
        %3819 = vmatpush1.msra.mxu0 0.0
        %3820 = vmatprep.subr.mxu0 0.0
        %3821 = vmatpush1.msra.mxu0 0.0
        %3822 = vmatprep.subr.mxu0 0.0
        %3823 = vmatpush1.msra.mxu0 0.0
        %3824 = vmatprep.subr.mxu0 0.0
        %3825 = vmatpush1.msra.mxu0 0.0
        %3826 = vmatprep.mubr.f32.mxu0 0.0
        %3827 = vmatmul.mubr.f32.gmra.mrb[0].mxu0 %v3751
        %v3828 = vpop.f32.mrb[0].mxu0
        %v3829 = vadd.f32 0.0, %v3828
        %v3830 = vpop.f32.mrb[0].mxu0
        %3831 = vmatprep.mubr.f32.mxu0 0.0
        %3832 = vmatmul.mubr.f32.gmra.mrb[0].mxu0 %v3754
        %v3833 = vpop.f32.mrb[0].mxu0
        %v3834 = vadd.f32 0.0, %v3833
        %v3835 = vpop.f32.mrb[0].mxu0
        %3836 = vmatprep.mubr.f32.mxu0 0.0
        %3837 = vmatmul.mubr.f32.gmra.mrb[0].mxu0 %v3757
        %v3838 = vpop.f32.mrb[0].mxu0
        %v3839 = vadd.f32 0.0, %v3838
        %v3840 = vpop.f32.mrb[0].mxu0
        %3841 = vdwg.mxu0
        %v3842 = vadd.f32 %v3628, %v3829
        %v3843 = vadd.f32 %v3629, %v3834
        %v3844 = vadd.f32 %v3630, %v3839
        %v3845 = vld [vmem:[%s39] sm:$0xff]
        %v3846 = vld [vmem:[%s39 + $0x8] sm:$0xff]
        %v3847 = vld [vmem:[%s39 + $0x10] sm:$0xff]
        %v3848 = vld [vmem:[%s39 + $0x18] sm:$0xff]
        %v3849 = vld [vmem:[%s39 + $0x20] sm:$0xff]
        %v3850 = vld [vmem:[%s39 + $0x28] sm:$0xff]
        %v3851 = vld [vmem:[%s39 + $0x30] sm:$0xff]
        %v3852 = vld [vmem:[%s39 + $0x38] sm:$0xff]
        %v3853 = vld [vmem:[%s39 + $0x40] sm:$0xff]
        %v3854 = vld [vmem:[%s39 + $0x48] sm:$0xff]
        %v3855 = vld [vmem:[%s39 + $0x50] sm:$0xff]
        %v3856 = vld [vmem:[%s39 + $0x58] sm:$0xff]
        %v3857 = vld [vmem:[%s39 + $0x60] sm:$0xff]
        %v3858 = vld [vmem:[%s39 + $0x68] sm:$0xff]
        %v3859 = vld [vmem:[%s39 + $0x70] sm:$0xff]
        %v3860 = vld [vmem:[%s39 + $0x78] sm:$0xff]
        %3861 = vmatprep.subr.mxu0 0.0
        %3862 = vmatpush1.msra.mxu0 %v3845
        %3863 = vmatprep.subr.mxu0 0.0
        %3864 = vmatpush1.msra.mxu0 %v3846
        %3865 = vmatprep.subr.mxu0 0.0
        %3866 = vmatpush1.msra.mxu0 %v3847
        %3867 = vmatprep.subr.mxu0 0.0
        %3868 = vmatpush1.msra.mxu0 %v3848
        %3869 = vmatprep.subr.mxu0 0.0
        %3870 = vmatpush1.msra.mxu0 %v3849
        %3871 = vmatprep.subr.mxu0 0.0
        %3872 = vmatpush1.msra.mxu0 %v3850
        %3873 = vmatprep.subr.mxu0 0.0
        %3874 = vmatpush1.msra.mxu0 %v3851
        %3875 = vmatprep.subr.mxu0 0.0
        %3876 = vmatpush1.msra.mxu0 %v3852
        %3877 = vmatprep.subr.mxu0 0.0
        %3878 = vmatpush1.msra.mxu0 %v3853
        %3879 = vmatprep.subr.mxu0 0.0
        %3880 = vmatpush1.msra.mxu0 %v3854
        %3881 = vmatprep.subr.mxu0 0.0
        %3882 = vmatpush1.msra.mxu0 %v3855
        %3883 = vmatprep.subr.mxu0 0.0
        %3884 = vmatpush1.msra.mxu0 %v3856
        %3885 = vmatprep.subr.mxu0 0.0
        %3886 = vmatpush1.msra.mxu0 %v3857
        %3887 = vmatprep.subr.mxu0 0.0
        %3888 = vmatpush1.msra.mxu0 %v3858
        %3889 = vmatprep.subr.mxu0 0.0
        %3890 = vmatpush1.msra.mxu0 %v3859
        %3891 = vmatprep.subr.mxu0 0.0
        %3892 = vmatpush1.msra.mxu0 %v3860
        %3893 = vmatprep.subr.mxu0 0.0
        %3894 = vmatpush1.msra.mxu0 0.0
        %3895 = vmatprep.subr.mxu0 0.0
        %3896 = vmatpush1.msra.mxu0 0.0
        %3897 = vmatprep.subr.mxu0 0.0
        %3898 = vmatpush1.msra.mxu0 0.0
        %3899 = vmatprep.subr.mxu0 0.0
        %3900 = vmatpush1.msra.mxu0 0.0
        %3901 = vmatprep.subr.mxu0 0.0
        %3902 = vmatpush1.msra.mxu0 0.0
        %3903 = vmatprep.subr.mxu0 0.0
        %3904 = vmatpush1.msra.mxu0 0.0
        %3905 = vmatprep.subr.mxu0 0.0
        %3906 = vmatpush1.msra.mxu0 0.0
        %3907 = vmatprep.subr.mxu0 0.0
        %3908 = vmatpush1.msra.mxu0 0.0
        %3909 = vmatprep.subr.mxu0 0.0
        %3910 = vmatpush1.msra.mxu0 0.0
        %3911 = vmatprep.subr.mxu0 0.0
        %3912 = vmatpush1.msra.mxu0 0.0
        %3913 = vmatprep.subr.mxu0 0.0
        %3914 = vmatpush1.msra.mxu0 0.0
        %3915 = vmatprep.subr.mxu0 0.0
        %3916 = vmatpush1.msra.mxu0 0.0
        %3917 = vmatprep.subr.mxu0 0.0
        %3918 = vmatpush1.msra.mxu0 0.0
        %3919 = vmatprep.subr.mxu0 0.0
        %3920 = vmatpush1.msra.mxu0 0.0
        %3921 = vmatprep.subr.mxu0 0.0
        %3922 = vmatpush1.msra.mxu0 0.0
        %3923 = vmatprep.subr.mxu0 0.0
        %3924 = vmatpush1.msra.mxu0 0.0
        %3925 = vmatprep.mubr.f32.mxu0 0.0
        %3926 = vmatmul.mubr.f32.gmra.mrb[0].mxu0 %v3842
        %v3927 = vpop.f32.mrb[0].mxu0
        %v3928 = vadd.f32 0.0, %v3927
        %v3929 = vpop.f32.mrb[0].mxu0
        %3930 = vmatprep.mubr.f32.mxu0 0.0
        %3931 = vmatmul.mubr.f32.gmra.mrb[0].mxu0 %v3843
        %v3932 = vpop.f32.mrb[0].mxu0
        %v3933 = vadd.f32 0.0, %v3932
        %v3934 = vpop.f32.mrb[0].mxu0
        %3935 = vmatprep.mubr.f32.mxu0 0.0
        %3936 = vmatmul.mubr.f32.gmra.mrb[0].mxu0 %v3844
        %v3937 = vpop.f32.mrb[0].mxu0
        %v3938 = vadd.f32 0.0, %v3937
        %v3939 = vpop.f32.mrb[0].mxu0
        %3940 = vdwg.mxu0
        %v3941 = vadd.f32 %v2709, %v3928
        %v3942 = vadd.f32 %v2710, %v3933
        %v3943 = vadd.f32 %v2711, %v3938
        %v3944 = vld [vmem:[%s41] sm:$0x1]
        %v3946 = vlaneseq
        %v3947 = vshrl.u32 %v3946, 7
        %v3948 = vsub.s32 0, %v3947
        %v3949 = vrot.slane %v3944, %v3948
        %v3951 = vadd.f32 %v3941, %v3949
        %v3952 = vadd.f32 %v3942, %v3949
        %v3953 = vadd.f32 %v3943, %v3949
        %v3954 = vld [vmem:[%s43] sm:$0x1]
        %v3955 = vld [vmem:[%s45] sm:$0x1]
        %3956 = vadd.xlane.f32.xlu0 %v3951
        %v3957 = vpop.xlane.xlu0 %3956
        %3958 = vadd.xlane.f32.xlu0 %v3952
        %v3959 = vpop.xlane.xlu0 %3958
        %v3960 = vsel %vm1107, %v3953, 0.0
        %3961 = vadd.xlane.f32.xlu0 %v3960
        %v3962 = vpop.xlane.xlu0 %3961
        %v3963 = vmul.f32 %v3957, %v1111
        %v3964 = vmul.f32 %v3959, %v1111
        %v3965 = vmul.f32 %v3962, %v1111
        %v3966 = vsub.f32 %v3951, %v3963
        %v3967 = vsub.f32 %v3952, %v3964
        %v3968 = vsub.f32 %v3953, %v3965
        %v3969 = vmul.f32 %v3966, %v3966
        %v3970 = vmul.f32 %v3967, %v3967
        %v3971 = vmul.f32 %v3968, %v3968
        %3972 = vadd.xlane.f32.xlu0 %v3969
        %v3973 = vpop.xlane.xlu0 %3972
        %3974 = vadd.xlane.f32.xlu0 %v3970
        %v3975 = vpop.xlane.xlu0 %3974
        %v3976 = vsel %vm1107, %v3971, 0.0
        %3977 = vadd.xlane.f32.xlu0 %v3976
        %v3978 = vpop.xlane.xlu0 %3977
        %v3979 = vmul.f32 %v3973, %v1111
        %v3980 = vmul.f32 %v3975, %v1111
        %v3981 = vmul.f32 %v3978, %v1111
        %v3982 = vadd.f32 %v3979, 1e-05
        %v3983 = vadd.f32 %v3980, 1e-05
        %v3984 = vadd.f32 %v3981, 1e-05
        %v3985 = vrsqrt.pop %v3982
        %v3986 = vrsqrt.pop %v3983
        %v3987 = vrsqrt.pop %v3984
        %v3988 = vmul.f32 %v3966, %v3985
        %v3989 = vmul.f32 %v3967, %v3986
        %v3990 = vmul.f32 %v3968, %v3987
        %v3992 = vlaneseq
        %v3993 = vshrl.u32 %v3992, 7
        %v3994 = vsub.s32 0, %v3993
        %v3995 = vrot.slane %v3954, %v3994
        %v3997 = vmul.f32 %v3988, %v3995
        %v3998 = vmul.f32 %v3989, %v3995
        %v3999 = vmul.f32 %v3990, %v3995
        %v4001 = vlaneseq
        %v4002 = vshrl.u32 %v4001, 7
        %v4003 = vsub.s32 0, %v4002
        %v4004 = vrot.slane %v3955, %v4003
        %v4006 = vadd.f32 %v3997, %v4004
        %v4007 = vadd.f32 %v3998, %v4004
        %v4008 = vadd.f32 %v3999, %v4004
        %v4009 = vld [vmem:[%s47] sm:$0xff]
        %v4010 = vld [vmem:[%s47 + $0x8] sm:$0xff]
        %v4011 = vld [vmem:[%s47 + $0x10] sm:$0xff]
        %v4012 = vld [vmem:[%s47 + $0x18] sm:$0xff]
        %v4013 = vld [vmem:[%s47 + $0x20] sm:$0xff]
        %v4014 = vld [vmem:[%s47 + $0x28] sm:$0xff]
        %v4015 = vld [vmem:[%s47 + $0x30] sm:$0xff]
        %v4016 = vld [vmem:[%s47 + $0x38] sm:$0xff]
        %v4017 = vld [vmem:[%s47 + $0x40] sm:$0xff]
        %v4018 = vld [vmem:[%s47 + $0x48] sm:$0xff]
        %v4019 = vld [vmem:[%s47 + $0x50] sm:$0xff]
        %v4020 = vld [vmem:[%s47 + $0x58] sm:$0xff]
        %v4021 = vld [vmem:[%s47 + $0x60] sm:$0xff]
        %v4022 = vld [vmem:[%s47 + $0x68] sm:$0xff]
        %v4023 = vld [vmem:[%s47 + $0x70] sm:$0xff]
        %v4024 = vld [vmem:[%s47 + $0x78] sm:$0xff]
        %v4025 = vld [vmem:[%s47 + $0x80] sm:$0xff]
        %v4026 = vld [vmem:[%s47 + $0x88] sm:$0xff]
        %v4027 = vld [vmem:[%s47 + $0x90] sm:$0xff]
        %v4028 = vld [vmem:[%s47 + $0x98] sm:$0xff]
        %v4029 = vld [vmem:[%s47 + $0xa0] sm:$0xff]
        %v4030 = vld [vmem:[%s47 + $0xa8] sm:$0xff]
        %v4031 = vld [vmem:[%s47 + $0xb0] sm:$0xff]
        %v4032 = vld [vmem:[%s47 + $0xb8] sm:$0xff]
        %v4033 = vld [vmem:[%s47 + $0xc0] sm:$0xff]
        %v4034 = vld [vmem:[%s47 + $0xc8] sm:$0xff]
        %v4035 = vld [vmem:[%s47 + $0xd0] sm:$0xff]
        %v4036 = vld [vmem:[%s47 + $0xd8] sm:$0xff]
        %v4037 = vld [vmem:[%s47 + $0xe0] sm:$0xff]
        %v4038 = vld [vmem:[%s47 + $0xe8] sm:$0xff]
        %v4039 = vld [vmem:[%s47 + $0xf0] sm:$0xff]
        %v4040 = vld [vmem:[%s47 + $0xf8] sm:$0xff]
        %v4041 = vld [vmem:[%s49] sm:$0x3]
        %v4043 = vlaneseq
        %v4044 = vshrl.u32 %v4043, 7
        %v4045 = vsub.s32 0, %v4044
        %v4046 = vrot.slane %v4041, %v4045
        %v4047 = vlaneseq
        %v4048 = vshrl.u32 %v4047, 7
        %v4049 = vsub.s32 1, %v4048
        %v4050 = vrot.slane %v4041, %v4049
        %4053 = vmatprep.subr.mxu0 %v4010
        %4054 = vmatpush1.msra.mxu0 %v4009
        %4055 = vmatprep.subr.mxu0 %v4012
        %4056 = vmatpush1.msra.mxu0 %v4011
        %4057 = vmatprep.subr.mxu0 %v4014
        %4058 = vmatpush1.msra.mxu0 %v4013
        %4059 = vmatprep.subr.mxu0 %v4016
        %4060 = vmatpush1.msra.mxu0 %v4015
        %4061 = vmatprep.subr.mxu0 %v4018
        %4062 = vmatpush1.msra.mxu0 %v4017
        %4063 = vmatprep.subr.mxu0 %v4020
        %4064 = vmatpush1.msra.mxu0 %v4019
        %4065 = vmatprep.subr.mxu0 %v4022
        %4066 = vmatpush1.msra.mxu0 %v4021
        %4067 = vmatprep.subr.mxu0 %v4024
        %4068 = vmatpush1.msra.mxu0 %v4023
        %4069 = vmatprep.subr.mxu0 %v4026
        %4070 = vmatpush1.msra.mxu0 %v4025
        %4071 = vmatprep.subr.mxu0 %v4028
        %4072 = vmatpush1.msra.mxu0 %v4027
        %4073 = vmatprep.subr.mxu0 %v4030
        %4074 = vmatpush1.msra.mxu0 %v4029
        %4075 = vmatprep.subr.mxu0 %v4032
        %4076 = vmatpush1.msra.mxu0 %v4031
        %4077 = vmatprep.subr.mxu0 %v4034
        %4078 = vmatpush1.msra.mxu0 %v4033
        %4079 = vmatprep.subr.mxu0 %v4036
        %4080 = vmatpush1.msra.mxu0 %v4035
        %4081 = vmatprep.subr.mxu0 %v4038
        %4082 = vmatpush1.msra.mxu0 %v4037
        %4083 = vmatprep.subr.mxu0 %v4040
        %4084 = vmatpush1.msra.mxu0 %v4039
        %4085 = vmatprep.subr.mxu0 0.0
        %4086 = vmatpush1.msra.mxu0 0.0
        %4087 = vmatprep.subr.mxu0 0.0
        %4088 = vmatpush1.msra.mxu0 0.0
        %4089 = vmatprep.subr.mxu0 0.0
        %4090 = vmatpush1.msra.mxu0 0.0
        %4091 = vmatprep.subr.mxu0 0.0
        %4092 = vmatpush1.msra.mxu0 0.0
        %4093 = vmatprep.subr.mxu0 0.0
        %4094 = vmatpush1.msra.mxu0 0.0
        %4095 = vmatprep.subr.mxu0 0.0
        %4096 = vmatpush1.msra.mxu0 0.0
        %4097 = vmatprep.subr.mxu0 0.0
        %4098 = vmatpush1.msra.mxu0 0.0
        %4099 = vmatprep.subr.mxu0 0.0
        %4100 = vmatpush1.msra.mxu0 0.0
        %4101 = vmatprep.subr.mxu0 0.0
        %4102 = vmatpush1.msra.mxu0 0.0
        %4103 = vmatprep.subr.mxu0 0.0
        %4104 = vmatpush1.msra.mxu0 0.0
        %4105 = vmatprep.subr.mxu0 0.0
        %4106 = vmatpush1.msra.mxu0 0.0
        %4107 = vmatprep.subr.mxu0 0.0
        %4108 = vmatpush1.msra.mxu0 0.0
        %4109 = vmatprep.subr.mxu0 0.0
        %4110 = vmatpush1.msra.mxu0 0.0
        %4111 = vmatprep.subr.mxu0 0.0
        %4112 = vmatpush1.msra.mxu0 0.0
        %4113 = vmatprep.subr.mxu0 0.0
        %4114 = vmatpush1.msra.mxu0 0.0
        %4115 = vmatprep.subr.mxu0 0.0
        %4116 = vmatpush1.msra.mxu0 0.0
        %4117 = vmatprep.mubr.f32.mxu0 0.0
        %4118 = vmatmul.mubr.f32.gmra.mrb[0].mxu0 %v4006
        %v4119 = vpop.f32.mrb[0].mxu0
        %v4120 = vadd.f32 %v4046, %v4119
        %v4121 = vpop.f32.mrb[0].mxu0
        %v4122 = vadd.f32 %v4050, %v4121
        %4123 = vmatprep.mubr.f32.mxu0 0.0
        %4124 = vmatmul.mubr.f32.gmra.mrb[0].mxu0 %v4007
        %v4125 = vpop.f32.mrb[0].mxu0
        %v4126 = vadd.f32 %v4046, %v4125
        %v4127 = vpop.f32.mrb[0].mxu0
        %v4128 = vadd.f32 %v4050, %v4127
        %4129 = vmatprep.mubr.f32.mxu0 0.0
        %4130 = vmatmul.mubr.f32.gmra.mrb[0].mxu0 %v4008
        %v4131 = vpop.f32.mrb[0].mxu0
        %v4132 = vadd.f32 %v4046, %v4131
        %v4133 = vpop.f32.mrb[0].mxu0
        %v4134 = vadd.f32 %v4050, %v4133
        %4135 = vdwg.mxu0
        %v4136 = vmul.f32 %v4120, 0.5
        %v4137 = vmul.f32 %v4122, 0.5
        %v4138 = vmul.f32 %v4126, 0.5
        %v4139 = vmul.f32 %v4128, 0.5
        %v4140 = vmul.f32 %v4132, 0.5
        %v4141 = vmul.f32 %v4134, 0.5
        %v4142 = vmul.f32 %v4120, 0.044715
        %v4143 = vmul.f32 %v4122, 0.044715
        %v4144 = vmul.f32 %v4126, 0.044715
        %v4145 = vmul.f32 %v4128, 0.044715
        %v4146 = vmul.f32 %v4132, 0.044715
        %v4147 = vmul.f32 %v4134, 0.044715
        %v4148 = vmul.f32 %v4142, %v4120
        %v4149 = vmul.f32 %v4143, %v4122
        %v4150 = vmul.f32 %v4144, %v4126
        %v4151 = vmul.f32 %v4145, %v4128
        %v4152 = vmul.f32 %v4146, %v4132
        %v4153 = vmul.f32 %v4147, %v4134
        %v4154 = vmul.f32 %v4148, %v4120
        %v4155 = vmul.f32 %v4149, %v4122
        %v4156 = vmul.f32 %v4150, %v4126
        %v4157 = vmul.f32 %v4151, %v4128
        %v4158 = vmul.f32 %v4152, %v4132
        %v4159 = vmul.f32 %v4153, %v4134
        %v4160 = vadd.f32 %v4120, %v4154
        %v4161 = vadd.f32 %v4122, %v4155
        %v4162 = vadd.f32 %v4126, %v4156
        %v4163 = vadd.f32 %v4128, %v4157
        %v4164 = vadd.f32 %v4132, %v4158
        %v4165 = vadd.f32 %v4134, %v4159
        %v4166 = vmul.f32 %v4160, 0.7978846
        %v4167 = vmul.f32 %v4161, 0.7978846
        %v4168 = vmul.f32 %v4162, 0.7978846
        %v4169 = vmul.f32 %v4163, 0.7978846
        %v4170 = vmul.f32 %v4164, 0.7978846
        %v4171 = vmul.f32 %v4165, 0.7978846
        %v4172 = vtanh.pop %v4166
        %v4173 = vtanh.pop %v4167
        %v4174 = vtanh.pop %v4168
        %v4175 = vtanh.pop %v4169
        %v4176 = vtanh.pop %v4170
        %v4177 = vtanh.pop %v4171
        %v4178 = vadd.f32 %v4172, 1.0
        %v4179 = vadd.f32 %v4173, 1.0
        %v4180 = vadd.f32 %v4174, 1.0
        %v4181 = vadd.f32 %v4175, 1.0
        %v4182 = vadd.f32 %v4176, 1.0
        %v4183 = vadd.f32 %v4177, 1.0
        %v4184 = vmul.f32 %v4136, %v4178
        %v4185 = vmul.f32 %v4137, %v4179
        %v4186 = vmul.f32 %v4138, %v4180
        %v4187 = vmul.f32 %v4139, %v4181
        %v4188 = vmul.f32 %v4140, %v4182
        %v4189 = vmul.f32 %v4141, %v4183
        %v4190 = vld [vmem:[%s51] sm:$0xff]
        %v4191 = vld [vmem:[%s51 + $0x8] sm:$0xff]
        %v4192 = vld [vmem:[%s51 + $0x10] sm:$0xff]
        %v4193 = vld [vmem:[%s51 + $0x18] sm:$0xff]
        %v4194 = vld [vmem:[%s51 + $0x20] sm:$0xff]
        %v4195 = vld [vmem:[%s51 + $0x28] sm:$0xff]
        %v4196 = vld [vmem:[%s51 + $0x30] sm:$0xff]
        %v4197 = vld [vmem:[%s51 + $0x38] sm:$0xff]
        %v4198 = vld [vmem:[%s51 + $0x40] sm:$0xff]
        %v4199 = vld [vmem:[%s51 + $0x48] sm:$0xff]
        %v4200 = vld [vmem:[%s51 + $0x50] sm:$0xff]
        %v4201 = vld [vmem:[%s51 + $0x58] sm:$0xff]
        %v4202 = vld [vmem:[%s51 + $0x60] sm:$0xff]
        %v4203 = vld [vmem:[%s51 + $0x68] sm:$0xff]
        %v4204 = vld [vmem:[%s51 + $0x70] sm:$0xff]
        %v4205 = vld [vmem:[%s51 + $0x78] sm:$0xff]
        %v4206 = vld [vmem:[%s51 + $0x80] sm:$0xff]
        %v4207 = vld [vmem:[%s51 + $0x88] sm:$0xff]
        %v4208 = vld [vmem:[%s51 + $0x90] sm:$0xff]
        %v4209 = vld [vmem:[%s51 + $0x98] sm:$0xff]
        %v4210 = vld [vmem:[%s51 + $0xa0] sm:$0xff]
        %v4211 = vld [vmem:[%s51 + $0xa8] sm:$0xff]
        %v4212 = vld [vmem:[%s51 + $0xb0] sm:$0xff]
        %v4213 = vld [vmem:[%s51 + $0xb8] sm:$0xff]
        %v4214 = vld [vmem:[%s51 + $0xc0] sm:$0xff]
        %v4215 = vld [vmem:[%s51 + $0xc8] sm:$0xff]
        %v4216 = vld [vmem:[%s51 + $0xd0] sm:$0xff]
        %v4217 = vld [vmem:[%s51 + $0xd8] sm:$0xff]
        %v4218 = vld [vmem:[%s51 + $0xe0] sm:$0xff]
        %v4219 = vld [vmem:[%s51 + $0xe8] sm:$0xff]
        %v4220 = vld [vmem:[%s51 + $0xf0] sm:$0xff]
        %v4221 = vld [vmem:[%s51 + $0xf8] sm:$0xff]
        %4222 = vmatprep.subr.mxu0 0.0
        %4223 = vmatpush1.msra.mxu0 %v4190
        %4224 = vmatprep.subr.mxu0 0.0
        %4225 = vmatpush1.msra.mxu0 %v4191
        %4226 = vmatprep.subr.mxu0 0.0
        %4227 = vmatpush1.msra.mxu0 %v4192
        %4228 = vmatprep.subr.mxu0 0.0
        %4229 = vmatpush1.msra.mxu0 %v4193
        %4230 = vmatprep.subr.mxu0 0.0
        %4231 = vmatpush1.msra.mxu0 %v4194
        %4232 = vmatprep.subr.mxu0 0.0
        %4233 = vmatpush1.msra.mxu0 %v4195
        %4234 = vmatprep.subr.mxu0 0.0
        %4235 = vmatpush1.msra.mxu0 %v4196
        %4236 = vmatprep.subr.mxu0 0.0
        %4237 = vmatpush1.msra.mxu0 %v4197
        %4238 = vmatprep.subr.mxu0 0.0
        %4239 = vmatpush1.msra.mxu0 %v4198
        %4240 = vmatprep.subr.mxu0 0.0
        %4241 = vmatpush1.msra.mxu0 %v4199
        %4242 = vmatprep.subr.mxu0 0.0
        %4243 = vmatpush1.msra.mxu0 %v4200
        %4244 = vmatprep.subr.mxu0 0.0
        %4245 = vmatpush1.msra.mxu0 %v4201
        %4246 = vmatprep.subr.mxu0 0.0
        %4247 = vmatpush1.msra.mxu0 %v4202
        %4248 = vmatprep.subr.mxu0 0.0
        %4249 = vmatpush1.msra.mxu0 %v4203
        %4250 = vmatprep.subr.mxu0 0.0
        %4251 = vmatpush1.msra.mxu0 %v4204
        %4252 = vmatprep.subr.mxu0 0.0
        %4253 = vmatpush1.msra.mxu0 %v4205
        %4254 = vmatprep.subr.mxu0 0.0
        %4255 = vmatpush1.msra.mxu0 %v4206
        %4256 = vmatprep.subr.mxu0 0.0
        %4257 = vmatpush1.msra.mxu0 %v4207
        %4258 = vmatprep.subr.mxu0 0.0
        %4259 = vmatpush1.msra.mxu0 %v4208
        %4260 = vmatprep.subr.mxu0 0.0
        %4261 = vmatpush1.msra.mxu0 %v4209
        %4262 = vmatprep.subr.mxu0 0.0
        %4263 = vmatpush1.msra.mxu0 %v4210
        %4264 = vmatprep.subr.mxu0 0.0
        %4265 = vmatpush1.msra.mxu0 %v4211
        %4266 = vmatprep.subr.mxu0 0.0
        %4267 = vmatpush1.msra.mxu0 %v4212
        %4268 = vmatprep.subr.mxu0 0.0
        %4269 = vmatpush1.msra.mxu0 %v4213
        %4270 = vmatprep.subr.mxu0 0.0
        %4271 = vmatpush1.msra.mxu0 %v4214
        %4272 = vmatprep.subr.mxu0 0.0
        %4273 = vmatpush1.msra.mxu0 %v4215
        %4274 = vmatprep.subr.mxu0 0.0
        %4275 = vmatpush1.msra.mxu0 %v4216
        %4276 = vmatprep.subr.mxu0 0.0
        %4277 = vmatpush1.msra.mxu0 %v4217
        %4278 = vmatprep.subr.mxu0 0.0
        %4279 = vmatpush1.msra.mxu0 %v4218
        %4280 = vmatprep.subr.mxu0 0.0
        %4281 = vmatpush1.msra.mxu0 %v4219
        %4282 = vmatprep.subr.mxu0 0.0
        %4283 = vmatpush1.msra.mxu0 %v4220
        %4284 = vmatprep.subr.mxu0 0.0
        %4285 = vmatpush1.msra.mxu0 %v4221
        %4286 = vmatprep.mubr.f32.mxu0 %v4185
        %4287 = vmatmul.mubr.f32.gmra.mrb[0].mxu0 %v4184
        %v4288 = vpop.f32.mrb[0].mxu0
        %v4289 = vadd.f32 0.0, %v4288
        %v4290 = vpop.f32.mrb[0].mxu0
        %4291 = vmatprep.mubr.f32.mxu0 %v4187
        %4292 = vmatmul.mubr.f32.gmra.mrb[0].mxu0 %v4186
        %v4293 = vpop.f32.mrb[0].mxu0
        %v4294 = vpop.f32.mrb[0].mxu0
        %4295 = vmatprep.mubr.f32.mxu0 %v4189
        %4296 = vmatmul.mubr.f32.gmra.mrb[0].mxu0 %v4188
        %v4297 = vpop.f32.mrb[0].mxu0
        %v4298 = vpop.f32.mrb[0].mxu0
        %4299 = vdwg.mxu0
        %v4300 = vadd.f32 %v3951, %v4289
        %v4301 = vld [vmem:[%s53] sm:$0x1]
        %v4303 = vlaneseq
        %v4304 = vshrl.u32 %v4303, 7
        %v4305 = vsub.s32 0, %v4304
        %v4306 = vrot.slane %v4301, %v4305
        %v4308 = vadd.f32 %v4300, %v4306
        %v4309 = vld [vmem:[%s55] sm:$0x1]
        %v4310 = vld [vmem:[%s57] sm:$0x1]
        %v4311 = vsel %vm1107, %v4308, 0.0
        %4312 = vadd.xlane.f32.xlu0 %v4311
        %v4313 = vpop.xlane.xlu0 %4312
        %v4314 = vmul.f32 %v4313, %v1111
        %v4315 = vsub.f32 %v4308, %v4314
        %v4316 = vmul.f32 %v4315, %v4315
        %v4317 = vsel %vm1107, %v4316, 0.0
        %4318 = vadd.xlane.f32.xlu0 %v4317
        %v4319 = vpop.xlane.xlu0 %4318
        %v4320 = vmul.f32 %v4319, %v1111
        %v4321 = vadd.f32 %v4320, 1e-05
        %v4322 = vrsqrt.pop %v4321
        %v4323 = vmul.f32 %v4315, %v4322
        %v4324 = vmul.f32 %v4323, %v4309
        %v4325 = vadd.f32 %v4324, %v4310
        %v4326 = vld [vmem:[%s59] sm:$0xff]
        %v4327 = vld [vmem:[%s59 + $0x8] sm:$0xff]
        %v4328 = vld [vmem:[%s59 + $0x10] sm:$0xff]
        %v4329 = vld [vmem:[%s59 + $0x18] sm:$0xff]
        %v4330 = vld [vmem:[%s59 + $0x20] sm:$0xff]
        %v4331 = vld [vmem:[%s59 + $0x28] sm:$0xff]
        %v4332 = vld [vmem:[%s59 + $0x30] sm:$0xff]
        %v4333 = vld [vmem:[%s59 + $0x38] sm:$0xff]
        %v4334 = vld [vmem:[%s59 + $0x40] sm:$0xff]
        %v4335 = vld [vmem:[%s59 + $0x48] sm:$0xff]
        %v4336 = vld [vmem:[%s59 + $0x50] sm:$0xff]
        %v4337 = vld [vmem:[%s59 + $0x58] sm:$0xff]
        %v4338 = vld [vmem:[%s59 + $0x60] sm:$0xff]
        %v4339 = vld [vmem:[%s59 + $0x68] sm:$0xff]
        %v4340 = vld [vmem:[%s59 + $0x70] sm:$0xff]
        %v4341 = vld [vmem:[%s59 + $0x78] sm:$0xff]
        %v4342 = vld [vmem:[%s61] sm:$0x1]
        %4343 = vmatprep.subr.mxu0 0.0
        %4344 = vmatpush1.msra.mxu0 %v4326
        %4345 = vmatprep.subr.mxu0 0.0
        %4346 = vmatpush1.msra.mxu0 %v4327
        %4347 = vmatprep.subr.mxu0 0.0
        %4348 = vmatpush1.msra.mxu0 %v4328
        %4349 = vmatprep.subr.mxu0 0.0
        %4350 = vmatpush1.msra.mxu0 %v4329
        %4351 = vmatprep.subr.mxu0 0.0
        %4352 = vmatpush1.msra.mxu0 %v4330
        %4353 = vmatprep.subr.mxu0 0.0
        %4354 = vmatpush1.msra.mxu0 %v4331
        %4355 = vmatprep.subr.mxu0 0.0
        %4356 = vmatpush1.msra.mxu0 %v4332
        %4357 = vmatprep.subr.mxu0 0.0
        %4358 = vmatpush1.msra.mxu0 %v4333
        %4359 = vmatprep.subr.mxu0 0.0
        %4360 = vmatpush1.msra.mxu0 %v4334
        %4361 = vmatprep.subr.mxu0 0.0
        %4362 = vmatpush1.msra.mxu0 %v4335
        %4363 = vmatprep.subr.mxu0 0.0
        %4364 = vmatpush1.msra.mxu0 %v4336
        %4365 = vmatprep.subr.mxu0 0.0
        %4366 = vmatpush1.msra.mxu0 %v4337
        %4367 = vmatprep.subr.mxu0 0.0
        %4368 = vmatpush1.msra.mxu0 %v4338
        %4369 = vmatprep.subr.mxu0 0.0
        %4370 = vmatpush1.msra.mxu0 %v4339
        %4371 = vmatprep.subr.mxu0 0.0
        %4372 = vmatpush1.msra.mxu0 %v4340
        %4373 = vmatprep.subr.mxu0 0.0
        %4374 = vmatpush1.msra.mxu0 %v4341
        %4375 = vmatprep.subr.mxu0 0.0
        %4376 = vmatpush1.msra.mxu0 0.0
        %4377 = vmatprep.subr.mxu0 0.0
        %4378 = vmatpush1.msra.mxu0 0.0
        %4379 = vmatprep.subr.mxu0 0.0
        %4380 = vmatpush1.msra.mxu0 0.0
        %4381 = vmatprep.subr.mxu0 0.0
        %4382 = vmatpush1.msra.mxu0 0.0
        %4383 = vmatprep.subr.mxu0 0.0
        %4384 = vmatpush1.msra.mxu0 0.0
        %4385 = vmatprep.subr.mxu0 0.0
        %4386 = vmatpush1.msra.mxu0 0.0
        %4387 = vmatprep.subr.mxu0 0.0
        %4388 = vmatpush1.msra.mxu0 0.0
        %4389 = vmatprep.subr.mxu0 0.0
        %4390 = vmatpush1.msra.mxu0 0.0
        %4391 = vmatprep.subr.mxu0 0.0
        %4392 = vmatpush1.msra.mxu0 0.0
        %4393 = vmatprep.subr.mxu0 0.0
        %4394 = vmatpush1.msra.mxu0 0.0
        %4395 = vmatprep.subr.mxu0 0.0
        %4396 = vmatpush1.msra.mxu0 0.0
        %4397 = vmatprep.subr.mxu0 0.0
        %4398 = vmatpush1.msra.mxu0 0.0
        %4399 = vmatprep.subr.mxu0 0.0
        %4400 = vmatpush1.msra.mxu0 0.0
        %4401 = vmatprep.subr.mxu0 0.0
        %4402 = vmatpush1.msra.mxu0 0.0
        %4403 = vmatprep.subr.mxu0 0.0
        %4404 = vmatpush1.msra.mxu0 0.0
        %4405 = vmatprep.subr.mxu0 0.0
        %4406 = vmatpush1.msra.mxu0 0.0
        %4407 = vmatprep.mubr.f32.mxu0 0.0
        %4408 = vmatmul.mubr.f32.gmra.mrb[0].mxu0 %v4325
        %v4409 = vpop.f32.mrb[0].mxu0
        %v4410 = vadd.f32 %v4342, %v4409
        %v4411 = vpop.f32.mrb[0].mxu0
        %4412 = vdwg.mxu0
        %4413 = vst [vmem:[%s950] sm:$0x1] %v4410
        %s4414 = sand.u32 %s741, 1
        %s4415 = scalar_lea.sflag [#allocation3], %s4414
        %s4416 = sand.u32 %s741, 1
        %s4417 = scalar_lea.vmem [#allocation2], %s4416
        // Predicated region
        $region145: #{vit_forward.1} parent=143 // pred_check
          %p4418 = pneg %p751
        $region146: #{vit_forward.1} parent=143 // pred_check_branch
          %4420 = sbr.rel (%p4418) target = $region148
        $region147: #{vit_forward.1} parent=143 // pred_region
          %s4422 = ssub.s32 16, 16
          %4423 = vsyncadd %s4415, %s4422
          %s4424 = smul.addr %s77, 16
          %s4425 = scalar_lea.hbm %s63, %s4424
          %s4427 = sshll.u32 %s4417, 4
          %s4428 = int_to_ptr.vmem [resolvable:$true] %s4427
          %4430 = dma.vmem_to_hbm [thread:$0]  %s4428, 16, %s4425, %s4415
        $region148: #{vit_forward.1} parent=143 // pred_fallthru
          _
      $region144: #{vit_forward.1} parent=5 // pred_fallthru
        _
      %p4431 = scmp.le.s32.totalorder 2, %s72
      // Predicated region
      $region149: #{vit_forward.1} parent=5 // pred_check
        %p4432 = pneg %p4431
      $region150: #{vit_forward.1} parent=5 // pred_check_branch
        %4434 = sbr.rel (%p4432) target = $region152
      $region151: #{vit_forward.1} parent=5 // pred_region
        %s4435 = ssub.s32 %s72, 2
        // Predicated region
        $region153: #{vit_forward.1} parent=151 // pred_check
          %p4436 = pneg %p757
        $region154: #{vit_forward.1} parent=151 // pred_check_branch
          %4438 = sbr.rel (%p4436) target = $region156
        $region155: #{vit_forward.1} parent=151 // pred_region
          %s4439 = sand.u32 %s742, 1
          %s4440 = scalar_lea.sflag [#allocation3], %s4439
          %s4441 = sand.u32 %s742, 1
          %s4442 = scalar_lea.vmem [#allocation2], %s4441
          %4443 = dma.done %s4440, 16
        $region156: #{vit_forward.1} parent=151 // pred_fallthru
          _
      $region152: #{vit_forward.1} parent=5 // pred_fallthru
        _
    $region6: #{vit_forward.1} parent=1 // loop_footer
      %s76 = sadd.s32 1, %s72
    $region7: #{vit_forward.1} parent=1 // loop_footer_branch
      %71 = sbr.rel target = $region3
    $region8: #{vit_forward.1} parent=1 // loop_exit
      _
    %4444 = vsyncpa [#allocation3], 1
    %s4445 = scalar_lea.sflag [#allocation3], 1
    %4446 = vsyncpa %s4445, 1

</llo_original>
